<compile_context>
chip_gen: v7x
topology: tpu7x:2x2x1
jax: 0.10.0
libtpu: 0.0.40
codegen_flags: <defaults>
</compile_context>

<pallas_src>
import functools

import numpy as np
import jax
import jax.numpy as jnp
from jax.experimental import pallas as pl
from jax.experimental.pallas import tpu as pltpu


CIN_PAD = 8                       # stem input channels padded 3 -> 8
LANE = 128                        # lane width: feature/class dims padded to this
_VMEM_LIMIT = 48 * 1024 * 1024    # fits v7x 64 MiB with headroom; fine on v5e/v6e


def _round_up(x, m):
    return ((x + m - 1) // m) * m


def _pick_hw_tile(hw):
    # Prefer >= 2 spatial tiles (pipeline depth + v7x megacore sharding), keep
    # the sublane dim a multiple of 8, and cap rows/tile to bound VMEM.
    for cand in (512, 256, 128, 64, 32, 16, 8):
        if hw % cand == 0 and hw // cand >= 2:
            return cand
    return hw


# ------------------- fused stem + temporal-shift residual block ----------------

def _fused_stem_tsm_block_kernel(x_ref, ws_ref, bs_ref, w1_ref, b1_ref,
                                 w2_ref, b2_ref, o_ref, feat_scr, shift_scr,
                                 *, fold):
    T, hw_t, cin = x_ref.shape
    C = ws_ref.shape[1]

    # stem 1x1 conv + bias + ReLU  (bf16 MXU, f32 accumulation)
    x2 = x_ref[...].reshape(T * hw_t, cin)
    feat = jnp.dot(x2, ws_ref[...], preferred_element_type=jnp.float32) + bs_ref[...]
    feat_scr[...] = jnp.maximum(feat, 0.0).reshape(T, hw_t, C)

    # temporal shift: first `fold` channels pull from t+1, next `fold` from t-1,
    # remaining channels are identity; boundaries are zero. Built row-by-row
    # into a scratch with a (1, C) channel iota (no full-size temporaries).
    c_idx = jax.lax.broadcasted_iota(jnp.int32, (1, C), 1)
    fwd_mask = c_idx < fold
    bwd_mask = jnp.logical_and(c_idx >= fold, c_idx < 2 * fold)
    zero_row = jnp.zeros((hw_t, C), jnp.float32)
    for t in range(T):                                    # T is small & static
        cur = feat_scr[t]
        nxt = feat_scr[t + 1] if t + 1 < T else zero_row
        prv = feat_scr[t - 1] if t >= 1 else zero_row
        shift_scr[t] = jnp.where(fwd_mask, nxt, jnp.where(bwd_mask, prv, cur))

    # two pointwise convs + ReLU, residual add on the un-shifted features
    s2 = shift_scr[...].reshape(T * hw_t, C).astype(jnp.bfloat16)
    h = jnp.dot(s2, w1_ref[...], preferred_element_type=jnp.float32) + b1_ref[...]
    h = jnp.maximum(h, 0.0).astype(jnp.bfloat16)
    h = jnp.dot(h, w2_ref[...], preferred_element_type=jnp.float32) + b2_ref[...]
    out = jnp.maximum(feat_scr[...].reshape(T * hw_t, C) + h, 0.0)
    o_ref[...] = out.reshape(T, hw_t, C).astype(o_ref.dtype)


def fused_stem_tsm_block(x_pad, w_stem, b_stem, w1, b1, w2, b2, *, tile_hw):
    B, T, HW, cin = x_pad.shape
    C = w_stem.shape[1]
    fold = C // 8
    assert HW % tile_hw == 0
    n_hw = HW // tile_hw
    kernel = functools.partial(_fused_stem_tsm_block_kernel, fold=fold)
    return pl.pallas_call(
        kernel,
        out_shape=jax.ShapeDtypeStruct((B, T, HW, C), jnp.bfloat16),
        grid=(B, n_hw),
        in_specs=[
            pl.BlockSpec((None, T, tile_hw, cin), lambda b, j: (b, 0, j, 0)),
            pl.BlockSpec((cin, C), lambda b, j: (0, 0)),
            pl.BlockSpec((1, C), lambda b, j: (0, 0)),
            pl.BlockSpec((C, C), lambda b, j: (0, 0)),
            pl.BlockSpec((1, C), lambda b, j: (0, 0)),
            pl.BlockSpec((C, C), lambda b, j: (0, 0)),
            pl.BlockSpec((1, C), lambda b, j: (0, 0)),
        ],
        out_specs=pl.BlockSpec((None, T, tile_hw, C), lambda b, j: (b, 0, j, 0)),
        scratch_shapes=[
            pltpu.VMEM((T, tile_hw, C), jnp.float32),   # stem output (residual src)
            pltpu.VMEM((T, tile_hw, C), jnp.float32),   # temporally-shifted feats
        ],
        compiler_params=pltpu.CompilerParams(
            dimension_semantics=("parallel", "parallel"),
            vmem_limit_bytes=_VMEM_LIMIT),
    )(x_pad, w_stem, b_stem, w1, b1, w2, b2)


# ---------------- head: global avg pool (T,HW) -> FC -> consensus --------------

def _head_kernel(f_ref, w_ref, b_ref, o_ref, acc_ref, *, inv_count):
    j = pl.program_id(0)

    @pl.when(j == 0)
    def _():
        acc_ref[...] = jnp.zeros_like(acc_ref)

    v = f_ref[...].astype(jnp.float32)                      # (B, T, tile_hw, C)
    acc_ref[...] += jnp.sum(jnp.sum(v, axis=2), axis=1)     # accumulate (B, C)

    @pl.when(j == pl.num_programs(0) - 1)
    def _():
        pooled = (acc_ref[...] * inv_count).astype(jnp.bfloat16)     # (B, C)
        logits = jnp.dot(pooled, w_ref[...],
                         preferred_element_type=jnp.float32) + b_ref[...]
        o_ref[...] = logits


def head(feat, w_fc, b_fc, *, tile_hw):
    B, T, HW, C = feat.shape
    ncp = w_fc.shape[1]
    assert HW % tile_hw == 0
    n_hw = HW // tile_hw
    kernel = functools.partial(_head_kernel, inv_count=1.0 / float(T * HW))
    return pl.pallas_call(
        kernel,
        out_shape=jax.ShapeDtypeStruct((B, ncp), jnp.float32),
        grid=(n_hw,),
        in_specs=[
            pl.BlockSpec((B, T, tile_hw, C), lambda j: (0, 0, j, 0)),
            pl.BlockSpec((C, ncp), lambda j: (0, 0)),
            pl.BlockSpec((1, ncp), lambda j: (0, 0)),
        ],
        out_specs=pl.BlockSpec((B, ncp), lambda j: (0, 0)),
        scratch_shapes=[pltpu.VMEM((B, C), jnp.float32)],
        compiler_params=pltpu.CompilerParams(
            dimension_semantics=("arbitrary",),
            vmem_limit_bytes=_VMEM_LIMIT),
    )(feat, w_fc, b_fc)


# ------------------------------- Model wrapper ---------------------------------

class TSMPallas:
    """Mirror of model_def/tsm.py forward: features -> logits -> verb/noun select."""

    def __init__(self, num_classes, segment_count, pretrained, width=128, key=None):
        assert width % LANE == 0, "feature width must be a multiple of 128"
        self.pretrained = pretrained
        self.segment_count = segment_count
        self.width = width
        if 'epic-kitchens' in pretrained:
            self.class_counts = tuple(int(c) for c in num_classes)   # (n_verb, n_noun)
        else:                                                        # kinetics-style
            self.class_counts = (int(num_classes),)
        self.total = sum(self.class_counts)
        self.ncp = _round_up(self.total, LANE)      # lane-dense classifier output

        if key is None:
            key = jax.random.PRNGKey(0)
        ks = jax.random.split(key, 6)
        C = width
        w_stem = jax.random.normal(ks[0], (3, C), jnp.float32) * 0.2
        self.w_stem = jnp.zeros((CIN_PAD, C), jnp.float32).at[:3].set(
            w_stem).astype(jnp.bfloat16)
        self.b_stem = jax.random.normal(ks[1], (1, C), jnp.float32) * 0.02
        self.w1 = (jax.random.normal(ks[2], (C, C), jnp.float32)
                   / jnp.sqrt(C)).astype(jnp.bfloat16)
        self.b1 = jnp.zeros((1, C), jnp.float32)
        self.w2 = (jax.random.normal(ks[3], (C, C), jnp.float32)
                   / jnp.sqrt(C)).astype(jnp.bfloat16)
        self.b2 = jnp.zeros((1, C), jnp.float32)
        w_fc = jax.random.normal(ks[4], (C, self.total), jnp.float32) / jnp.sqrt(C)
        b_fc = jax.random.normal(ks[5], (1, self.total), jnp.float32) * 0.01
        self.w_fc = jnp.zeros((C, self.ncp), jnp.float32).at[:, :self.total].set(
            w_fc).astype(jnp.bfloat16)
        self.b_fc = jnp.zeros((1, self.ncp), jnp.float32).at[:, :self.total].set(b_fc)

    def _prep_input(self, inp):
        # PyTorch NCHW video (B, T*3, H, W) -> channels-last, Cin padded 3 -> 8, bf16.
        # TODO(synk): the NCHW -> channels-last transpose + pad remains XLA glue.
        B = inp.shape[0]
        T = self.segment_count
        H, W = inp.shape[-2], inp.shape[-1]
        x = inp.reshape(B, T, 3, H, W)
        x = jnp.transpose(x, (0, 1, 3, 4, 2)).reshape(B, T, H * W, 3)
        x = jnp.pad(x, ((0, 0), (0, 0), (0, 0), (0, CIN_PAD - 3)))
        return x.astype(jnp.bfloat16)

    def __call__(self, inp):
        B = inp.shape[0]
        HW = inp.shape[-2] * inp.shape[-1]
        tile_hw = _pick_hw_tile(HW)

        x = self._prep_input(inp)                                       # (B,T,HW,8) bf16
        feat = fused_stem_tsm_block(x, self.w_stem, self.b_stem,
                                    self.w1, self.b1, self.w2, self.b2,
                                    tile_hw=tile_hw)                    # (B,T,HW,C) bf16
        logits = head(feat, self.w_fc, self.b_fc, tile_hw=tile_hw)      # (B, NCP) f32
        logits = logits[:, :self.total]

        if 'epic-kitchens' in self.pretrained:
            nv = self.class_counts[0]
            verb_logits, noun_logits = logits[:, :nv], logits[:, nv:]
            if 'noun' in self.pretrained:
                return noun_logits
            if 'verb' in self.pretrained:
                return verb_logits
            return verb_logits, noun_logits
        return logits


# ------------------------------ pure-JAX reference -----------------------------

def reference_forward(model, inp):
    B = inp.shape[0]
    T = model.segment_count
    H, W = inp.shape[-2], inp.shape[-1]
    HW = H * W
    C = model.width
    fold = C // 8

    x = model._prep_input(inp)                                       # (B,T,HW,8) bf16
    feat = jnp.dot(x.reshape(B * T * HW, CIN_PAD), model.w_stem,
                   preferred_element_type=jnp.float32) + model.b_stem
    feat = jnp.maximum(feat, 0.0).reshape(B, T, HW, C)

    zero = jnp.zeros((B, 1, HW, C), jnp.float32)
    x_fwd = jnp.concatenate([feat[:, 1:], zero], axis=1)
    x_bwd = jnp.concatenate([zero, feat[:, :-1]], axis=1)
    c_idx = jnp.arange(C)
    shifted = jnp.where(c_idx < fold, x_fwd,
                        jnp.where(c_idx < 2 * fold, x_bwd, feat))

    h = jnp.dot(shifted.astype(jnp.bfloat16).reshape(B * T * HW, C), model.w1,
                preferred_element_type=jnp.float32) + model.b1
    h = jnp.maximum(h, 0.0).astype(jnp.bfloat16)
    h = jnp.dot(h, model.w2, preferred_element_type=jnp.float32) + model.b2
    out = jnp.maximum(feat + h.reshape(B, T, HW, C), 0.0).astype(jnp.bfloat16)

    pooled = out.astype(jnp.float32).mean(axis=(1, 2)).astype(jnp.bfloat16)  # (B, C)
    logits = jnp.dot(pooled, model.w_fc,
                     preferred_element_type=jnp.float32) + model.b_fc
    logits = logits[:, :model.total]

    if 'epic-kitchens' in model.pretrained:
        nv = model.class_counts[0]
        if 'noun' in model.pretrained:
            return logits[:, nv:]
        if 'verb' in model.pretrained:
            return logits[:, :nv]
        return logits[:, :nv], logits[:, nv:]
    return logits


# ----------------------------------- demo --------------------------------------

if __name__ == "__main__":
    key = jax.random.PRNGKey(0)
    k_in, k_model = jax.random.split(key)

    B, T, H, W = 2, 4, 16, 16
    num_classes = (12, 16)   # synthetic small (verb, noun) stand-in for (125, 352)

    model = TSMPallas(num_classes, segment_count=T,
                      pretrained='epic-kitchens-verb', width=128, key=k_model)

    x = jax.random.normal(k_in, (B, T * 3, H, W), jnp.float32)

    out = jax.block_until_ready(model(x))

    ref = reference_forward(model, x)
    np.testing.assert_allclose(np.asarray(out), np.asarray(ref), rtol=2e-2, atol=2e-2)
    assert out.shape == (B, num_classes[0])

    print("KERNEL_OK")
</pallas_src>

<mosaic_0001>
module attributes {stable_mosaic.version = 11 : i64} {
  func.func @_fused_stem_tsm_block_kernel(%arg0: i32, %arg1: i32, %arg2: memref<1x4x128x8xbf16, #tpu.memory_space<vmem>>, %arg3: memref<8x128xbf16, #tpu.memory_space<vmem>>, %arg4: memref<1x128xf32, #tpu.memory_space<vmem>>, %arg5: memref<128x128xbf16, #tpu.memory_space<vmem>>, %arg6: memref<1x128xf32, #tpu.memory_space<vmem>>, %arg7: memref<128x128xbf16, #tpu.memory_space<vmem>>, %arg8: memref<1x128xf32, #tpu.memory_space<vmem>>, %arg9: memref<1x4x128x128xbf16, #tpu.memory_space<vmem>>, %arg10: memref<4x128x128xf32, #tpu.memory_space<vmem>>, %arg11: memref<4x128x128xf32, #tpu.memory_space<vmem>>) attributes {dimension_semantics = [#tpu.dimension_semantics<parallel>, #tpu.dimension_semantics<parallel>], iteration_bounds = array<i64: 2, 2>, scalar_prefetch = 0 : i64, scratch_operands = 2 : i64, tpu.core_type = #tpu.core_type<tc>, window_params = [{transform_indices = @transform_0, window_bounds = array<i64: 1, 4, 128, 8>}, {pipeline_mode = #tpu.pipeline_mode<synchronous>, transform_indices = @transform_1, window_bounds = array<i64: 8, 128>}, {pipeline_mode = #tpu.pipeline_mode<synchronous>, transform_indices = @transform_2, window_bounds = array<i64: 1, 128>}, {pipeline_mode = #tpu.pipeline_mode<synchronous>, transform_indices = @transform_3, window_bounds = array<i64: 128, 128>}, {pipeline_mode = #tpu.pipeline_mode<synchronous>, transform_indices = @transform_4, window_bounds = array<i64: 1, 128>}, {pipeline_mode = #tpu.pipeline_mode<synchronous>, transform_indices = @transform_5, window_bounds = array<i64: 128, 128>}, {pipeline_mode = #tpu.pipeline_mode<synchronous>, transform_indices = @transform_6, window_bounds = array<i64: 1, 128>}, {transform_indices = @transform_7, window_bounds = array<i64: 1, 4, 128, 128>}]} {
    %c0 = arith.constant 0 : index
    %c0_0 = arith.constant 0 : index
    %c0_1 = arith.constant 0 : index
    %c0_2 = arith.constant 0 : index
    %0 = vector.load %arg2[%c0, %c0_0, %c0_1, %c0_2] : memref<1x4x128x8xbf16, #tpu.memory_space<vmem>>, vector<1x4x128x8xbf16>
    %1 = vector.shape_cast %0 : vector<1x4x128x8xbf16> to vector<4x128x8xbf16>
    %2 = vector.shape_cast %1 : vector<4x128x8xbf16> to vector<512x8xbf16>
    %c0_3 = arith.constant 0 : index
    %c0_4 = arith.constant 0 : index
    %3 = vector.load %arg3[%c0_3, %c0_4] : memref<8x128xbf16, #tpu.memory_space<vmem>>, vector<8x128xbf16>
    %cst = arith.constant dense<0.000000e+00> : vector<512x128xf32>
    %4 = tpu.matmul %2, %3, %cst {dimension_numbers = #tpu.dot_dimension_numbers<[1], [0], [0], [1], [0, 0, 1, 1], [], []>} : vector<512x8xbf16>, vector<8x128xbf16>, vector<512x128xf32> -> vector<512x128xf32>
    %c0_5 = arith.constant 0 : index
    %c0_6 = arith.constant 0 : index
    %5 = vector.load %arg4[%c0_5, %c0_6] : memref<1x128xf32, #tpu.memory_space<vmem>>, vector<1x128xf32>
    %6 = vector.broadcast %5 : vector<1x128xf32> to vector<512x128xf32>
    %7 = arith.addf %4, %6 : vector<512x128xf32>
    %cst_7 = arith.constant 0.000000e+00 : f32
    %8 = vector.broadcast %cst_7 : f32 to vector<512x128xf32>
    %9 = arith.maximumf %7, %8 : vector<512x128xf32>
    %10 = vector.shape_cast %9 : vector<512x128xf32> to vector<4x128x128xf32>
    %c0_8 = arith.constant 0 : index
    %c0_9 = arith.constant 0 : index
    %c0_10 = arith.constant 0 : index
    %11 = vector.load %arg10[%c0_8, %c0_9, %c0_10] : memref<4x128x128xf32, #tpu.memory_space<vmem>>, vector<4x128x128xf32>
    tpu.vector_store %arg10[%c0_8, %c0_9, %c0_10], %10 {strides = array<i32>} : memref<4x128x128xf32, #tpu.memory_space<vmem>>, vector<4x128x128xf32>,
    %12 = tpu.iota {dimensions = array<i32: 1>} : vector<1x128xi32>
    %c16_i32 = arith.constant 16 : i32
    %13 = vector.broadcast %c16_i32 : i32 to vector<1x128xi32>
    %14 = arith.cmpi slt, %12, %13 : vector<1x128xi32>
    %c16_i32_11 = arith.constant 16 : i32
    %15 = vector.broadcast %c16_i32_11 : i32 to vector<1x128xi32>
    %16 = arith.cmpi sge, %12, %15 : vector<1x128xi32>
    %c32_i32 = arith.constant 32 : i32
    %17 = vector.broadcast %c32_i32 : i32 to vector<1x128xi32>
    %18 = arith.cmpi slt, %12, %17 : vector<1x128xi32>
    %19 = arith.andi %16, %18 : vector<1x128xi1>
    %cst_12 = arith.constant 0.000000e+00 : f32
    %20 = vector.broadcast %cst_12 : f32 to vector<128x128xf32>
    %c0_13 = arith.constant 0 : index
    %c0_14 = arith.constant 0 : index
    %c0_15 = arith.constant 0 : index
    %21 = vector.load %arg10[%c0_13, %c0_14, %c0_15] : memref<4x128x128xf32, #tpu.memory_space<vmem>>, vector<1x128x128xf32>
    %22 = vector.shape_cast %21 : vector<1x128x128xf32> to vector<128x128xf32>
    %c1 = arith.constant 1 : index
    %c0_16 = arith.constant 0 : index
    %c0_17 = arith.constant 0 : index
    %23 = vector.load %arg10[%c1, %c0_16, %c0_17] : memref<4x128x128xf32, #tpu.memory_space<vmem>>, vector<1x128x128xf32>
    %24 = vector.shape_cast %23 : vector<1x128x128xf32> to vector<128x128xf32>
    %25 = vector.shape_cast %19 : vector<1x128xi1> to vector<1x128xi1>
    %26 = vector.broadcast %25 : vector<1x128xi1> to vector<128x128xi1>
    %27 = arith.select %26, %20, %22 : vector<128x128xi1>, vector<128x128xf32>
    %28 = vector.shape_cast %14 : vector<1x128xi1> to vector<1x128xi1>
    %29 = vector.broadcast %28 : vector<1x128xi1> to vector<128x128xi1>
    %30 = arith.select %29, %24, %27 : vector<128x128xi1>, vector<128x128xf32>
    %c0_18 = arith.constant 0 : index
    %c0_19 = arith.constant 0 : index
    %c0_20 = arith.constant 0 : index
    %31 = vector.load %arg11[%c0_18, %c0_19, %c0_20] : memref<4x128x128xf32, #tpu.memory_space<vmem>>, vector<1x128x128xf32>
    %32 = vector.shape_cast %31 : vector<1x128x128xf32> to vector<128x128xf32>
    %33 = vector.shape_cast %30 : vector<128x128xf32> to vector<1x128x128xf32>
    tpu.vector_store %arg11[%c0_18, %c0_19, %c0_20], %33 {strides = array<i32>} : memref<4x128x128xf32, #tpu.memory_space<vmem>>, vector<1x128x128xf32>,
    %c1_21 = arith.constant 1 : index
    %c0_22 = arith.constant 0 : index
    %c0_23 = arith.constant 0 : index
    %34 = vector.load %arg10[%c1_21, %c0_22, %c0_23] : memref<4x128x128xf32, #tpu.memory_space<vmem>>, vector<1x128x128xf32>
    %35 = vector.shape_cast %34 : vector<1x128x128xf32> to vector<128x128xf32>
    %c2 = arith.constant 2 : index
    %c0_24 = arith.constant 0 : index
    %c0_25 = arith.constant 0 : index
    %36 = vector.load %arg10[%c2, %c0_24, %c0_25] : memref<4x128x128xf32, #tpu.memory_space<vmem>>, vector<1x128x128xf32>
    %37 = vector.shape_cast %36 : vector<1x128x128xf32> to vector<128x128xf32>
    %c0_26 = arith.constant 0 : index
    %c0_27 = arith.constant 0 : index
    %c0_28 = arith.constant 0 : index
    %38 = vector.load %arg10[%c0_26, %c0_27, %c0_28] : memref<4x128x128xf32, #tpu.memory_space<vmem>>, vector<1x128x128xf32>
    %39 = vector.shape_cast %38 : vector<1x128x128xf32> to vector<128x128xf32>
    %40 = vector.shape_cast %19 : vector<1x128xi1> to vector<1x128xi1>
    %41 = vector.broadcast %40 : vector<1x128xi1> to vector<128x128xi1>
    %42 = arith.select %41, %39, %35 : vector<128x128xi1>, vector<128x128xf32>
    %43 = vector.shape_cast %14 : vector<1x128xi1> to vector<1x128xi1>
    %44 = vector.broadcast %43 : vector<1x128xi1> to vector<128x128xi1>
    %45 = arith.select %44, %37, %42 : vector<128x128xi1>, vector<128x128xf32>
    %c1_29 = arith.constant 1 : index
    %c0_30 = arith.constant 0 : index
    %c0_31 = arith.constant 0 : index
    %46 = vector.load %arg11[%c1_29, %c0_30, %c0_31] : memref<4x128x128xf32, #tpu.memory_space<vmem>>, vector<1x128x128xf32>
    %47 = vector.shape_cast %46 : vector<1x128x128xf32> to vector<128x128xf32>
    %48 = vector.shape_cast %45 : vector<128x128xf32> to vector<1x128x128xf32>
    tpu.vector_store %arg11[%c1_29, %c0_30, %c0_31], %48 {strides = array<i32>} : memref<4x128x128xf32, #tpu.memory_space<vmem>>, vector<1x128x128xf32>,
    %c2_32 = arith.constant 2 : index
    %c0_33 = arith.constant 0 : index
    %c0_34 = arith.constant 0 : index
    %49 = vector.load %arg10[%c2_32, %c0_33, %c0_34] : memref<4x128x128xf32, #tpu.memory_space<vmem>>, vector<1x128x128xf32>
    %50 = vector.shape_cast %49 : vector<1x128x128xf32> to vector<128x128xf32>
    %c3 = arith.constant 3 : index
    %c0_35 = arith.constant 0 : index
    %c0_36 = arith.constant 0 : index
    %51 = vector.load %arg10[%c3, %c0_35, %c0_36] : memref<4x128x128xf32, #tpu.memory_space<vmem>>, vector<1x128x128xf32>
    %52 = vector.shape_cast %51 : vector<1x128x128xf32> to vector<128x128xf32>
    %c1_37 = arith.constant 1 : index
    %c0_38 = arith.constant 0 : index
    %c0_39 = arith.constant 0 : index
    %53 = vector.load %arg10[%c1_37, %c0_38, %c0_39] : memref<4x128x128xf32, #tpu.memory_space<vmem>>, vector<1x128x128xf32>
    %54 = vector.shape_cast %53 : vector<1x128x128xf32> to vector<128x128xf32>
    %55 = vector.shape_cast %19 : vector<1x128xi1> to vector<1x128xi1>
    %56 = vector.broadcast %55 : vector<1x128xi1> to vector<128x128xi1>
    %57 = arith.select %56, %54, %50 : vector<128x128xi1>, vector<128x128xf32>
    %58 = vector.shape_cast %14 : vector<1x128xi1> to vector<1x128xi1>
    %59 = vector.broadcast %58 : vector<1x128xi1> to vector<128x128xi1>
    %60 = arith.select %59, %52, %57 : vector<128x128xi1>, vector<128x128xf32>
    %c2_40 = arith.constant 2 : index
    %c0_41 = arith.constant 0 : index
    %c0_42 = arith.constant 0 : index
    %61 = vector.load %arg11[%c2_40, %c0_41, %c0_42] : memref<4x128x128xf32, #tpu.memory_space<vmem>>, vector<1x128x128xf32>
    %62 = vector.shape_cast %61 : vector<1x128x128xf32> to vector<128x128xf32>
    %63 = vector.shape_cast %60 : vector<128x128xf32> to vector<1x128x128xf32>
    tpu.vector_store %arg11[%c2_40, %c0_41, %c0_42], %63 {strides = array<i32>} : memref<4x128x128xf32, #tpu.memory_space<vmem>>, vector<1x128x128xf32>,
    %c3_43 = arith.constant 3 : index
    %c0_44 = arith.constant 0 : index
    %c0_45 = arith.constant 0 : index
    %64 = vector.load %arg10[%c3_43, %c0_44, %c0_45] : memref<4x128x128xf32, #tpu.memory_space<vmem>>, vector<1x128x128xf32>
    %65 = vector.shape_cast %64 : vector<1x128x128xf32> to vector<128x128xf32>
    %c2_46 = arith.constant 2 : index
    %c0_47 = arith.constant 0 : index
    %c0_48 = arith.constant 0 : index
    %66 = vector.load %arg10[%c2_46, %c0_47, %c0_48] : memref<4x128x128xf32, #tpu.memory_space<vmem>>, vector<1x128x128xf32>
    %67 = vector.shape_cast %66 : vector<1x128x128xf32> to vector<128x128xf32>
    %68 = vector.shape_cast %19 : vector<1x128xi1> to vector<1x128xi1>
    %69 = vector.broadcast %68 : vector<1x128xi1> to vector<128x128xi1>
    %70 = arith.select %69, %67, %65 : vector<128x128xi1>, vector<128x128xf32>
    %71 = vector.shape_cast %14 : vector<1x128xi1> to vector<1x128xi1>
    %72 = vector.broadcast %71 : vector<1x128xi1> to vector<128x128xi1>
    %73 = arith.select %72, %20, %70 : vector<128x128xi1>, vector<128x128xf32>
    %c3_49 = arith.constant 3 : index
    %c0_50 = arith.constant 0 : index
    %c0_51 = arith.constant 0 : index
    %74 = vector.load %arg11[%c3_49, %c0_50, %c0_51] : memref<4x128x128xf32, #tpu.memory_space<vmem>>, vector<1x128x128xf32>
    %75 = vector.shape_cast %74 : vector<1x128x128xf32> to vector<128x128xf32>
    %76 = vector.shape_cast %73 : vector<128x128xf32> to vector<1x128x128xf32>
    tpu.vector_store %arg11[%c3_49, %c0_50, %c0_51], %76 {strides = array<i32>} : memref<4x128x128xf32, #tpu.memory_space<vmem>>, vector<1x128x128xf32>,
    %c0_52 = arith.constant 0 : index
    %c0_53 = arith.constant 0 : index
    %c0_54 = arith.constant 0 : index
    %77 = vector.load %arg11[%c0_52, %c0_53, %c0_54] : memref<4x128x128xf32, #tpu.memory_space<vmem>>, vector<4x128x128xf32>
    %78 = vector.shape_cast %77 : vector<4x128x128xf32> to vector<512x128xf32>
    %79 = arith.truncf %78 : vector<512x128xf32> to vector<512x128xbf16>
    %c0_55 = arith.constant 0 : index
    %c0_56 = arith.constant 0 : index
    %80 = vector.load %arg5[%c0_55, %c0_56] : memref<128x128xbf16, #tpu.memory_space<vmem>>, vector<128x128xbf16>
    %cst_57 = arith.constant dense<0.000000e+00> : vector<512x128xf32>
    %81 = tpu.matmul %79, %80, %cst_57 {dimension_numbers = #tpu.dot_dimension_numbers<[1], [0], [0], [1], [0, 0, 1, 1], [], []>} : vector<512x128xbf16>, vector<128x128xbf16>, vector<512x128xf32> -> vector<512x128xf32>
    %c0_58 = arith.constant 0 : index
    %c0_59 = arith.constant 0 : index
    %82 = vector.load %arg6[%c0_58, %c0_59] : memref<1x128xf32, #tpu.memory_space<vmem>>, vector<1x128xf32>
    %83 = vector.broadcast %82 : vector<1x128xf32> to vector<512x128xf32>
    %84 = arith.addf %81, %83 : vector<512x128xf32>
    %cst_60 = arith.constant 0.000000e+00 : f32
    %85 = vector.broadcast %cst_60 : f32 to vector<512x128xf32>
    %86 = arith.maximumf %84, %85 : vector<512x128xf32>
    %87 = arith.truncf %86 : vector<512x128xf32> to vector<512x128xbf16>
    %c0_61 = arith.constant 0 : index
    %c0_62 = arith.constant 0 : index
    %88 = vector.load %arg7[%c0_61, %c0_62] : memref<128x128xbf16, #tpu.memory_space<vmem>>, vector<128x128xbf16>
    %cst_63 = arith.constant dense<0.000000e+00> : vector<512x128xf32>
    %89 = tpu.matmul %87, %88, %cst_63 {dimension_numbers = #tpu.dot_dimension_numbers<[1], [0], [0], [1], [0, 0, 1, 1], [], []>} : vector<512x128xbf16>, vector<128x128xbf16>, vector<512x128xf32> -> vector<512x128xf32>
    %c0_64 = arith.constant 0 : index
    %c0_65 = arith.constant 0 : index
    %90 = vector.load %arg8[%c0_64, %c0_65] : memref<1x128xf32, #tpu.memory_space<vmem>>, vector<1x128xf32>
    %91 = vector.broadcast %90 : vector<1x128xf32> to vector<512x128xf32>
    %92 = arith.addf %89, %91 : vector<512x128xf32>
    %c0_66 = arith.constant 0 : index
    %c0_67 = arith.constant 0 : index
    %c0_68 = arith.constant 0 : index
    %93 = vector.load %arg10[%c0_66, %c0_67, %c0_68] : memref<4x128x128xf32, #tpu.memory_space<vmem>>, vector<4x128x128xf32>
    %94 = vector.shape_cast %93 : vector<4x128x128xf32> to vector<512x128xf32>
    %95 = arith.addf %94, %92 : vector<512x128xf32>
    %cst_69 = arith.constant 0.000000e+00 : f32
    %96 = vector.broadcast %cst_69 : f32 to vector<512x128xf32>
    %97 = arith.maximumf %95, %96 : vector<512x128xf32>
    %98 = vector.shape_cast %97 : vector<512x128xf32> to vector<4x128x128xf32>
    %99 = arith.truncf %98 : vector<4x128x128xf32> to vector<4x128x128xbf16>
    %c0_70 = arith.constant 0 : index
    %c0_71 = arith.constant 0 : index
    %c0_72 = arith.constant 0 : index
    %c0_73 = arith.constant 0 : index
    %100 = vector.load %arg9[%c0_70, %c0_71, %c0_72, %c0_73] : memref<1x4x128x128xbf16, #tpu.memory_space<vmem>>, vector<1x4x128x128xbf16>
    %101 = vector.shape_cast %100 : vector<1x4x128x128xbf16> to vector<4x128x128xbf16>
    %102 = vector.shape_cast %99 : vector<4x128x128xbf16> to vector<1x4x128x128xbf16>
    tpu.vector_store %arg9[%c0_70, %c0_71, %c0_72, %c0_73], %102 {strides = array<i32>} : memref<1x4x128x128xbf16, #tpu.memory_space<vmem>>, vector<1x4x128x128xbf16>,
    return
  }
  func.func @transform_0(%arg0: i32, %arg1: i32) -> (i32, i32, i32, i32) {
    %c0_i32 = arith.constant 0 : i32
    %c0_i32_0 = arith.constant 0 : i32
    %c0_i32_1 = arith.constant 0 : i32
    return %arg0, %c0_i32, %arg1, %c0_i32_0 : i32, i32, i32, i32
  }
  func.func @transform_1(%arg0: i32, %arg1: i32) -> (i32, i32) {
    %c0_i32 = arith.constant 0 : i32
    %c0_i32_0 = arith.constant 0 : i32
    %c0_i32_1 = arith.constant 0 : i32
    return %c0_i32, %c0_i32_0 : i32, i32
  }
  func.func @transform_2(%arg0: i32, %arg1: i32) -> (i32, i32) {
    %c0_i32 = arith.constant 0 : i32
    %c0_i32_0 = arith.constant 0 : i32
    %c0_i32_1 = arith.constant 0 : i32
    return %c0_i32, %c0_i32_0 : i32, i32
  }
  func.func @transform_3(%arg0: i32, %arg1: i32) -> (i32, i32) {
    %c0_i32 = arith.constant 0 : i32
    %c0_i32_0 = arith.constant 0 : i32
    %c0_i32_1 = arith.constant 0 : i32
    return %c0_i32, %c0_i32_0 : i32, i32
  }
  func.func @transform_4(%arg0: i32, %arg1: i32) -> (i32, i32) {
    %c0_i32 = arith.constant 0 : i32
    %c0_i32_0 = arith.constant 0 : i32
    %c0_i32_1 = arith.constant 0 : i32
    return %c0_i32, %c0_i32_0 : i32, i32
  }
  func.func @transform_5(%arg0: i32, %arg1: i32) -> (i32, i32) {
    %c0_i32 = arith.constant 0 : i32
    %c0_i32_0 = arith.constant 0 : i32
    %c0_i32_1 = arith.constant 0 : i32
    return %c0_i32, %c0_i32_0 : i32, i32
  }
  func.func @transform_6(%arg0: i32, %arg1: i32) -> (i32, i32) {
    %c0_i32 = arith.constant 0 : i32
    %c0_i32_0 = arith.constant 0 : i32
    %c0_i32_1 = arith.constant 0 : i32
    return %c0_i32, %c0_i32_0 : i32, i32
  }
  func.func @transform_7(%arg0: i32, %arg1: i32) -> (i32, i32, i32, i32) {
    %c0_i32 = arith.constant 0 : i32
    %c0_i32_0 = arith.constant 0 : i32
    %c0_i32_1 = arith.constant 0 : i32
    return %arg0, %c0_i32, %arg1, %c0_i32_0 : i32, i32, i32, i32
  }
}

</mosaic_0001>

<llo_original>
// kernel: tpu_custom_call.1
$region0: #{tpu_custom_call.1}
  #allocation0 [shape = 'u32[]', space=smem, size = 0x4, offset = 0x4, fixed_abs, tag = 'smem constant byte address 0x4 - core index']
  #allocation1 [shape = 'u32[144,128]{1,0:T(1,128)}', space=vmem, size = 0x12000, scoped, tag = 'internal scratch']
  #allocation2 [shape = 'f32[4,128,128]{2,1,0:T(8,128)}', space=vmem, size = 0x40000, scoped, tag = 'scratch operand']
  #allocation3 [shape = 'f32[4,128,128]{2,1,0:T(8,128)}', space=vmem, size = 0x40000, scoped, tag = 'scratch operand']
  #allocation7 [shape = 's32[]', space=sflag, size = 0x4, offset = 0, fixed_abs, tag = 'sflag constant byte address 0x0 - dummy sync flag']
  %s0 = inlined_call_operand.vmem [shape: bf16[2,4,256,8], index: 0, kind: input, shape index: {}]
  %s1 = inlined_call_operand.vmem [shape: bf16[8,128], index: 1, kind: input, shape index: {}]
  %s2 = inlined_call_operand.vmem [shape: f32[1,128], index: 2, kind: input, shape index: {}]
  %s3 = inlined_call_operand.vmem [shape: bf16[128,128], index: 3, kind: input, shape index: {}]
  %s4 = inlined_call_operand.vmem [shape: f32[1,128], index: 4, kind: input, shape index: {}]
  %s5 = inlined_call_operand.vmem [shape: bf16[128,128], index: 5, kind: input, shape index: {}]
  %s6 = inlined_call_operand.vmem [shape: f32[1,128], index: 6, kind: input, shape index: {}]
  %s7 = inlined_call_operand.hbm [shape: bf16[2,4,256,128], index: 7, kind: output, shape index: {}]
  %s8 = sld [smem:[#allocation0]]
  $region102: #{tpu_custom_call.1} parent=0
    _
  %s10 = ssub.s32 1, %s8
  %s11 = scalar_select 0, %s10, %s8
  $region1: #{tpu_custom_call.1} parent=0
    #allocation4 [shape = 'u8[262144]{0}', space=vmem, size = 0x40000, scoped, tag = 'input window, operand 0']
    #allocation5 [shape = 'u8[262144]{0}', space=vmem, size = 0x40000, scoped, tag = 'output window, operand 0']
    #allocation6 [shape = 's32[2]{0}', space=sflag, size = 0x8, scoped, tag = 'scoped memory for tpu_custom_call.1']
    %12 = vsyncpa [#allocation6], 0
    %s13 = scalar_lea.sflag [#allocation6], 1
    %14 = vsyncpa %s13, 0
    loop: start=0, step=1, limit=6
    $region2: #{tpu_custom_call.1} parent=1 // loop_pre_header
      _
    $region3: #{tpu_custom_call.1} parent=1 // loop_header
      %s16 = sphi 0, %s20
      %p17 = scmp.ge.s32.totalorder %s16, 6
      %s23 = sphi 0, %s35
      %s24 = sphi 0, %s31
      %s25 = sphi 0, %s23
      %s26 = sphi 0, %s24
      %s27 = sphi 0, %s25
      %s28 = sphi 0, %s26
      %s40 = sphi 0, %s42
      %s43 = sphi 0, %s40
      %s44 = sphi 0, %s43
      %s60 = sphi 0, %s44
      %s64 = sphi 0, %s64
      %s66 = sphi 0, %s64
      %s67 = sphi 0, %s66
      %s81 = sphi 0, %s67
      %s85 = sphi 0, %s85
      %s87 = sphi 0, %s85
      %s88 = sphi 0, %s87
      %s102 = sphi 0, %s88
      %s106 = sphi 0, %s106
      %s108 = sphi 0, %s106
      %s109 = sphi 0, %s108
      %s123 = sphi 0, %s109
      %s127 = sphi 0, %s127
      %s129 = sphi 0, %s127
      %s130 = sphi 0, %s129
      %s144 = sphi 0, %s130
      %s148 = sphi 0, %s148
      %s150 = sphi 0, %s148
      %s151 = sphi 0, %s150
      %s165 = sphi 0, %s151
      %s169 = sphi 0, %s169
      %s171 = sphi 0, %s169
      %s172 = sphi 0, %s171
      %s186 = sphi 0, %s172
      %s194 = sphi 0, %s196
      %s197 = sphi 0, %s194
      %s198 = sphi 0, %s197
      %s214 = sphi 0, %s198
    $region4: #{tpu_custom_call.1} parent=1 // loop_header_branch
      %19 = sbr.rel (%p17) target = $region8
    $region5: #{tpu_custom_call.1} parent=1 // loop_body
      %s21 = ssub.s32 %s16, 1
      %s22 = ssub.s32 %s16, 2
      %s29 = sadd.s32 1, %s24
      %p30 = scmp.ge.s32.totalorder %s29, 2
      %s31 = scalar_select %p30, 0, %s29
      %s32 = sadd.s32 1, %s23
      %s33 = scalar_select %p30, %s32, %s23
      %p34 = scmp.ge.s32.totalorder %s33, 2
      %s35 = scalar_select %p34, 0, %s33
      %s36 = ssub.s32 %s23, %s35
      %s37 = ssub.s32 %s24, %s31
      %s38 = sor.u32 %s36, %s37
      %p39 = scmp.eq.s32.totalorder %s38, 0
      %s41 = sadd.s32 %s40, 1
      %s42 = scalar_select %p39, %s40, %s41
      %p45 = pneg %p39
      %p46 = scmp.eq.s32.totalorder %s16, 3
      %p47 = por %p45, %p46
      %p48 = scmp.ne.s32.totalorder %s40, %s43
      %p49 = scmp.eq.s32.totalorder %s16, 0
      %p50 = por %p48, %p49
      %p51 = scmp.ne.s32.totalorder %s40, %s43
      %p52 = scmp.eq.s32.totalorder %s21, 3
      %p53 = por %p51, %p52
      %p54 = scmp.ne.s32.totalorder %s43, %s44
      %p55 = scmp.eq.s32.totalorder %s21, 0
      %p56 = por %p54, %p55
      %p57 = scmp.ne.s32.totalorder %s43, %s44
      %p58 = scmp.eq.s32.totalorder %s22, 3
      %p59 = por %p57, %p58
      %p61 = scmp.ne.s32.totalorder %s44, %s60
      %p62 = scmp.eq.s32.totalorder %s22, 0
      %p63 = por %p61, %p62
      %s65 = sadd.s32 %s64, 1
      %p68 = scmp.eq.s32.totalorder %s16, 3
      %p69 = scmp.ne.s32.totalorder %s64, %s66
      %p70 = scmp.eq.s32.totalorder %s16, 0
      %p71 = por %p69, %p70
      %p72 = scmp.ne.s32.totalorder %s64, %s66
      %p73 = scmp.eq.s32.totalorder %s21, 3
      %p74 = por %p72, %p73
      %p75 = scmp.ne.s32.totalorder %s66, %s67
      %p76 = scmp.eq.s32.totalorder %s21, 0
      %p77 = por %p75, %p76
      %p78 = scmp.ne.s32.totalorder %s66, %s67
      %p79 = scmp.eq.s32.totalorder %s22, 3
      %p80 = por %p78, %p79
      %p82 = scmp.ne.s32.totalorder %s67, %s81
      %p83 = scmp.eq.s32.totalorder %s22, 0
      %p84 = por %p82, %p83
      %s86 = sadd.s32 %s85, 1
      %p89 = scmp.eq.s32.totalorder %s16, 3
      %p90 = scmp.ne.s32.totalorder %s85, %s87
      %p91 = scmp.eq.s32.totalorder %s16, 0
      %p92 = por %p90, %p91
      %p93 = scmp.ne.s32.totalorder %s85, %s87
      %p94 = scmp.eq.s32.totalorder %s21, 3
      %p95 = por %p93, %p94
      %p96 = scmp.ne.s32.totalorder %s87, %s88
      %p97 = scmp.eq.s32.totalorder %s21, 0
      %p98 = por %p96, %p97
      %p99 = scmp.ne.s32.totalorder %s87, %s88
      %p100 = scmp.eq.s32.totalorder %s22, 3
      %p101 = por %p99, %p100
      %p103 = scmp.ne.s32.totalorder %s88, %s102
      %p104 = scmp.eq.s32.totalorder %s22, 0
      %p105 = por %p103, %p104
      %s107 = sadd.s32 %s106, 1
      %p110 = scmp.eq.s32.totalorder %s16, 3
      %p111 = scmp.ne.s32.totalorder %s106, %s108
      %p112 = scmp.eq.s32.totalorder %s16, 0
      %p113 = por %p111, %p112
      %p114 = scmp.ne.s32.totalorder %s106, %s108
      %p115 = scmp.eq.s32.totalorder %s21, 3
      %p116 = por %p114, %p115
      %p117 = scmp.ne.s32.totalorder %s108, %s109
      %p118 = scmp.eq.s32.totalorder %s21, 0
      %p119 = por %p117, %p118
      %p120 = scmp.ne.s32.totalorder %s108, %s109
      %p121 = scmp.eq.s32.totalorder %s22, 3
      %p122 = por %p120, %p121
      %p124 = scmp.ne.s32.totalorder %s109, %s123
      %p125 = scmp.eq.s32.totalorder %s22, 0
      %p126 = por %p124, %p125
      %s128 = sadd.s32 %s127, 1
      %p131 = scmp.eq.s32.totalorder %s16, 3
      %p132 = scmp.ne.s32.totalorder %s127, %s129
      %p133 = scmp.eq.s32.totalorder %s16, 0
      %p134 = por %p132, %p133
      %p135 = scmp.ne.s32.totalorder %s127, %s129
      %p136 = scmp.eq.s32.totalorder %s21, 3
      %p137 = por %p135, %p136
      %p138 = scmp.ne.s32.totalorder %s129, %s130
      %p139 = scmp.eq.s32.totalorder %s21, 0
      %p140 = por %p138, %p139
      %p141 = scmp.ne.s32.totalorder %s129, %s130
      %p142 = scmp.eq.s32.totalorder %s22, 3
      %p143 = por %p141, %p142
      %p145 = scmp.ne.s32.totalorder %s130, %s144
      %p146 = scmp.eq.s32.totalorder %s22, 0
      %p147 = por %p145, %p146
      %s149 = sadd.s32 %s148, 1
      %p152 = scmp.eq.s32.totalorder %s16, 3
      %p153 = scmp.ne.s32.totalorder %s148, %s150
      %p154 = scmp.eq.s32.totalorder %s16, 0
      %p155 = por %p153, %p154
      %p156 = scmp.ne.s32.totalorder %s148, %s150
      %p157 = scmp.eq.s32.totalorder %s21, 3
      %p158 = por %p156, %p157
      %p159 = scmp.ne.s32.totalorder %s150, %s151
      %p160 = scmp.eq.s32.totalorder %s21, 0
      %p161 = por %p159, %p160
      %p162 = scmp.ne.s32.totalorder %s150, %s151
      %p163 = scmp.eq.s32.totalorder %s22, 3
      %p164 = por %p162, %p163
      %p166 = scmp.ne.s32.totalorder %s151, %s165
      %p167 = scmp.eq.s32.totalorder %s22, 0
      %p168 = por %p166, %p167
      %s170 = sadd.s32 %s169, 1
      %p173 = scmp.eq.s32.totalorder %s16, 3
      %p174 = scmp.ne.s32.totalorder %s169, %s171
      %p175 = scmp.eq.s32.totalorder %s16, 0
      %p176 = por %p174, %p175
      %p177 = scmp.ne.s32.totalorder %s169, %s171
      %p178 = scmp.eq.s32.totalorder %s21, 3
      %p179 = por %p177, %p178
      %p180 = scmp.ne.s32.totalorder %s171, %s172
      %p181 = scmp.eq.s32.totalorder %s21, 0
      %p182 = por %p180, %p181
      %p183 = scmp.ne.s32.totalorder %s171, %s172
      %p184 = scmp.eq.s32.totalorder %s22, 3
      %p185 = por %p183, %p184
      %p187 = scmp.ne.s32.totalorder %s172, %s186
      %p188 = scmp.eq.s32.totalorder %s22, 0
      %p189 = por %p187, %p188
      %s190 = ssub.s32 %s23, %s35
      %s191 = ssub.s32 %s24, %s31
      %s192 = sor.u32 %s190, %s191
      %p193 = scmp.eq.s32.totalorder %s192, 0
      %s195 = sadd.s32 %s194, 1
      %s196 = scalar_select %p193, %s194, %s195
      %p199 = pneg %p193
      %p200 = scmp.eq.s32.totalorder %s16, 3
      %p201 = por %p199, %p200
      %p202 = scmp.ne.s32.totalorder %s194, %s197
      %p203 = scmp.eq.s32.totalorder %s16, 0
      %p204 = por %p202, %p203
      %p205 = scmp.ne.s32.totalorder %s194, %s197
      %p206 = scmp.eq.s32.totalorder %s21, 3
      %p207 = por %p205, %p206
      %p208 = scmp.ne.s32.totalorder %s197, %s198
      %p209 = scmp.eq.s32.totalorder %s21, 0
      %p210 = por %p208, %p209
      %p211 = scmp.ne.s32.totalorder %s197, %s198
      %p212 = scmp.eq.s32.totalorder %s22, 3
      %p213 = por %p211, %p212
      %p215 = scmp.ne.s32.totalorder %s198, %s214
      %p216 = scmp.eq.s32.totalorder %s22, 0
      %p217 = por %p215, %p216
      %p218 = scmp.le.s32.totalorder 1, %s16
      %p219 = scmp.lt.s32.totalorder %s16, 5
      %p220 = pnand %p218, %p219
      %p221 = pneg %p220
      // Predicated region
      $region9: #{tpu_custom_call.1} parent=5 // pred_check
        _
      $region10: #{tpu_custom_call.1} parent=5 // pred_check_branch
        %223 = sbr.rel (%p220) target = $region12
      $region11: #{tpu_custom_call.1} parent=5 // pred_region
        %s224 = ssub.s32 %s16, 1
        // Predicated region
        $region13: #{tpu_custom_call.1} parent=11 // pred_check
          %p225 = pneg %p77
        $region14: #{tpu_custom_call.1} parent=11 // pred_check_branch
          %227 = sbr.rel (%p225) target = $region16
        $region15: #{tpu_custom_call.1} parent=11 // pred_region
          _
        $region16: #{tpu_custom_call.1} parent=11 // pred_fallthru
          _
        // Predicated region
        $region17: #{tpu_custom_call.1} parent=11 // pred_check
          %p228 = pneg %p98
        $region18: #{tpu_custom_call.1} parent=11 // pred_check_branch
          %230 = sbr.rel (%p228) target = $region20
        $region19: #{tpu_custom_call.1} parent=11 // pred_region
          _
        $region20: #{tpu_custom_call.1} parent=11 // pred_fallthru
          _
        // Predicated region
        $region21: #{tpu_custom_call.1} parent=11 // pred_check
          %p231 = pneg %p119
        $region22: #{tpu_custom_call.1} parent=11 // pred_check_branch
          %233 = sbr.rel (%p231) target = $region24
        $region23: #{tpu_custom_call.1} parent=11 // pred_region
          _
        $region24: #{tpu_custom_call.1} parent=11 // pred_fallthru
          _
        // Predicated region
        $region25: #{tpu_custom_call.1} parent=11 // pred_check
          %p234 = pneg %p140
        $region26: #{tpu_custom_call.1} parent=11 // pred_check_branch
          %236 = sbr.rel (%p234) target = $region28
        $region27: #{tpu_custom_call.1} parent=11 // pred_region
          _
        $region28: #{tpu_custom_call.1} parent=11 // pred_fallthru
          _
        // Predicated region
        $region29: #{tpu_custom_call.1} parent=11 // pred_check
          %p237 = pneg %p161
        $region30: #{tpu_custom_call.1} parent=11 // pred_check_branch
          %239 = sbr.rel (%p237) target = $region32
        $region31: #{tpu_custom_call.1} parent=11 // pred_region
          _
        $region32: #{tpu_custom_call.1} parent=11 // pred_fallthru
          _
        // Predicated region
        $region33: #{tpu_custom_call.1} parent=11 // pred_check
          %p240 = pneg %p182
        $region34: #{tpu_custom_call.1} parent=11 // pred_check_branch
          %242 = sbr.rel (%p240) target = $region36
        $region35: #{tpu_custom_call.1} parent=11 // pred_region
          _
        $region36: #{tpu_custom_call.1} parent=11 // pred_fallthru
          _
      $region12: #{tpu_custom_call.1} parent=5 // pred_fallthru
        _
      %p243 = scmp.lt.s32.totalorder %s16, 4
      // Predicated region
      $region37: #{tpu_custom_call.1} parent=5 // pred_check
        %p244 = pneg %p243
      $region38: #{tpu_custom_call.1} parent=5 // pred_check_branch
        %246 = sbr.rel (%p244) target = $region40
      $region39: #{tpu_custom_call.1} parent=5 // pred_region
        // Predicated region
        $region41: #{tpu_custom_call.1} parent=39 // pred_check
          %p247 = pneg %p50
        $region42: #{tpu_custom_call.1} parent=39 // pred_check_branch
          %249 = sbr.rel (%p247) target = $region44
        $region43: #{tpu_custom_call.1} parent=39 // pred_region
          %s250 = sand.u32 %s40, 1
          %s251 = sand.u32 %s40, 1
          %s252 = smul.addr %s251, 256
          %s253 = scalar_lea.vmem [#allocation4], %s252
          %s254 = smul.u32 16, %s24
          %s255 = smul.addr %s23, 128
          %s256 = sadd.s32 %s254, %s255
          %s257 = smul.addr %s256, 4
          %s258 = scalar_lea.vmem %s0, %s257
          // Predicated region
          $region45: #{tpu_custom_call.1} parent=43 // pred_check
            _
          $region46: #{tpu_custom_call.1} parent=43 // pred_check_branch
            %260 = sbr.rel (0) target = $region48
          $region47: #{tpu_custom_call.1} parent=43 // pred_region
            // Predicated region
            $region49: #{tpu_custom_call.1} parent=47 // pred_check
              _
            $region50: #{tpu_custom_call.1} parent=47 // pred_check_branch
              %262 = sbr.rel target = $region52
            $region51: #{tpu_custom_call.1} parent=47 // pred_region
              // Predicated region
              $region64: #{tpu_custom_call.1} parent=51 // pred_check
                _
              $region65: #{tpu_custom_call.1} parent=51 // pred_check_branch
                %403 = sbr.rel (0) target = $region67
              $region66: #{tpu_custom_call.1} parent=51 // pred_region
                loop: start=0, step=1, limit=1
                $region68: #{tpu_custom_call.1} parent=66 // loop_pre_header
                  _
                $region69: #{tpu_custom_call.1} parent=66 // loop_header
                  %s405 = sphi 0, %s409
                  %p406 = scmp.ge.s32.totalorder %s405, 1
                  %s410 = sphi %s258, %s258
                  %s411 = sphi %s253, %s253
                $region70: #{tpu_custom_call.1} parent=66 // loop_header_branch
                  %408 = sbr.rel (%p406) target = $region74
                $region71: #{tpu_custom_call.1} parent=66 // loop_body
                  _
                $region72: #{tpu_custom_call.1} parent=66 // loop_footer
                  %s409 = sadd.s32 1, %s405
                $region73: #{tpu_custom_call.1} parent=66 // loop_footer_branch
                  %404 = sbr.rel target = $region69
                $region74: #{tpu_custom_call.1} parent=66 // loop_exit
                  _
                loop: start=0, step=1, limit=1
                $region75: #{tpu_custom_call.1} parent=66 // loop_pre_header
                  _
                $region76: #{tpu_custom_call.1} parent=66 // loop_header
                  %s414 = sphi 0, %s418
                  %p415 = scmp.ge.s32.totalorder %s414, 1
                  %s419 = sphi %s258, %s258
                  %s420 = sphi %s253, %s253
                $region77: #{tpu_custom_call.1} parent=66 // loop_header_branch
                  %417 = sbr.rel (%p415) target = $region81
                $region78: #{tpu_custom_call.1} parent=66 // loop_body
                  %v421 = vld [vmem:[%s419] sm:$0xf]
                  %422 = vst [vmem:[%s420] sm:$0xf] %v421
                  %v423 = vld [vmem:[%s419 + $0x4] sm:$0xf]
                  %424 = vst [vmem:[%s420 + $0x4] sm:$0xf] %v423
                  %v425 = vld [vmem:[%s419 + $0x8] sm:$0xf]
                  %426 = vst [vmem:[%s420 + $0x8] sm:$0xf] %v425
                  %v427 = vld [vmem:[%s419 + $0xc] sm:$0xf]
                  %428 = vst [vmem:[%s420 + $0xc] sm:$0xf] %v427
                  %v429 = vld [vmem:[%s419 + $0x10] sm:$0xf]
                  %430 = vst [vmem:[%s420 + $0x10] sm:$0xf] %v429
                  %v431 = vld [vmem:[%s419 + $0x14] sm:$0xf]
                  %432 = vst [vmem:[%s420 + $0x14] sm:$0xf] %v431
                  %v433 = vld [vmem:[%s419 + $0x18] sm:$0xf]
                  %434 = vst [vmem:[%s420 + $0x18] sm:$0xf] %v433
                  %v435 = vld [vmem:[%s419 + $0x1c] sm:$0xf]
                  %436 = vst [vmem:[%s420 + $0x1c] sm:$0xf] %v435
                  %v437 = vld [vmem:[%s419 + $0x20] sm:$0xf]
                  %438 = vst [vmem:[%s420 + $0x20] sm:$0xf] %v437
                  %v439 = vld [vmem:[%s419 + $0x24] sm:$0xf]
                  %440 = vst [vmem:[%s420 + $0x24] sm:$0xf] %v439
                  %v441 = vld [vmem:[%s419 + $0x28] sm:$0xf]
                  %442 = vst [vmem:[%s420 + $0x28] sm:$0xf] %v441
                  %v443 = vld [vmem:[%s419 + $0x2c] sm:$0xf]
                  %444 = vst [vmem:[%s420 + $0x2c] sm:$0xf] %v443
                  %v445 = vld [vmem:[%s419 + $0x30] sm:$0xf]
                  %446 = vst [vmem:[%s420 + $0x30] sm:$0xf] %v445
                  %v447 = vld [vmem:[%s419 + $0x34] sm:$0xf]
                  %448 = vst [vmem:[%s420 + $0x34] sm:$0xf] %v447
                  %v449 = vld [vmem:[%s419 + $0x38] sm:$0xf]
                  %450 = vst [vmem:[%s420 + $0x38] sm:$0xf] %v449
                  %v451 = vld [vmem:[%s419 + $0x3c] sm:$0xf]
                  %452 = vst [vmem:[%s420 + $0x3c] sm:$0xf] %v451
                  %v453 = vld [vmem:[%s419 + $0x80] sm:$0xf]
                  %454 = vst [vmem:[%s420 + $0x40] sm:$0xf] %v453
                  %v455 = vld [vmem:[%s419 + $0x84] sm:$0xf]
                  %456 = vst [vmem:[%s420 + $0x44] sm:$0xf] %v455
                  %v457 = vld [vmem:[%s419 + $0x88] sm:$0xf]
                  %458 = vst [vmem:[%s420 + $0x48] sm:$0xf] %v457
                  %v459 = vld [vmem:[%s419 + $0x8c] sm:$0xf]
                  %460 = vst [vmem:[%s420 + $0x4c] sm:$0xf] %v459
                  %v461 = vld [vmem:[%s419 + $0x90] sm:$0xf]
                  %462 = vst [vmem:[%s420 + $0x50] sm:$0xf] %v461
                  %v463 = vld [vmem:[%s419 + $0x94] sm:$0xf]
                  %464 = vst [vmem:[%s420 + $0x54] sm:$0xf] %v463
                  %v465 = vld [vmem:[%s419 + $0x98] sm:$0xf]
                  %466 = vst [vmem:[%s420 + $0x58] sm:$0xf] %v465
                  %v467 = vld [vmem:[%s419 + $0x9c] sm:$0xf]
                  %468 = vst [vmem:[%s420 + $0x5c] sm:$0xf] %v467
                  %v469 = vld [vmem:[%s419 + $0xa0] sm:$0xf]
                  %470 = vst [vmem:[%s420 + $0x60] sm:$0xf] %v469
                  %v471 = vld [vmem:[%s419 + $0xa4] sm:$0xf]
                  %472 = vst [vmem:[%s420 + $0x64] sm:$0xf] %v471
                  %v473 = vld [vmem:[%s419 + $0xa8] sm:$0xf]
                  %474 = vst [vmem:[%s420 + $0x68] sm:$0xf] %v473
                  %v475 = vld [vmem:[%s419 + $0xac] sm:$0xf]
                  %476 = vst [vmem:[%s420 + $0x6c] sm:$0xf] %v475
                  %v477 = vld [vmem:[%s419 + $0xb0] sm:$0xf]
                  %478 = vst [vmem:[%s420 + $0x70] sm:$0xf] %v477
                  %v479 = vld [vmem:[%s419 + $0xb4] sm:$0xf]
                  %480 = vst [vmem:[%s420 + $0x74] sm:$0xf] %v479
                  %v481 = vld [vmem:[%s419 + $0xb8] sm:$0xf]
                  %482 = vst [vmem:[%s420 + $0x78] sm:$0xf] %v481
                  %v483 = vld [vmem:[%s419 + $0xbc] sm:$0xf]
                  %484 = vst [vmem:[%s420 + $0x7c] sm:$0xf] %v483
                  %v485 = vld [vmem:[%s419 + $0x100] sm:$0xf]
                  %486 = vst [vmem:[%s420 + $0x80] sm:$0xf] %v485
                  %v487 = vld [vmem:[%s419 + $0x104] sm:$0xf]
                  %488 = vst [vmem:[%s420 + $0x84] sm:$0xf] %v487
                  %v489 = vld [vmem:[%s419 + $0x108] sm:$0xf]
                  %490 = vst [vmem:[%s420 + $0x88] sm:$0xf] %v489
                  %v491 = vld [vmem:[%s419 + $0x10c] sm:$0xf]
                  %492 = vst [vmem:[%s420 + $0x8c] sm:$0xf] %v491
                  %v493 = vld [vmem:[%s419 + $0x110] sm:$0xf]
                  %494 = vst [vmem:[%s420 + $0x90] sm:$0xf] %v493
                  %v495 = vld [vmem:[%s419 + $0x114] sm:$0xf]
                  %496 = vst [vmem:[%s420 + $0x94] sm:$0xf] %v495
                  %v497 = vld [vmem:[%s419 + $0x118] sm:$0xf]
                  %498 = vst [vmem:[%s420 + $0x98] sm:$0xf] %v497
                  %v499 = vld [vmem:[%s419 + $0x11c] sm:$0xf]
                  %500 = vst [vmem:[%s420 + $0x9c] sm:$0xf] %v499
                  %v501 = vld [vmem:[%s419 + $0x120] sm:$0xf]
                  %502 = vst [vmem:[%s420 + $0xa0] sm:$0xf] %v501
                  %v503 = vld [vmem:[%s419 + $0x124] sm:$0xf]
                  %504 = vst [vmem:[%s420 + $0xa4] sm:$0xf] %v503
                  %v505 = vld [vmem:[%s419 + $0x128] sm:$0xf]
                  %506 = vst [vmem:[%s420 + $0xa8] sm:$0xf] %v505
                  %v507 = vld [vmem:[%s419 + $0x12c] sm:$0xf]
                  %508 = vst [vmem:[%s420 + $0xac] sm:$0xf] %v507
                  %v509 = vld [vmem:[%s419 + $0x130] sm:$0xf]
                  %510 = vst [vmem:[%s420 + $0xb0] sm:$0xf] %v509
                  %v511 = vld [vmem:[%s419 + $0x134] sm:$0xf]
                  %512 = vst [vmem:[%s420 + $0xb4] sm:$0xf] %v511
                  %v513 = vld [vmem:[%s419 + $0x138] sm:$0xf]
                  %514 = vst [vmem:[%s420 + $0xb8] sm:$0xf] %v513
                  %v515 = vld [vmem:[%s419 + $0x13c] sm:$0xf]
                  %516 = vst [vmem:[%s420 + $0xbc] sm:$0xf] %v515
                  %v517 = vld [vmem:[%s419 + $0x180] sm:$0xf]
                  %518 = vst [vmem:[%s420 + $0xc0] sm:$0xf] %v517
                  %v519 = vld [vmem:[%s419 + $0x184] sm:$0xf]
                  %520 = vst [vmem:[%s420 + $0xc4] sm:$0xf] %v519
                  %v521 = vld [vmem:[%s419 + $0x188] sm:$0xf]
                  %522 = vst [vmem:[%s420 + $0xc8] sm:$0xf] %v521
                  %v523 = vld [vmem:[%s419 + $0x18c] sm:$0xf]
                  %524 = vst [vmem:[%s420 + $0xcc] sm:$0xf] %v523
                  %v525 = vld [vmem:[%s419 + $0x190] sm:$0xf]
                  %526 = vst [vmem:[%s420 + $0xd0] sm:$0xf] %v525
                  %v527 = vld [vmem:[%s419 + $0x194] sm:$0xf]
                  %528 = vst [vmem:[%s420 + $0xd4] sm:$0xf] %v527
                  %v529 = vld [vmem:[%s419 + $0x198] sm:$0xf]
                  %530 = vst [vmem:[%s420 + $0xd8] sm:$0xf] %v529
                  %v531 = vld [vmem:[%s419 + $0x19c] sm:$0xf]
                  %532 = vst [vmem:[%s420 + $0xdc] sm:$0xf] %v531
                  %v533 = vld [vmem:[%s419 + $0x1a0] sm:$0xf]
                  %534 = vst [vmem:[%s420 + $0xe0] sm:$0xf] %v533
                  %v535 = vld [vmem:[%s419 + $0x1a4] sm:$0xf]
                  %536 = vst [vmem:[%s420 + $0xe4] sm:$0xf] %v535
                  %v537 = vld [vmem:[%s419 + $0x1a8] sm:$0xf]
                  %538 = vst [vmem:[%s420 + $0xe8] sm:$0xf] %v537
                  %v539 = vld [vmem:[%s419 + $0x1ac] sm:$0xf]
                  %540 = vst [vmem:[%s420 + $0xec] sm:$0xf] %v539
                  %v541 = vld [vmem:[%s419 + $0x1b0] sm:$0xf]
                  %542 = vst [vmem:[%s420 + $0xf0] sm:$0xf] %v541
                  %v543 = vld [vmem:[%s419 + $0x1b4] sm:$0xf]
                  %544 = vst [vmem:[%s420 + $0xf4] sm:$0xf] %v543
                  %v545 = vld [vmem:[%s419 + $0x1b8] sm:$0xf]
                  %546 = vst [vmem:[%s420 + $0xf8] sm:$0xf] %v545
                  %v547 = vld [vmem:[%s419 + $0x1bc] sm:$0xf]
                  %548 = vst [vmem:[%s420 + $0xfc] sm:$0xf] %v547
                $region79: #{tpu_custom_call.1} parent=66 // loop_footer
                  %s418 = sadd.s32 1, %s414
                $region80: #{tpu_custom_call.1} parent=66 // loop_footer_branch
                  %413 = sbr.rel target = $region76
                $region81: #{tpu_custom_call.1} parent=66 // loop_exit
                  _
              $region67: #{tpu_custom_call.1} parent=51 // pred_fallthru
                _
            $region52: #{tpu_custom_call.1} parent=47 // pred_fallthru
              _
            // Predicated region
            $region53: #{tpu_custom_call.1} parent=47 // pred_check
              _
            $region54: #{tpu_custom_call.1} parent=47 // pred_check_branch
              %264 = sbr.rel (0) target = $region56
            $region55: #{tpu_custom_call.1} parent=47 // pred_region
              loop: start=0, step=1, limit=1
              $region57: #{tpu_custom_call.1} parent=55 // loop_pre_header
                _
              $region58: #{tpu_custom_call.1} parent=55 // loop_header
                %s267 = sphi 0, %s271
                %p268 = scmp.ge.s32.totalorder %s267, 1
                %s272 = sphi %s258, %s258
                %s273 = sphi %s253, %s253
              $region59: #{tpu_custom_call.1} parent=55 // loop_header_branch
                %270 = sbr.rel (%p268) target = $region63
              $region60: #{tpu_custom_call.1} parent=55 // loop_body
                %v274 = vld [vmem:[%s272] sm:$0xf]
                %275 = vst [vmem:[%s273] sm:$0xf] %v274
                %v276 = vld [vmem:[%s272 + $0x4] sm:$0xf]
                %277 = vst [vmem:[%s273 + $0x4] sm:$0xf] %v276
                %v278 = vld [vmem:[%s272 + $0x8] sm:$0xf]
                %279 = vst [vmem:[%s273 + $0x8] sm:$0xf] %v278
                %v280 = vld [vmem:[%s272 + $0xc] sm:$0xf]
                %281 = vst [vmem:[%s273 + $0xc] sm:$0xf] %v280
                %v282 = vld [vmem:[%s272 + $0x10] sm:$0xf]
                %283 = vst [vmem:[%s273 + $0x10] sm:$0xf] %v282
                %v284 = vld [vmem:[%s272 + $0x14] sm:$0xf]
                %285 = vst [vmem:[%s273 + $0x14] sm:$0xf] %v284
                %v286 = vld [vmem:[%s272 + $0x18] sm:$0xf]
                %287 = vst [vmem:[%s273 + $0x18] sm:$0xf] %v286
                %v288 = vld [vmem:[%s272 + $0x1c] sm:$0xf]
                %289 = vst [vmem:[%s273 + $0x1c] sm:$0xf] %v288
                %v290 = vld [vmem:[%s272 + $0x20] sm:$0xf]
                %291 = vst [vmem:[%s273 + $0x20] sm:$0xf] %v290
                %v292 = vld [vmem:[%s272 + $0x24] sm:$0xf]
                %293 = vst [vmem:[%s273 + $0x24] sm:$0xf] %v292
                %v294 = vld [vmem:[%s272 + $0x28] sm:$0xf]
                %295 = vst [vmem:[%s273 + $0x28] sm:$0xf] %v294
                %v296 = vld [vmem:[%s272 + $0x2c] sm:$0xf]
                %297 = vst [vmem:[%s273 + $0x2c] sm:$0xf] %v296
                %v298 = vld [vmem:[%s272 + $0x30] sm:$0xf]
                %299 = vst [vmem:[%s273 + $0x30] sm:$0xf] %v298
                %v300 = vld [vmem:[%s272 + $0x34] sm:$0xf]
                %301 = vst [vmem:[%s273 + $0x34] sm:$0xf] %v300
                %v302 = vld [vmem:[%s272 + $0x38] sm:$0xf]
                %303 = vst [vmem:[%s273 + $0x38] sm:$0xf] %v302
                %v304 = vld [vmem:[%s272 + $0x3c] sm:$0xf]
                %305 = vst [vmem:[%s273 + $0x3c] sm:$0xf] %v304
                %v306 = vld [vmem:[%s272 + $0x80] sm:$0xf]
                %307 = vst [vmem:[%s273 + $0x40] sm:$0xf] %v306
                %v308 = vld [vmem:[%s272 + $0x84] sm:$0xf]
                %309 = vst [vmem:[%s273 + $0x44] sm:$0xf] %v308
                %v310 = vld [vmem:[%s272 + $0x88] sm:$0xf]
                %311 = vst [vmem:[%s273 + $0x48] sm:$0xf] %v310
                %v312 = vld [vmem:[%s272 + $0x8c] sm:$0xf]
                %313 = vst [vmem:[%s273 + $0x4c] sm:$0xf] %v312
                %v314 = vld [vmem:[%s272 + $0x90] sm:$0xf]
                %315 = vst [vmem:[%s273 + $0x50] sm:$0xf] %v314
                %v316 = vld [vmem:[%s272 + $0x94] sm:$0xf]
                %317 = vst [vmem:[%s273 + $0x54] sm:$0xf] %v316
                %v318 = vld [vmem:[%s272 + $0x98] sm:$0xf]
                %319 = vst [vmem:[%s273 + $0x58] sm:$0xf] %v318
                %v320 = vld [vmem:[%s272 + $0x9c] sm:$0xf]
                %321 = vst [vmem:[%s273 + $0x5c] sm:$0xf] %v320
                %v322 = vld [vmem:[%s272 + $0xa0] sm:$0xf]
                %323 = vst [vmem:[%s273 + $0x60] sm:$0xf] %v322
                %v324 = vld [vmem:[%s272 + $0xa4] sm:$0xf]
                %325 = vst [vmem:[%s273 + $0x64] sm:$0xf] %v324
                %v326 = vld [vmem:[%s272 + $0xa8] sm:$0xf]
                %327 = vst [vmem:[%s273 + $0x68] sm:$0xf] %v326
                %v328 = vld [vmem:[%s272 + $0xac] sm:$0xf]
                %329 = vst [vmem:[%s273 + $0x6c] sm:$0xf] %v328
                %v330 = vld [vmem:[%s272 + $0xb0] sm:$0xf]
                %331 = vst [vmem:[%s273 + $0x70] sm:$0xf] %v330
                %v332 = vld [vmem:[%s272 + $0xb4] sm:$0xf]
                %333 = vst [vmem:[%s273 + $0x74] sm:$0xf] %v332
                %v334 = vld [vmem:[%s272 + $0xb8] sm:$0xf]
                %335 = vst [vmem:[%s273 + $0x78] sm:$0xf] %v334
                %v336 = vld [vmem:[%s272 + $0xbc] sm:$0xf]
                %337 = vst [vmem:[%s273 + $0x7c] sm:$0xf] %v336
                %v338 = vld [vmem:[%s272 + $0x100] sm:$0xf]
                %339 = vst [vmem:[%s273 + $0x80] sm:$0xf] %v338
                %v340 = vld [vmem:[%s272 + $0x104] sm:$0xf]
                %341 = vst [vmem:[%s273 + $0x84] sm:$0xf] %v340
                %v342 = vld [vmem:[%s272 + $0x108] sm:$0xf]
                %343 = vst [vmem:[%s273 + $0x88] sm:$0xf] %v342
                %v344 = vld [vmem:[%s272 + $0x10c] sm:$0xf]
                %345 = vst [vmem:[%s273 + $0x8c] sm:$0xf] %v344
                %v346 = vld [vmem:[%s272 + $0x110] sm:$0xf]
                %347 = vst [vmem:[%s273 + $0x90] sm:$0xf] %v346
                %v348 = vld [vmem:[%s272 + $0x114] sm:$0xf]
                %349 = vst [vmem:[%s273 + $0x94] sm:$0xf] %v348
                %v350 = vld [vmem:[%s272 + $0x118] sm:$0xf]
                %351 = vst [vmem:[%s273 + $0x98] sm:$0xf] %v350
                %v352 = vld [vmem:[%s272 + $0x11c] sm:$0xf]
                %353 = vst [vmem:[%s273 + $0x9c] sm:$0xf] %v352
                %v354 = vld [vmem:[%s272 + $0x120] sm:$0xf]
                %355 = vst [vmem:[%s273 + $0xa0] sm:$0xf] %v354
                %v356 = vld [vmem:[%s272 + $0x124] sm:$0xf]
                %357 = vst [vmem:[%s273 + $0xa4] sm:$0xf] %v356
                %v358 = vld [vmem:[%s272 + $0x128] sm:$0xf]
                %359 = vst [vmem:[%s273 + $0xa8] sm:$0xf] %v358
                %v360 = vld [vmem:[%s272 + $0x12c] sm:$0xf]
                %361 = vst [vmem:[%s273 + $0xac] sm:$0xf] %v360
                %v362 = vld [vmem:[%s272 + $0x130] sm:$0xf]
                %363 = vst [vmem:[%s273 + $0xb0] sm:$0xf] %v362
                %v364 = vld [vmem:[%s272 + $0x134] sm:$0xf]
                %365 = vst [vmem:[%s273 + $0xb4] sm:$0xf] %v364
                %v366 = vld [vmem:[%s272 + $0x138] sm:$0xf]
                %367 = vst [vmem:[%s273 + $0xb8] sm:$0xf] %v366
                %v368 = vld [vmem:[%s272 + $0x13c] sm:$0xf]
                %369 = vst [vmem:[%s273 + $0xbc] sm:$0xf] %v368
                %v370 = vld [vmem:[%s272 + $0x180] sm:$0xf]
                %371 = vst [vmem:[%s273 + $0xc0] sm:$0xf] %v370
                %v372 = vld [vmem:[%s272 + $0x184] sm:$0xf]
                %373 = vst [vmem:[%s273 + $0xc4] sm:$0xf] %v372
                %v374 = vld [vmem:[%s272 + $0x188] sm:$0xf]
                %375 = vst [vmem:[%s273 + $0xc8] sm:$0xf] %v374
                %v376 = vld [vmem:[%s272 + $0x18c] sm:$0xf]
                %377 = vst [vmem:[%s273 + $0xcc] sm:$0xf] %v376
                %v378 = vld [vmem:[%s272 + $0x190] sm:$0xf]
                %379 = vst [vmem:[%s273 + $0xd0] sm:$0xf] %v378
                %v380 = vld [vmem:[%s272 + $0x194] sm:$0xf]
                %381 = vst [vmem:[%s273 + $0xd4] sm:$0xf] %v380
                %v382 = vld [vmem:[%s272 + $0x198] sm:$0xf]
                %383 = vst [vmem:[%s273 + $0xd8] sm:$0xf] %v382
                %v384 = vld [vmem:[%s272 + $0x19c] sm:$0xf]
                %385 = vst [vmem:[%s273 + $0xdc] sm:$0xf] %v384
                %v386 = vld [vmem:[%s272 + $0x1a0] sm:$0xf]
                %387 = vst [vmem:[%s273 + $0xe0] sm:$0xf] %v386
                %v388 = vld [vmem:[%s272 + $0x1a4] sm:$0xf]
                %389 = vst [vmem:[%s273 + $0xe4] sm:$0xf] %v388
                %v390 = vld [vmem:[%s272 + $0x1a8] sm:$0xf]
                %391 = vst [vmem:[%s273 + $0xe8] sm:$0xf] %v390
                %v392 = vld [vmem:[%s272 + $0x1ac] sm:$0xf]
                %393 = vst [vmem:[%s273 + $0xec] sm:$0xf] %v392
                %v394 = vld [vmem:[%s272 + $0x1b0] sm:$0xf]
                %395 = vst [vmem:[%s273 + $0xf0] sm:$0xf] %v394
                %v396 = vld [vmem:[%s272 + $0x1b4] sm:$0xf]
                %397 = vst [vmem:[%s273 + $0xf4] sm:$0xf] %v396
                %v398 = vld [vmem:[%s272 + $0x1b8] sm:$0xf]
                %399 = vst [vmem:[%s273 + $0xf8] sm:$0xf] %v398
                %v400 = vld [vmem:[%s272 + $0x1bc] sm:$0xf]
                %401 = vst [vmem:[%s273 + $0xfc] sm:$0xf] %v400
              $region61: #{tpu_custom_call.1} parent=55 // loop_footer
                %s271 = sadd.s32 1, %s267
              $region62: #{tpu_custom_call.1} parent=55 // loop_footer_branch
                %266 = sbr.rel target = $region58
              $region63: #{tpu_custom_call.1} parent=55 // loop_exit
                _
            $region56: #{tpu_custom_call.1} parent=47 // pred_fallthru
              _
          $region48: #{tpu_custom_call.1} parent=43 // pred_fallthru
            _
          %549 = vnop
        $region44: #{tpu_custom_call.1} parent=39 // pred_fallthru
          _
      $region40: #{tpu_custom_call.1} parent=5 // pred_fallthru
        _
      %p550 = scmp.le.s32.totalorder 1, %s16
      %p551 = scmp.lt.s32.totalorder %s16, 5
      %p552 = pnand %p550, %p551
      %p553 = pneg %p552
      // Predicated region
      $region82: #{tpu_custom_call.1} parent=5 // pred_check
        _
      $region83: #{tpu_custom_call.1} parent=5 // pred_check_branch
        %555 = sbr.rel (%p552) target = $region85
      $region84: #{tpu_custom_call.1} parent=5 // pred_region
        %s556 = ssub.s32 %s16, 1
        %s557 = sand.u32 %s43, 1
        %s558 = sand.u32 %s43, 1
        %s559 = smul.addr %s558, 256
        %s560 = scalar_lea.vmem [#allocation4], %s559
        // Predicated region
        $region86: #{tpu_custom_call.1} parent=84 // pred_check
          %p561 = pneg %p56
        $region87: #{tpu_custom_call.1} parent=84 // pred_check_branch
          %563 = sbr.rel (%p561) target = $region89
        $region88: #{tpu_custom_call.1} parent=84 // pred_region
          _
        $region89: #{tpu_custom_call.1} parent=84 // pred_fallthru
          _
        %s564 = sand.u32 %s43, 1
        %s565 = sand.u32 %s43, 1
        %s566 = smul.addr %s565, 256
        %s567 = scalar_lea.vmem [#allocation4], %s566
        %p568 = pneg %p56
        %p569 = pneg %p53
        %p570 = pneg %p77
        %p571 = pneg %p74
        %p572 = pneg %p98
        %p573 = pneg %p95
        %p574 = pneg %p119
        %p575 = pneg %p116
        %p576 = pneg %p140
        %p577 = pneg %p137
        %p578 = pneg %p161
        %p579 = pneg %p158
        %p580 = pneg %p182
        %p581 = pneg %p179
        %p582 = pneg %p210
        %p583 = pneg %p207
        %s584 = sand.u32 %s197, 1
        %s585 = scalar_lea.sflag [#allocation6], %s584
        %s586 = sand.u32 %s197, 1
        %s587 = smul.addr %s586, 256
        %s588 = scalar_lea.vmem [#allocation5], %s587
        %s589 = smul.u32 16, %s26
        %s590 = smul.u32 16, %s26
        %v592 = vld [vmem:[%s560] sm:$0xf]
        %v593 = vld [vmem:[%s560 + $0x4] sm:$0xf]
        %v594 = vld [vmem:[%s560 + $0x8] sm:$0xf]
        %v595 = vld [vmem:[%s560 + $0xc] sm:$0xf]
        %v596 = vld [vmem:[%s560 + $0x10] sm:$0xf]
        %v597 = vld [vmem:[%s560 + $0x14] sm:$0xf]
        %v598 = vld [vmem:[%s560 + $0x18] sm:$0xf]
        %v599 = vld [vmem:[%s560 + $0x1c] sm:$0xf]
        %v600 = vld [vmem:[%s560 + $0x20] sm:$0xf]
        %v601 = vld [vmem:[%s560 + $0x24] sm:$0xf]
        %v602 = vld [vmem:[%s560 + $0x28] sm:$0xf]
        %v603 = vld [vmem:[%s560 + $0x2c] sm:$0xf]
        %v604 = vld [vmem:[%s560 + $0x30] sm:$0xf]
        %v605 = vld [vmem:[%s560 + $0x34] sm:$0xf]
        %v606 = vld [vmem:[%s560 + $0x38] sm:$0xf]
        %v607 = vld [vmem:[%s560 + $0x3c] sm:$0xf]
        %v608 = vld [vmem:[%s560 + $0x40] sm:$0xf]
        %v609 = vld [vmem:[%s560 + $0x44] sm:$0xf]
        %v610 = vld [vmem:[%s560 + $0x48] sm:$0xf]
        %v611 = vld [vmem:[%s560 + $0x4c] sm:$0xf]
        %v612 = vld [vmem:[%s560 + $0x50] sm:$0xf]
        %v613 = vld [vmem:[%s560 + $0x54] sm:$0xf]
        %v614 = vld [vmem:[%s560 + $0x58] sm:$0xf]
        %v615 = vld [vmem:[%s560 + $0x5c] sm:$0xf]
        %v616 = vld [vmem:[%s560 + $0x60] sm:$0xf]
        %v617 = vld [vmem:[%s560 + $0x64] sm:$0xf]
        %v618 = vld [vmem:[%s560 + $0x68] sm:$0xf]
        %v619 = vld [vmem:[%s560 + $0x6c] sm:$0xf]
        %v620 = vld [vmem:[%s560 + $0x70] sm:$0xf]
        %v621 = vld [vmem:[%s560 + $0x74] sm:$0xf]
        %v622 = vld [vmem:[%s560 + $0x78] sm:$0xf]
        %v623 = vld [vmem:[%s560 + $0x7c] sm:$0xf]
        %v624 = vld [vmem:[%s560 + $0x80] sm:$0xf]
        %v625 = vld [vmem:[%s560 + $0x84] sm:$0xf]
        %v626 = vld [vmem:[%s560 + $0x88] sm:$0xf]
        %v627 = vld [vmem:[%s560 + $0x8c] sm:$0xf]
        %v628 = vld [vmem:[%s560 + $0x90] sm:$0xf]
        %v629 = vld [vmem:[%s560 + $0x94] sm:$0xf]
        %v630 = vld [vmem:[%s560 + $0x98] sm:$0xf]
        %v631 = vld [vmem:[%s560 + $0x9c] sm:$0xf]
        %v632 = vld [vmem:[%s560 + $0xa0] sm:$0xf]
        %v633 = vld [vmem:[%s560 + $0xa4] sm:$0xf]
        %v634 = vld [vmem:[%s560 + $0xa8] sm:$0xf]
        %v635 = vld [vmem:[%s560 + $0xac] sm:$0xf]
        %v636 = vld [vmem:[%s560 + $0xb0] sm:$0xf]
        %v637 = vld [vmem:[%s560 + $0xb4] sm:$0xf]
        %v638 = vld [vmem:[%s560 + $0xb8] sm:$0xf]
        %v639 = vld [vmem:[%s560 + $0xbc] sm:$0xf]
        %v640 = vld [vmem:[%s560 + $0xc0] sm:$0xf]
        %v641 = vld [vmem:[%s560 + $0xc4] sm:$0xf]
        %v642 = vld [vmem:[%s560 + $0xc8] sm:$0xf]
        %v643 = vld [vmem:[%s560 + $0xcc] sm:$0xf]
        %v644 = vld [vmem:[%s560 + $0xd0] sm:$0xf]
        %v645 = vld [vmem:[%s560 + $0xd4] sm:$0xf]
        %v646 = vld [vmem:[%s560 + $0xd8] sm:$0xf]
        %v647 = vld [vmem:[%s560 + $0xdc] sm:$0xf]
        %v648 = vld [vmem:[%s560 + $0xe0] sm:$0xf]
        %v649 = vld [vmem:[%s560 + $0xe4] sm:$0xf]
        %v650 = vld [vmem:[%s560 + $0xe8] sm:$0xf]
        %v651 = vld [vmem:[%s560 + $0xec] sm:$0xf]
        %v652 = vld [vmem:[%s560 + $0xf0] sm:$0xf]
        %v653 = vld [vmem:[%s560 + $0xf4] sm:$0xf]
        %v654 = vld [vmem:[%s560 + $0xf8] sm:$0xf]
        %v655 = vld [vmem:[%s560 + $0xfc] sm:$0xf]
        %v656 = vld [vmem:[%s1] sm:$0xf]
        %v657 = vld [vmem:[%s2] sm:$0x1]
        %v659 = vlaneseq
        %v660 = vshrl.u32 %v659, 7
        %v661 = vsub.s32 0, %v660
        %v662 = vrot.slane %v657, %v661
        %v728 = vunpack.c.l.b16 %v592
        %v729 = vunpack.c.l.b16 %v593
        %v730 = vunpack.c.l.b16 %v594
        %v731 = vunpack.c.l.b16 %v595
        %v732 = vunpack.c.l.b16 %v596
        %v733 = vunpack.c.l.b16 %v597
        %v734 = vunpack.c.l.b16 %v598
        %v735 = vunpack.c.l.b16 %v599
        %v736 = vunpack.c.l.b16 %v600
        %v737 = vunpack.c.l.b16 %v601
        %v738 = vunpack.c.l.b16 %v602
        %v739 = vunpack.c.l.b16 %v603
        %v740 = vunpack.c.l.b16 %v604
        %v741 = vunpack.c.l.b16 %v605
        %v742 = vunpack.c.l.b16 %v606
        %v743 = vunpack.c.l.b16 %v607
        %v744 = vunpack.c.l.b16 %v608
        %v745 = vunpack.c.l.b16 %v609
        %v746 = vunpack.c.l.b16 %v610
        %v747 = vunpack.c.l.b16 %v611
        %v748 = vunpack.c.l.b16 %v612
        %v749 = vunpack.c.l.b16 %v613
        %v750 = vunpack.c.l.b16 %v614
        %v751 = vunpack.c.l.b16 %v615
        %v752 = vunpack.c.l.b16 %v616
        %v753 = vunpack.c.l.b16 %v617
        %v754 = vunpack.c.l.b16 %v618
        %v755 = vunpack.c.l.b16 %v619
        %v756 = vunpack.c.l.b16 %v620
        %v757 = vunpack.c.l.b16 %v621
        %v758 = vunpack.c.l.b16 %v622
        %v759 = vunpack.c.l.b16 %v623
        %v760 = vunpack.c.l.b16 %v624
        %v761 = vunpack.c.l.b16 %v625
        %v762 = vunpack.c.l.b16 %v626
        %v763 = vunpack.c.l.b16 %v627
        %v764 = vunpack.c.l.b16 %v628
        %v765 = vunpack.c.l.b16 %v629
        %v766 = vunpack.c.l.b16 %v630
        %v767 = vunpack.c.l.b16 %v631
        %v768 = vunpack.c.l.b16 %v632
        %v769 = vunpack.c.l.b16 %v633
        %v770 = vunpack.c.l.b16 %v634
        %v771 = vunpack.c.l.b16 %v635
        %v772 = vunpack.c.l.b16 %v636
        %v773 = vunpack.c.l.b16 %v637
        %v774 = vunpack.c.l.b16 %v638
        %v775 = vunpack.c.l.b16 %v639
        %v776 = vunpack.c.l.b16 %v640
        %v777 = vunpack.c.l.b16 %v641
        %v778 = vunpack.c.l.b16 %v642
        %v779 = vunpack.c.l.b16 %v643
        %v780 = vunpack.c.l.b16 %v644
        %v781 = vunpack.c.l.b16 %v645
        %v782 = vunpack.c.l.b16 %v646
        %v783 = vunpack.c.l.b16 %v647
        %v784 = vunpack.c.l.b16 %v648
        %v785 = vunpack.c.l.b16 %v649
        %v786 = vunpack.c.l.b16 %v650
        %v787 = vunpack.c.l.b16 %v651
        %v788 = vunpack.c.l.b16 %v652
        %v789 = vunpack.c.l.b16 %v653
        %v790 = vunpack.c.l.b16 %v654
        %v791 = vunpack.c.l.b16 %v655
        %v792 = vpack.c.b16 %v729, %v728
        %v793 = vpack.c.b16 %v731, %v730
        %v794 = vpack.c.b16 %v733, %v732
        %v795 = vpack.c.b16 %v735, %v734
        %v796 = vpack.c.b16 %v737, %v736
        %v797 = vpack.c.b16 %v739, %v738
        %v798 = vpack.c.b16 %v741, %v740
        %v799 = vpack.c.b16 %v743, %v742
        %v800 = vpack.c.b16 %v745, %v744
        %v801 = vpack.c.b16 %v747, %v746
        %v802 = vpack.c.b16 %v749, %v748
        %v803 = vpack.c.b16 %v751, %v750
        %v804 = vpack.c.b16 %v753, %v752
        %v805 = vpack.c.b16 %v755, %v754
        %v806 = vpack.c.b16 %v757, %v756
        %v807 = vpack.c.b16 %v759, %v758
        %v808 = vpack.c.b16 %v761, %v760
        %v809 = vpack.c.b16 %v763, %v762
        %v810 = vpack.c.b16 %v765, %v764
        %v811 = vpack.c.b16 %v767, %v766
        %v812 = vpack.c.b16 %v769, %v768
        %v813 = vpack.c.b16 %v771, %v770
        %v814 = vpack.c.b16 %v773, %v772
        %v815 = vpack.c.b16 %v775, %v774
        %v816 = vpack.c.b16 %v777, %v776
        %v817 = vpack.c.b16 %v779, %v778
        %v818 = vpack.c.b16 %v781, %v780
        %v819 = vpack.c.b16 %v783, %v782
        %v820 = vpack.c.b16 %v785, %v784
        %v821 = vpack.c.b16 %v787, %v786
        %v822 = vpack.c.b16 %v789, %v788
        %v823 = vpack.c.b16 %v791, %v790
        %vm824 = vcmask 64512
        %v826 = vsel %vm824, %v792, 0
        %v829 = vsel %vm824, %v793, 0
        %v832 = vsel %vm824, %v794, 0
        %v835 = vsel %vm824, %v795, 0
        %v838 = vsel %vm824, %v796, 0
        %v841 = vsel %vm824, %v797, 0
        %v844 = vsel %vm824, %v798, 0
        %v847 = vsel %vm824, %v799, 0
        %v850 = vsel %vm824, %v800, 0
        %v853 = vsel %vm824, %v801, 0
        %v856 = vsel %vm824, %v802, 0
        %v859 = vsel %vm824, %v803, 0
        %v862 = vsel %vm824, %v804, 0
        %v865 = vsel %vm824, %v805, 0
        %v868 = vsel %vm824, %v806, 0
        %v871 = vsel %vm824, %v807, 0
        %v874 = vsel %vm824, %v808, 0
        %v877 = vsel %vm824, %v809, 0
        %v880 = vsel %vm824, %v810, 0
        %v883 = vsel %vm824, %v811, 0
        %v886 = vsel %vm824, %v812, 0
        %v889 = vsel %vm824, %v813, 0
        %v892 = vsel %vm824, %v814, 0
        %v895 = vsel %vm824, %v815, 0
        %v898 = vsel %vm824, %v816, 0
        %v901 = vsel %vm824, %v817, 0
        %v904 = vsel %vm824, %v818, 0
        %v907 = vsel %vm824, %v819, 0
        %v910 = vsel %vm824, %v820, 0
        %v913 = vsel %vm824, %v821, 0
        %v916 = vsel %vm824, %v822, 0
        %v919 = vsel %vm824, %v823, 0
        %vm921 = vcmask 1043456
        %v923 = vsel %vm921, %v656, 0
        %925 = vmatprep.subr.bf16.mxu0 0
        %926 = vmatpush1.bf16.msra.mxu0 %v923
        %927 = vmatprep.subr.bf16.mxu0 0
        %928 = vmatpush1.bf16.msra.mxu0 0
        %929 = vmatprep.subr.bf16.mxu0 0
        %930 = vmatpush1.bf16.msra.mxu0 0
        %931 = vmatprep.subr.bf16.mxu0 0
        %932 = vmatpush1.bf16.msra.mxu0 0
        %933 = vmatprep.subr.bf16.mxu0 0
        %934 = vmatpush1.bf16.msra.mxu0 0
        %935 = vmatprep.subr.bf16.mxu0 0
        %936 = vmatpush1.bf16.msra.mxu0 0
        %937 = vmatprep.subr.bf16.mxu0 0
        %938 = vmatpush1.bf16.msra.mxu0 0
        %939 = vmatprep.subr.bf16.mxu0 0
        %940 = vmatpush1.bf16.msra.mxu0 0
        %941 = vmatprep.subr.bf16.mxu0 0
        %942 = vmatpush1.bf16.msra.mxu0 0
        %943 = vmatprep.subr.bf16.mxu0 0
        %944 = vmatpush1.bf16.msra.mxu0 0
        %945 = vmatprep.subr.bf16.mxu0 0
        %946 = vmatpush1.bf16.msra.mxu0 0
        %947 = vmatprep.subr.bf16.mxu0 0
        %948 = vmatpush1.bf16.msra.mxu0 0
        %949 = vmatprep.subr.bf16.mxu0 0
        %950 = vmatpush1.bf16.msra.mxu0 0
        %951 = vmatprep.subr.bf16.mxu0 0
        %952 = vmatpush1.bf16.msra.mxu0 0
        %953 = vmatprep.subr.bf16.mxu0 0
        %954 = vmatpush1.bf16.msra.mxu0 0
        %955 = vmatprep.subr.bf16.mxu0 0
        %956 = vmatpush1.bf16.msra.mxu0 0
        %957 = vmatprep.mubr.bf16.mxu0 0
        %958 = vmatmul.mubr.bf16.gmra.mrb[0].mxu0 %v826
        %v959 = vpop.f32.mrb[0].mxu0
        %v960 = vadd.f32 %v662, %v959
        %v961 = vpop.f32.mrb[0].mxu0
        %v962 = vpop.f32.mrb[0].mxu0
        %v963 = vadd.f32 %v662, %v962
        %v964 = vpop.f32.mrb[0].mxu0
        %965 = vmatprep.mubr.bf16.mxu0 0
        %966 = vmatmul.mubr.bf16.gmra.mrb[0].mxu0 %v829
        %v967 = vpop.f32.mrb[0].mxu0
        %v968 = vadd.f32 %v662, %v967
        %v969 = vpop.f32.mrb[0].mxu0
        %v970 = vpop.f32.mrb[0].mxu0
        %v971 = vadd.f32 %v662, %v970
        %v972 = vpop.f32.mrb[0].mxu0
        %973 = vmatprep.mubr.bf16.mxu0 0
        %974 = vmatmul.mubr.bf16.gmra.mrb[0].mxu0 %v832
        %v975 = vpop.f32.mrb[0].mxu0
        %v976 = vadd.f32 %v662, %v975
        %v977 = vpop.f32.mrb[0].mxu0
        %v978 = vpop.f32.mrb[0].mxu0
        %v979 = vadd.f32 %v662, %v978
        %v980 = vpop.f32.mrb[0].mxu0
        %981 = vmatprep.mubr.bf16.mxu0 0
        %982 = vmatmul.mubr.bf16.gmra.mrb[0].mxu0 %v835
        %v983 = vpop.f32.mrb[0].mxu0
        %v984 = vadd.f32 %v662, %v983
        %v985 = vpop.f32.mrb[0].mxu0
        %v986 = vpop.f32.mrb[0].mxu0
        %v987 = vadd.f32 %v662, %v986
        %v988 = vpop.f32.mrb[0].mxu0
        %989 = vmatprep.mubr.bf16.mxu0 0
        %990 = vmatmul.mubr.bf16.gmra.mrb[0].mxu0 %v838
        %v991 = vpop.f32.mrb[0].mxu0
        %v992 = vadd.f32 %v662, %v991
        %v993 = vpop.f32.mrb[0].mxu0
        %v994 = vpop.f32.mrb[0].mxu0
        %v995 = vadd.f32 %v662, %v994
        %v996 = vpop.f32.mrb[0].mxu0
        %997 = vmatprep.mubr.bf16.mxu0 0
        %998 = vmatmul.mubr.bf16.gmra.mrb[0].mxu0 %v841
        %v999 = vpop.f32.mrb[0].mxu0
        %v1000 = vadd.f32 %v662, %v999
        %v1001 = vpop.f32.mrb[0].mxu0
        %v1002 = vpop.f32.mrb[0].mxu0
        %v1003 = vadd.f32 %v662, %v1002
        %v1004 = vpop.f32.mrb[0].mxu0
        %1005 = vmatprep.mubr.bf16.mxu0 0
        %1006 = vmatmul.mubr.bf16.gmra.mrb[0].mxu0 %v844
        %v1007 = vpop.f32.mrb[0].mxu0
        %v1008 = vadd.f32 %v662, %v1007
        %v1009 = vpop.f32.mrb[0].mxu0
        %v1010 = vpop.f32.mrb[0].mxu0
        %v1011 = vadd.f32 %v662, %v1010
        %v1012 = vpop.f32.mrb[0].mxu0
        %1013 = vmatprep.mubr.bf16.mxu0 0
        %1014 = vmatmul.mubr.bf16.gmra.mrb[0].mxu0 %v847
        %v1015 = vpop.f32.mrb[0].mxu0
        %v1016 = vadd.f32 %v662, %v1015
        %v1017 = vpop.f32.mrb[0].mxu0
        %v1018 = vpop.f32.mrb[0].mxu0
        %v1019 = vadd.f32 %v662, %v1018
        %v1020 = vpop.f32.mrb[0].mxu0
        %1021 = vmatprep.mubr.bf16.mxu0 0
        %1022 = vmatmul.mubr.bf16.gmra.mrb[0].mxu0 %v850
        %v1023 = vpop.f32.mrb[0].mxu0
        %v1024 = vadd.f32 %v662, %v1023
        %v1025 = vpop.f32.mrb[0].mxu0
        %v1026 = vpop.f32.mrb[0].mxu0
        %v1027 = vadd.f32 %v662, %v1026
        %v1028 = vpop.f32.mrb[0].mxu0
        %1029 = vmatprep.mubr.bf16.mxu0 0
        %1030 = vmatmul.mubr.bf16.gmra.mrb[0].mxu0 %v853
        %v1031 = vpop.f32.mrb[0].mxu0
        %v1032 = vadd.f32 %v662, %v1031
        %v1033 = vpop.f32.mrb[0].mxu0
        %v1034 = vpop.f32.mrb[0].mxu0
        %v1035 = vadd.f32 %v662, %v1034
        %v1036 = vpop.f32.mrb[0].mxu0
        %1037 = vmatprep.mubr.bf16.mxu0 0
        %1038 = vmatmul.mubr.bf16.gmra.mrb[0].mxu0 %v856
        %v1039 = vpop.f32.mrb[0].mxu0
        %v1040 = vadd.f32 %v662, %v1039
        %v1041 = vpop.f32.mrb[0].mxu0
        %v1042 = vpop.f32.mrb[0].mxu0
        %v1043 = vadd.f32 %v662, %v1042
        %v1044 = vpop.f32.mrb[0].mxu0
        %1045 = vmatprep.mubr.bf16.mxu0 0
        %1046 = vmatmul.mubr.bf16.gmra.mrb[0].mxu0 %v859
        %v1047 = vpop.f32.mrb[0].mxu0
        %v1048 = vadd.f32 %v662, %v1047
        %v1049 = vpop.f32.mrb[0].mxu0
        %v1050 = vpop.f32.mrb[0].mxu0
        %v1051 = vadd.f32 %v662, %v1050
        %v1052 = vpop.f32.mrb[0].mxu0
        %1053 = vmatprep.mubr.bf16.mxu0 0
        %1054 = vmatmul.mubr.bf16.gmra.mrb[0].mxu0 %v862
        %v1055 = vpop.f32.mrb[0].mxu0
        %v1056 = vadd.f32 %v662, %v1055
        %v1057 = vpop.f32.mrb[0].mxu0
        %v1058 = vpop.f32.mrb[0].mxu0
        %v1059 = vadd.f32 %v662, %v1058
        %v1060 = vpop.f32.mrb[0].mxu0
        %1061 = vmatprep.mubr.bf16.mxu0 0
        %1062 = vmatmul.mubr.bf16.gmra.mrb[0].mxu0 %v865
        %v1063 = vpop.f32.mrb[0].mxu0
        %v1064 = vadd.f32 %v662, %v1063
        %v1065 = vpop.f32.mrb[0].mxu0
        %v1066 = vpop.f32.mrb[0].mxu0
        %v1067 = vadd.f32 %v662, %v1066
        %v1068 = vpop.f32.mrb[0].mxu0
        %1069 = vmatprep.mubr.bf16.mxu0 0
        %1070 = vmatmul.mubr.bf16.gmra.mrb[0].mxu0 %v868
        %v1071 = vpop.f32.mrb[0].mxu0
        %v1072 = vadd.f32 %v662, %v1071
        %v1073 = vpop.f32.mrb[0].mxu0
        %v1074 = vpop.f32.mrb[0].mxu0
        %v1075 = vadd.f32 %v662, %v1074
        %v1076 = vpop.f32.mrb[0].mxu0
        %1077 = vmatprep.mubr.bf16.mxu0 0
        %1078 = vmatmul.mubr.bf16.gmra.mrb[0].mxu0 %v871
        %v1079 = vpop.f32.mrb[0].mxu0
        %v1080 = vadd.f32 %v662, %v1079
        %v1081 = vpop.f32.mrb[0].mxu0
        %v1082 = vpop.f32.mrb[0].mxu0
        %v1083 = vadd.f32 %v662, %v1082
        %v1084 = vpop.f32.mrb[0].mxu0
        %1085 = vmatprep.mubr.bf16.mxu0 0
        %1086 = vmatmul.mubr.bf16.gmra.mrb[0].mxu0 %v874
        %v1087 = vpop.f32.mrb[0].mxu0
        %v1088 = vadd.f32 %v662, %v1087
        %v1089 = vpop.f32.mrb[0].mxu0
        %v1090 = vpop.f32.mrb[0].mxu0
        %v1091 = vadd.f32 %v662, %v1090
        %v1092 = vpop.f32.mrb[0].mxu0
        %1093 = vmatprep.mubr.bf16.mxu0 0
        %1094 = vmatmul.mubr.bf16.gmra.mrb[0].mxu0 %v877
        %v1095 = vpop.f32.mrb[0].mxu0
        %v1096 = vadd.f32 %v662, %v1095
        %v1097 = vpop.f32.mrb[0].mxu0
        %v1098 = vpop.f32.mrb[0].mxu0
        %v1099 = vadd.f32 %v662, %v1098
        %v1100 = vpop.f32.mrb[0].mxu0
        %1101 = vmatprep.mubr.bf16.mxu0 0
        %1102 = vmatmul.mubr.bf16.gmra.mrb[0].mxu0 %v880
        %v1103 = vpop.f32.mrb[0].mxu0
        %v1104 = vadd.f32 %v662, %v1103
        %v1105 = vpop.f32.mrb[0].mxu0
        %v1106 = vpop.f32.mrb[0].mxu0
        %v1107 = vadd.f32 %v662, %v1106
        %v1108 = vpop.f32.mrb[0].mxu0
        %1109 = vmatprep.mubr.bf16.mxu0 0
        %1110 = vmatmul.mubr.bf16.gmra.mrb[0].mxu0 %v883
        %v1111 = vpop.f32.mrb[0].mxu0
        %v1112 = vadd.f32 %v662, %v1111
        %v1113 = vpop.f32.mrb[0].mxu0
        %v1114 = vpop.f32.mrb[0].mxu0
        %v1115 = vadd.f32 %v662, %v1114
        %v1116 = vpop.f32.mrb[0].mxu0
        %1117 = vmatprep.mubr.bf16.mxu0 0
        %1118 = vmatmul.mubr.bf16.gmra.mrb[0].mxu0 %v886
        %v1119 = vpop.f32.mrb[0].mxu0
        %v1120 = vadd.f32 %v662, %v1119
        %v1121 = vpop.f32.mrb[0].mxu0
        %v1122 = vpop.f32.mrb[0].mxu0
        %v1123 = vadd.f32 %v662, %v1122
        %v1124 = vpop.f32.mrb[0].mxu0
        %1125 = vmatprep.mubr.bf16.mxu0 0
        %1126 = vmatmul.mubr.bf16.gmra.mrb[0].mxu0 %v889
        %v1127 = vpop.f32.mrb[0].mxu0
        %v1128 = vadd.f32 %v662, %v1127
        %v1129 = vpop.f32.mrb[0].mxu0
        %v1130 = vpop.f32.mrb[0].mxu0
        %v1131 = vadd.f32 %v662, %v1130
        %v1132 = vpop.f32.mrb[0].mxu0
        %1133 = vmatprep.mubr.bf16.mxu0 0
        %1134 = vmatmul.mubr.bf16.gmra.mrb[0].mxu0 %v892
        %v1135 = vpop.f32.mrb[0].mxu0
        %v1136 = vadd.f32 %v662, %v1135
        %v1137 = vpop.f32.mrb[0].mxu0
        %v1138 = vpop.f32.mrb[0].mxu0
        %v1139 = vadd.f32 %v662, %v1138
        %v1140 = vpop.f32.mrb[0].mxu0
        %1141 = vmatprep.mubr.bf16.mxu0 0
        %1142 = vmatmul.mubr.bf16.gmra.mrb[0].mxu0 %v895
        %v1143 = vpop.f32.mrb[0].mxu0
        %v1144 = vadd.f32 %v662, %v1143
        %v1145 = vpop.f32.mrb[0].mxu0
        %v1146 = vpop.f32.mrb[0].mxu0
        %v1147 = vadd.f32 %v662, %v1146
        %v1148 = vpop.f32.mrb[0].mxu0
        %1149 = vmatprep.mubr.bf16.mxu0 0
        %1150 = vmatmul.mubr.bf16.gmra.mrb[0].mxu0 %v898
        %v1151 = vpop.f32.mrb[0].mxu0
        %v1152 = vadd.f32 %v662, %v1151
        %v1153 = vpop.f32.mrb[0].mxu0
        %v1154 = vpop.f32.mrb[0].mxu0
        %v1155 = vadd.f32 %v662, %v1154
        %v1156 = vpop.f32.mrb[0].mxu0
        %1157 = vmatprep.mubr.bf16.mxu0 0
        %1158 = vmatmul.mubr.bf16.gmra.mrb[0].mxu0 %v901
        %v1159 = vpop.f32.mrb[0].mxu0
        %v1160 = vadd.f32 %v662, %v1159
        %v1161 = vpop.f32.mrb[0].mxu0
        %v1162 = vpop.f32.mrb[0].mxu0
        %v1163 = vadd.f32 %v662, %v1162
        %v1164 = vpop.f32.mrb[0].mxu0
        %1165 = vmatprep.mubr.bf16.mxu0 0
        %1166 = vmatmul.mubr.bf16.gmra.mrb[0].mxu0 %v904
        %v1167 = vpop.f32.mrb[0].mxu0
        %v1168 = vadd.f32 %v662, %v1167
        %v1169 = vpop.f32.mrb[0].mxu0
        %v1170 = vpop.f32.mrb[0].mxu0
        %v1171 = vadd.f32 %v662, %v1170
        %v1172 = vpop.f32.mrb[0].mxu0
        %1173 = vmatprep.mubr.bf16.mxu0 0
        %1174 = vmatmul.mubr.bf16.gmra.mrb[0].mxu0 %v907
        %v1175 = vpop.f32.mrb[0].mxu0
        %v1176 = vadd.f32 %v662, %v1175
        %v1177 = vpop.f32.mrb[0].mxu0
        %v1178 = vpop.f32.mrb[0].mxu0
        %v1179 = vadd.f32 %v662, %v1178
        %v1180 = vpop.f32.mrb[0].mxu0
        %1181 = vmatprep.mubr.bf16.mxu0 0
        %1182 = vmatmul.mubr.bf16.gmra.mrb[0].mxu0 %v910
        %v1183 = vpop.f32.mrb[0].mxu0
        %v1184 = vadd.f32 %v662, %v1183
        %v1185 = vpop.f32.mrb[0].mxu0
        %v1186 = vpop.f32.mrb[0].mxu0
        %v1187 = vadd.f32 %v662, %v1186
        %v1188 = vpop.f32.mrb[0].mxu0
        %1189 = vmatprep.mubr.bf16.mxu0 0
        %1190 = vmatmul.mubr.bf16.gmra.mrb[0].mxu0 %v913
        %v1191 = vpop.f32.mrb[0].mxu0
        %v1192 = vadd.f32 %v662, %v1191
        %v1193 = vpop.f32.mrb[0].mxu0
        %v1194 = vpop.f32.mrb[0].mxu0
        %v1195 = vadd.f32 %v662, %v1194
        %v1196 = vpop.f32.mrb[0].mxu0
        %1197 = vmatprep.mubr.bf16.mxu0 0
        %1198 = vmatmul.mubr.bf16.gmra.mrb[0].mxu0 %v916
        %v1199 = vpop.f32.mrb[0].mxu0
        %v1200 = vadd.f32 %v662, %v1199
        %v1201 = vpop.f32.mrb[0].mxu0
        %v1202 = vpop.f32.mrb[0].mxu0
        %v1203 = vadd.f32 %v662, %v1202
        %v1204 = vpop.f32.mrb[0].mxu0
        %1205 = vmatprep.mubr.bf16.mxu0 0
        %1206 = vmatmul.mubr.bf16.gmra.mrb[0].mxu0 %v919
        %v1207 = vpop.f32.mrb[0].mxu0
        %v1208 = vadd.f32 %v662, %v1207
        %v1209 = vpop.f32.mrb[0].mxu0
        %v1210 = vpop.f32.mrb[0].mxu0
        %v1211 = vadd.f32 %v662, %v1210
        %v1212 = vpop.f32.mrb[0].mxu0
        %1213 = vdwg.mxu0
        %v1214 = vmax.f32 %v960, 0.0
        %v1215 = vmax.f32 %v963, 0.0
        %v1216 = vmax.f32 %v968, 0.0
        %v1217 = vmax.f32 %v971, 0.0
        %v1218 = vmax.f32 %v976, 0.0
        %v1219 = vmax.f32 %v979, 0.0
        %v1220 = vmax.f32 %v984, 0.0
        %v1221 = vmax.f32 %v987, 0.0
        %v1222 = vmax.f32 %v992, 0.0
        %v1223 = vmax.f32 %v995, 0.0
        %v1224 = vmax.f32 %v1000, 0.0
        %v1225 = vmax.f32 %v1003, 0.0
        %v1226 = vmax.f32 %v1008, 0.0
        %v1227 = vmax.f32 %v1011, 0.0
        %v1228 = vmax.f32 %v1016, 0.0
        %v1229 = vmax.f32 %v1019, 0.0
        %v1230 = vmax.f32 %v1024, 0.0
        %v1231 = vmax.f32 %v1027, 0.0
        %v1232 = vmax.f32 %v1032, 0.0
        %v1233 = vmax.f32 %v1035, 0.0
        %v1234 = vmax.f32 %v1040, 0.0
        %v1235 = vmax.f32 %v1043, 0.0
        %v1236 = vmax.f32 %v1048, 0.0
        %v1237 = vmax.f32 %v1051, 0.0
        %v1238 = vmax.f32 %v1056, 0.0
        %v1239 = vmax.f32 %v1059, 0.0
        %v1240 = vmax.f32 %v1064, 0.0
        %v1241 = vmax.f32 %v1067, 0.0
        %v1242 = vmax.f32 %v1072, 0.0
        %v1243 = vmax.f32 %v1075, 0.0
        %v1244 = vmax.f32 %v1080, 0.0
        %v1245 = vmax.f32 %v1083, 0.0
        %v1246 = vmax.f32 %v1088, 0.0
        %v1247 = vmax.f32 %v1091, 0.0
        %v1248 = vmax.f32 %v1096, 0.0
        %v1249 = vmax.f32 %v1099, 0.0
        %v1250 = vmax.f32 %v1104, 0.0
        %v1251 = vmax.f32 %v1107, 0.0
        %v1252 = vmax.f32 %v1112, 0.0
        %v1253 = vmax.f32 %v1115, 0.0
        %v1254 = vmax.f32 %v1120, 0.0
        %v1255 = vmax.f32 %v1123, 0.0
        %v1256 = vmax.f32 %v1128, 0.0
        %v1257 = vmax.f32 %v1131, 0.0
        %v1258 = vmax.f32 %v1136, 0.0
        %v1259 = vmax.f32 %v1139, 0.0
        %v1260 = vmax.f32 %v1144, 0.0
        %v1261 = vmax.f32 %v1147, 0.0
        %v1262 = vmax.f32 %v1152, 0.0
        %v1263 = vmax.f32 %v1155, 0.0
        %v1264 = vmax.f32 %v1160, 0.0
        %v1265 = vmax.f32 %v1163, 0.0
        %v1266 = vmax.f32 %v1168, 0.0
        %v1267 = vmax.f32 %v1171, 0.0
        %v1268 = vmax.f32 %v1176, 0.0
        %v1269 = vmax.f32 %v1179, 0.0
        %v1270 = vmax.f32 %v1184, 0.0
        %v1271 = vmax.f32 %v1187, 0.0
        %v1272 = vmax.f32 %v1192, 0.0
        %v1273 = vmax.f32 %v1195, 0.0
        %v1274 = vmax.f32 %v1200, 0.0
        %v1275 = vmax.f32 %v1203, 0.0
        %v1276 = vmax.f32 %v1208, 0.0
        %v1277 = vmax.f32 %v1211, 0.0
        %1278 = vst [vmem:[#allocation2] sm:$0xff] %v1214
        %1279 = vst [vmem:[#allocation2 + $0x8] sm:$0xff] %v1215
        %1280 = vst [vmem:[#allocation2 + $0x10] sm:$0xff] %v1216
        %1281 = vst [vmem:[#allocation2 + $0x18] sm:$0xff] %v1217
        %1282 = vst [vmem:[#allocation2 + $0x20] sm:$0xff] %v1218
        %1283 = vst [vmem:[#allocation2 + $0x28] sm:$0xff] %v1219
        %1284 = vst [vmem:[#allocation2 + $0x30] sm:$0xff] %v1220
        %1285 = vst [vmem:[#allocation2 + $0x38] sm:$0xff] %v1221
        %1286 = vst [vmem:[#allocation2 + $0x40] sm:$0xff] %v1222
        %1287 = vst [vmem:[#allocation2 + $0x48] sm:$0xff] %v1223
        %1288 = vst [vmem:[#allocation2 + $0x50] sm:$0xff] %v1224
        %1289 = vst [vmem:[#allocation2 + $0x58] sm:$0xff] %v1225
        %1290 = vst [vmem:[#allocation2 + $0x60] sm:$0xff] %v1226
        %1291 = vst [vmem:[#allocation2 + $0x68] sm:$0xff] %v1227
        %1292 = vst [vmem:[#allocation2 + $0x70] sm:$0xff] %v1228
        %1293 = vst [vmem:[#allocation2 + $0x78] sm:$0xff] %v1229
        %1294 = vst [vmem:[#allocation2 + $0x80] sm:$0xff] %v1230
        %1295 = vst [vmem:[#allocation2 + $0x88] sm:$0xff] %v1231
        %1296 = vst [vmem:[#allocation2 + $0x90] sm:$0xff] %v1232
        %1297 = vst [vmem:[#allocation2 + $0x98] sm:$0xff] %v1233
        %1298 = vst [vmem:[#allocation2 + $0xa0] sm:$0xff] %v1234
        %1299 = vst [vmem:[#allocation2 + $0xa8] sm:$0xff] %v1235
        %1300 = vst [vmem:[#allocation2 + $0xb0] sm:$0xff] %v1236
        %1301 = vst [vmem:[#allocation2 + $0xb8] sm:$0xff] %v1237
        %1302 = vst [vmem:[#allocation2 + $0xc0] sm:$0xff] %v1238
        %1303 = vst [vmem:[#allocation2 + $0xc8] sm:$0xff] %v1239
        %1304 = vst [vmem:[#allocation2 + $0xd0] sm:$0xff] %v1240
        %1305 = vst [vmem:[#allocation2 + $0xd8] sm:$0xff] %v1241
        %1306 = vst [vmem:[#allocation2 + $0xe0] sm:$0xff] %v1242
        %1307 = vst [vmem:[#allocation2 + $0xe8] sm:$0xff] %v1243
        %1308 = vst [vmem:[#allocation2 + $0xf0] sm:$0xff] %v1244
        %1309 = vst [vmem:[#allocation2 + $0xf8] sm:$0xff] %v1245
        %1310 = vst [vmem:[#allocation2 + $0x100] sm:$0xff] %v1246
        %1311 = vst [vmem:[#allocation2 + $0x108] sm:$0xff] %v1247
        %1312 = vst [vmem:[#allocation2 + $0x110] sm:$0xff] %v1248
        %1313 = vst [vmem:[#allocation2 + $0x118] sm:$0xff] %v1249
        %1314 = vst [vmem:[#allocation2 + $0x120] sm:$0xff] %v1250
        %1315 = vst [vmem:[#allocation2 + $0x128] sm:$0xff] %v1251
        %1316 = vst [vmem:[#allocation2 + $0x130] sm:$0xff] %v1252
        %1317 = vst [vmem:[#allocation2 + $0x138] sm:$0xff] %v1253
        %1318 = vst [vmem:[#allocation2 + $0x140] sm:$0xff] %v1254
        %1319 = vst [vmem:[#allocation2 + $0x148] sm:$0xff] %v1255
        %1320 = vst [vmem:[#allocation2 + $0x150] sm:$0xff] %v1256
        %1321 = vst [vmem:[#allocation2 + $0x158] sm:$0xff] %v1257
        %1322 = vst [vmem:[#allocation2 + $0x160] sm:$0xff] %v1258
        %1323 = vst [vmem:[#allocation2 + $0x168] sm:$0xff] %v1259
        %1324 = vst [vmem:[#allocation2 + $0x170] sm:$0xff] %v1260
        %1325 = vst [vmem:[#allocation2 + $0x178] sm:$0xff] %v1261
        %1326 = vst [vmem:[#allocation2 + $0x180] sm:$0xff] %v1262
        %1327 = vst [vmem:[#allocation2 + $0x188] sm:$0xff] %v1263
        %1328 = vst [vmem:[#allocation2 + $0x190] sm:$0xff] %v1264
        %1329 = vst [vmem:[#allocation2 + $0x198] sm:$0xff] %v1265
        %1330 = vst [vmem:[#allocation2 + $0x1a0] sm:$0xff] %v1266
        %1331 = vst [vmem:[#allocation2 + $0x1a8] sm:$0xff] %v1267
        %1332 = vst [vmem:[#allocation2 + $0x1b0] sm:$0xff] %v1268
        %1333 = vst [vmem:[#allocation2 + $0x1b8] sm:$0xff] %v1269
        %1334 = vst [vmem:[#allocation2 + $0x1c0] sm:$0xff] %v1270
        %1335 = vst [vmem:[#allocation2 + $0x1c8] sm:$0xff] %v1271
        %1336 = vst [vmem:[#allocation2 + $0x1d0] sm:$0xff] %v1272
        %1337 = vst [vmem:[#allocation2 + $0x1d8] sm:$0xff] %v1273
        %1338 = vst [vmem:[#allocation2 + $0x1e0] sm:$0xff] %v1274
        %1339 = vst [vmem:[#allocation2 + $0x1e8] sm:$0xff] %v1275
        %1340 = vst [vmem:[#allocation2 + $0x1f0] sm:$0xff] %v1276
        %1341 = vst [vmem:[#allocation2 + $0x1f8] sm:$0xff] %v1277
        %v1342 = vlaneseq
        %v1343 = vand.u32 %v1342, 127
        %vm1344 = vcmp.lt.s32.totalorder %v1343, 16
        %vm1345 = vcmp.ge.s32.totalorder %v1343, 16
        %vm1346 = vcmp.lt.s32.totalorder %v1343, 32
        %vm1347 = vmand %vm1345, %vm1346
        %v1348 = vld [vmem:[#allocation2] sm:$0xff]
        %v1349 = vld [vmem:[#allocation2 + $0x8] sm:$0xff]
        %v1350 = vld [vmem:[#allocation2 + $0x10] sm:$0xff]
        %v1351 = vld [vmem:[#allocation2 + $0x18] sm:$0xff]
        %v1352 = vld [vmem:[#allocation2 + $0x20] sm:$0xff]
        %v1353 = vld [vmem:[#allocation2 + $0x28] sm:$0xff]
        %v1354 = vld [vmem:[#allocation2 + $0x30] sm:$0xff]
        %v1355 = vld [vmem:[#allocation2 + $0x38] sm:$0xff]
        %v1356 = vld [vmem:[#allocation2 + $0x40] sm:$0xff]
        %v1357 = vld [vmem:[#allocation2 + $0x48] sm:$0xff]
        %v1358 = vld [vmem:[#allocation2 + $0x50] sm:$0xff]
        %v1359 = vld [vmem:[#allocation2 + $0x58] sm:$0xff]
        %v1360 = vld [vmem:[#allocation2 + $0x60] sm:$0xff]
        %v1361 = vld [vmem:[#allocation2 + $0x68] sm:$0xff]
        %v1362 = vld [vmem:[#allocation2 + $0x70] sm:$0xff]
        %v1363 = vld [vmem:[#allocation2 + $0x78] sm:$0xff]
        %s1364 = scalar_lea.vmem [#allocation2], 128
        %v1365 = vld [vmem:[%s1364] sm:$0xff]
        %v1366 = vld [vmem:[%s1364 + $0x8] sm:$0xff]
        %v1367 = vld [vmem:[%s1364 + $0x10] sm:$0xff]
        %v1368 = vld [vmem:[%s1364 + $0x18] sm:$0xff]
        %v1369 = vld [vmem:[%s1364 + $0x20] sm:$0xff]
        %v1370 = vld [vmem:[%s1364 + $0x28] sm:$0xff]
        %v1371 = vld [vmem:[%s1364 + $0x30] sm:$0xff]
        %v1372 = vld [vmem:[%s1364 + $0x38] sm:$0xff]
        %v1373 = vld [vmem:[%s1364 + $0x40] sm:$0xff]
        %v1374 = vld [vmem:[%s1364 + $0x48] sm:$0xff]
        %v1375 = vld [vmem:[%s1364 + $0x50] sm:$0xff]
        %v1376 = vld [vmem:[%s1364 + $0x58] sm:$0xff]
        %v1377 = vld [vmem:[%s1364 + $0x60] sm:$0xff]
        %v1378 = vld [vmem:[%s1364 + $0x68] sm:$0xff]
        %v1379 = vld [vmem:[%s1364 + $0x70] sm:$0xff]
        %v1380 = vld [vmem:[%s1364 + $0x78] sm:$0xff]
        %v1381 = vsel %vm1347, 1, 0
        %vm1382 = vcmp.eq.s32.totalorder %v1381, 1
        %v1383 = vsel %vm1382, 0.0, %v1348
        %v1384 = vsel %vm1382, 0.0, %v1349
        %v1385 = vsel %vm1382, 0.0, %v1350
        %v1386 = vsel %vm1382, 0.0, %v1351
        %v1387 = vsel %vm1382, 0.0, %v1352
        %v1388 = vsel %vm1382, 0.0, %v1353
        %v1389 = vsel %vm1382, 0.0, %v1354
        %v1390 = vsel %vm1382, 0.0, %v1355
        %v1391 = vsel %vm1382, 0.0, %v1356
        %v1392 = vsel %vm1382, 0.0, %v1357
        %v1393 = vsel %vm1382, 0.0, %v1358
        %v1394 = vsel %vm1382, 0.0, %v1359
        %v1395 = vsel %vm1382, 0.0, %v1360
        %v1396 = vsel %vm1382, 0.0, %v1361
        %v1397 = vsel %vm1382, 0.0, %v1362
        %v1398 = vsel %vm1382, 0.0, %v1363
        %v1399 = vsel %vm1344, 1, 0
        %vm1400 = vcmp.eq.s32.totalorder %v1399, 1
        %v1401 = vsel %vm1400, %v1365, %v1383
        %v1402 = vsel %vm1400, %v1366, %v1384
        %v1403 = vsel %vm1400, %v1367, %v1385
        %v1404 = vsel %vm1400, %v1368, %v1386
        %v1405 = vsel %vm1400, %v1369, %v1387
        %v1406 = vsel %vm1400, %v1370, %v1388
        %v1407 = vsel %vm1400, %v1371, %v1389
        %v1408 = vsel %vm1400, %v1372, %v1390
        %v1409 = vsel %vm1400, %v1373, %v1391
        %v1410 = vsel %vm1400, %v1374, %v1392
        %v1411 = vsel %vm1400, %v1375, %v1393
        %v1412 = vsel %vm1400, %v1376, %v1394
        %v1413 = vsel %vm1400, %v1377, %v1395
        %v1414 = vsel %vm1400, %v1378, %v1396
        %v1415 = vsel %vm1400, %v1379, %v1397
        %v1416 = vsel %vm1400, %v1380, %v1398
        %1417 = vst [vmem:[#allocation3] sm:$0xff] %v1401
        %1418 = vst [vmem:[#allocation3 + $0x8] sm:$0xff] %v1402
        %1419 = vst [vmem:[#allocation3 + $0x10] sm:$0xff] %v1403
        %1420 = vst [vmem:[#allocation3 + $0x18] sm:$0xff] %v1404
        %1421 = vst [vmem:[#allocation3 + $0x20] sm:$0xff] %v1405
        %1422 = vst [vmem:[#allocation3 + $0x28] sm:$0xff] %v1406
        %1423 = vst [vmem:[#allocation3 + $0x30] sm:$0xff] %v1407
        %1424 = vst [vmem:[#allocation3 + $0x38] sm:$0xff] %v1408
        %1425 = vst [vmem:[#allocation3 + $0x40] sm:$0xff] %v1409
        %1426 = vst [vmem:[#allocation3 + $0x48] sm:$0xff] %v1410
        %1427 = vst [vmem:[#allocation3 + $0x50] sm:$0xff] %v1411
        %1428 = vst [vmem:[#allocation3 + $0x58] sm:$0xff] %v1412
        %1429 = vst [vmem:[#allocation3 + $0x60] sm:$0xff] %v1413
        %1430 = vst [vmem:[#allocation3 + $0x68] sm:$0xff] %v1414
        %1431 = vst [vmem:[#allocation3 + $0x70] sm:$0xff] %v1415
        %1432 = vst [vmem:[#allocation3 + $0x78] sm:$0xff] %v1416
        %v1433 = vld [vmem:[%s1364] sm:$0xff]
        %v1434 = vld [vmem:[%s1364 + $0x8] sm:$0xff]
        %v1435 = vld [vmem:[%s1364 + $0x10] sm:$0xff]
        %v1436 = vld [vmem:[%s1364 + $0x18] sm:$0xff]
        %v1437 = vld [vmem:[%s1364 + $0x20] sm:$0xff]
        %v1438 = vld [vmem:[%s1364 + $0x28] sm:$0xff]
        %v1439 = vld [vmem:[%s1364 + $0x30] sm:$0xff]
        %v1440 = vld [vmem:[%s1364 + $0x38] sm:$0xff]
        %v1441 = vld [vmem:[%s1364 + $0x40] sm:$0xff]
        %v1442 = vld [vmem:[%s1364 + $0x48] sm:$0xff]
        %v1443 = vld [vmem:[%s1364 + $0x50] sm:$0xff]
        %v1444 = vld [vmem:[%s1364 + $0x58] sm:$0xff]
        %v1445 = vld [vmem:[%s1364 + $0x60] sm:$0xff]
        %v1446 = vld [vmem:[%s1364 + $0x68] sm:$0xff]
        %v1447 = vld [vmem:[%s1364 + $0x70] sm:$0xff]
        %v1448 = vld [vmem:[%s1364 + $0x78] sm:$0xff]
        %s1449 = scalar_lea.vmem [#allocation2], 256
        %v1450 = vld [vmem:[%s1449] sm:$0xff]
        %v1451 = vld [vmem:[%s1449 + $0x8] sm:$0xff]
        %v1452 = vld [vmem:[%s1449 + $0x10] sm:$0xff]
        %v1453 = vld [vmem:[%s1449 + $0x18] sm:$0xff]
        %v1454 = vld [vmem:[%s1449 + $0x20] sm:$0xff]
        %v1455 = vld [vmem:[%s1449 + $0x28] sm:$0xff]
        %v1456 = vld [vmem:[%s1449 + $0x30] sm:$0xff]
        %v1457 = vld [vmem:[%s1449 + $0x38] sm:$0xff]
        %v1458 = vld [vmem:[%s1449 + $0x40] sm:$0xff]
        %v1459 = vld [vmem:[%s1449 + $0x48] sm:$0xff]
        %v1460 = vld [vmem:[%s1449 + $0x50] sm:$0xff]
        %v1461 = vld [vmem:[%s1449 + $0x58] sm:$0xff]
        %v1462 = vld [vmem:[%s1449 + $0x60] sm:$0xff]
        %v1463 = vld [vmem:[%s1449 + $0x68] sm:$0xff]
        %v1464 = vld [vmem:[%s1449 + $0x70] sm:$0xff]
        %v1465 = vld [vmem:[%s1449 + $0x78] sm:$0xff]
        %v1466 = vld [vmem:[#allocation2] sm:$0xff]
        %v1467 = vld [vmem:[#allocation2 + $0x8] sm:$0xff]
        %v1468 = vld [vmem:[#allocation2 + $0x10] sm:$0xff]
        %v1469 = vld [vmem:[#allocation2 + $0x18] sm:$0xff]
        %v1470 = vld [vmem:[#allocation2 + $0x20] sm:$0xff]
        %v1471 = vld [vmem:[#allocation2 + $0x28] sm:$0xff]
        %v1472 = vld [vmem:[#allocation2 + $0x30] sm:$0xff]
        %v1473 = vld [vmem:[#allocation2 + $0x38] sm:$0xff]
        %v1474 = vld [vmem:[#allocation2 + $0x40] sm:$0xff]
        %v1475 = vld [vmem:[#allocation2 + $0x48] sm:$0xff]
        %v1476 = vld [vmem:[#allocation2 + $0x50] sm:$0xff]
        %v1477 = vld [vmem:[#allocation2 + $0x58] sm:$0xff]
        %v1478 = vld [vmem:[#allocation2 + $0x60] sm:$0xff]
        %v1479 = vld [vmem:[#allocation2 + $0x68] sm:$0xff]
        %v1480 = vld [vmem:[#allocation2 + $0x70] sm:$0xff]
        %v1481 = vld [vmem:[#allocation2 + $0x78] sm:$0xff]
        %v1482 = vsel %vm1382, %v1466, %v1433
        %v1483 = vsel %vm1382, %v1467, %v1434
        %v1484 = vsel %vm1382, %v1468, %v1435
        %v1485 = vsel %vm1382, %v1469, %v1436
        %v1486 = vsel %vm1382, %v1470, %v1437
        %v1487 = vsel %vm1382, %v1471, %v1438
        %v1488 = vsel %vm1382, %v1472, %v1439
        %v1489 = vsel %vm1382, %v1473, %v1440
        %v1490 = vsel %vm1382, %v1474, %v1441
        %v1491 = vsel %vm1382, %v1475, %v1442
        %v1492 = vsel %vm1382, %v1476, %v1443
        %v1493 = vsel %vm1382, %v1477, %v1444
        %v1494 = vsel %vm1382, %v1478, %v1445
        %v1495 = vsel %vm1382, %v1479, %v1446
        %v1496 = vsel %vm1382, %v1480, %v1447
        %v1497 = vsel %vm1382, %v1481, %v1448
        %v1498 = vsel %vm1400, %v1450, %v1482
        %v1499 = vsel %vm1400, %v1451, %v1483
        %v1500 = vsel %vm1400, %v1452, %v1484
        %v1501 = vsel %vm1400, %v1453, %v1485
        %v1502 = vsel %vm1400, %v1454, %v1486
        %v1503 = vsel %vm1400, %v1455, %v1487
        %v1504 = vsel %vm1400, %v1456, %v1488
        %v1505 = vsel %vm1400, %v1457, %v1489
        %v1506 = vsel %vm1400, %v1458, %v1490
        %v1507 = vsel %vm1400, %v1459, %v1491
        %v1508 = vsel %vm1400, %v1460, %v1492
        %v1509 = vsel %vm1400, %v1461, %v1493
        %v1510 = vsel %vm1400, %v1462, %v1494
        %v1511 = vsel %vm1400, %v1463, %v1495
        %v1512 = vsel %vm1400, %v1464, %v1496
        %v1513 = vsel %vm1400, %v1465, %v1497
        %s1514 = scalar_lea.vmem [#allocation3], 128
        %1515 = vst [vmem:[%s1514] sm:$0xff] %v1498
        %1516 = vst [vmem:[%s1514 + $0x8] sm:$0xff] %v1499
        %1517 = vst [vmem:[%s1514 + $0x10] sm:$0xff] %v1500
        %1518 = vst [vmem:[%s1514 + $0x18] sm:$0xff] %v1501
        %1519 = vst [vmem:[%s1514 + $0x20] sm:$0xff] %v1502
        %1520 = vst [vmem:[%s1514 + $0x28] sm:$0xff] %v1503
        %1521 = vst [vmem:[%s1514 + $0x30] sm:$0xff] %v1504
        %1522 = vst [vmem:[%s1514 + $0x38] sm:$0xff] %v1505
        %1523 = vst [vmem:[%s1514 + $0x40] sm:$0xff] %v1506
        %1524 = vst [vmem:[%s1514 + $0x48] sm:$0xff] %v1507
        %1525 = vst [vmem:[%s1514 + $0x50] sm:$0xff] %v1508
        %1526 = vst [vmem:[%s1514 + $0x58] sm:$0xff] %v1509
        %1527 = vst [vmem:[%s1514 + $0x60] sm:$0xff] %v1510
        %1528 = vst [vmem:[%s1514 + $0x68] sm:$0xff] %v1511
        %1529 = vst [vmem:[%s1514 + $0x70] sm:$0xff] %v1512
        %1530 = vst [vmem:[%s1514 + $0x78] sm:$0xff] %v1513
        %v1531 = vld [vmem:[%s1449] sm:$0xff]
        %v1532 = vld [vmem:[%s1449 + $0x8] sm:$0xff]
        %v1533 = vld [vmem:[%s1449 + $0x10] sm:$0xff]
        %v1534 = vld [vmem:[%s1449 + $0x18] sm:$0xff]
        %v1535 = vld [vmem:[%s1449 + $0x20] sm:$0xff]
        %v1536 = vld [vmem:[%s1449 + $0x28] sm:$0xff]
        %v1537 = vld [vmem:[%s1449 + $0x30] sm:$0xff]
        %v1538 = vld [vmem:[%s1449 + $0x38] sm:$0xff]
        %v1539 = vld [vmem:[%s1449 + $0x40] sm:$0xff]
        %v1540 = vld [vmem:[%s1449 + $0x48] sm:$0xff]
        %v1541 = vld [vmem:[%s1449 + $0x50] sm:$0xff]
        %v1542 = vld [vmem:[%s1449 + $0x58] sm:$0xff]
        %v1543 = vld [vmem:[%s1449 + $0x60] sm:$0xff]
        %v1544 = vld [vmem:[%s1449 + $0x68] sm:$0xff]
        %v1545 = vld [vmem:[%s1449 + $0x70] sm:$0xff]
        %v1546 = vld [vmem:[%s1449 + $0x78] sm:$0xff]
        %s1547 = scalar_lea.vmem [#allocation2], 384
        %v1548 = vld [vmem:[%s1547] sm:$0xff]
        %v1549 = vld [vmem:[%s1547 + $0x8] sm:$0xff]
        %v1550 = vld [vmem:[%s1547 + $0x10] sm:$0xff]
        %v1551 = vld [vmem:[%s1547 + $0x18] sm:$0xff]
        %v1552 = vld [vmem:[%s1547 + $0x20] sm:$0xff]
        %v1553 = vld [vmem:[%s1547 + $0x28] sm:$0xff]
        %v1554 = vld [vmem:[%s1547 + $0x30] sm:$0xff]
        %v1555 = vld [vmem:[%s1547 + $0x38] sm:$0xff]
        %v1556 = vld [vmem:[%s1547 + $0x40] sm:$0xff]
        %v1557 = vld [vmem:[%s1547 + $0x48] sm:$0xff]
        %v1558 = vld [vmem:[%s1547 + $0x50] sm:$0xff]
        %v1559 = vld [vmem:[%s1547 + $0x58] sm:$0xff]
        %v1560 = vld [vmem:[%s1547 + $0x60] sm:$0xff]
        %v1561 = vld [vmem:[%s1547 + $0x68] sm:$0xff]
        %v1562 = vld [vmem:[%s1547 + $0x70] sm:$0xff]
        %v1563 = vld [vmem:[%s1547 + $0x78] sm:$0xff]
        %v1564 = vld [vmem:[%s1364] sm:$0xff]
        %v1565 = vld [vmem:[%s1364 + $0x8] sm:$0xff]
        %v1566 = vld [vmem:[%s1364 + $0x10] sm:$0xff]
        %v1567 = vld [vmem:[%s1364 + $0x18] sm:$0xff]
        %v1568 = vld [vmem:[%s1364 + $0x20] sm:$0xff]
        %v1569 = vld [vmem:[%s1364 + $0x28] sm:$0xff]
        %v1570 = vld [vmem:[%s1364 + $0x30] sm:$0xff]
        %v1571 = vld [vmem:[%s1364 + $0x38] sm:$0xff]
        %v1572 = vld [vmem:[%s1364 + $0x40] sm:$0xff]
        %v1573 = vld [vmem:[%s1364 + $0x48] sm:$0xff]
        %v1574 = vld [vmem:[%s1364 + $0x50] sm:$0xff]
        %v1575 = vld [vmem:[%s1364 + $0x58] sm:$0xff]
        %v1576 = vld [vmem:[%s1364 + $0x60] sm:$0xff]
        %v1577 = vld [vmem:[%s1364 + $0x68] sm:$0xff]
        %v1578 = vld [vmem:[%s1364 + $0x70] sm:$0xff]
        %v1579 = vld [vmem:[%s1364 + $0x78] sm:$0xff]
        %v1580 = vsel %vm1382, %v1564, %v1531
        %v1581 = vsel %vm1382, %v1565, %v1532
        %v1582 = vsel %vm1382, %v1566, %v1533
        %v1583 = vsel %vm1382, %v1567, %v1534
        %v1584 = vsel %vm1382, %v1568, %v1535
        %v1585 = vsel %vm1382, %v1569, %v1536
        %v1586 = vsel %vm1382, %v1570, %v1537
        %v1587 = vsel %vm1382, %v1571, %v1538
        %v1588 = vsel %vm1382, %v1572, %v1539
        %v1589 = vsel %vm1382, %v1573, %v1540
        %v1590 = vsel %vm1382, %v1574, %v1541
        %v1591 = vsel %vm1382, %v1575, %v1542
        %v1592 = vsel %vm1382, %v1576, %v1543
        %v1593 = vsel %vm1382, %v1577, %v1544
        %v1594 = vsel %vm1382, %v1578, %v1545
        %v1595 = vsel %vm1382, %v1579, %v1546
        %v1596 = vsel %vm1400, %v1548, %v1580
        %v1597 = vsel %vm1400, %v1549, %v1581
        %v1598 = vsel %vm1400, %v1550, %v1582
        %v1599 = vsel %vm1400, %v1551, %v1583
        %v1600 = vsel %vm1400, %v1552, %v1584
        %v1601 = vsel %vm1400, %v1553, %v1585
        %v1602 = vsel %vm1400, %v1554, %v1586
        %v1603 = vsel %vm1400, %v1555, %v1587
        %v1604 = vsel %vm1400, %v1556, %v1588
        %v1605 = vsel %vm1400, %v1557, %v1589
        %v1606 = vsel %vm1400, %v1558, %v1590
        %v1607 = vsel %vm1400, %v1559, %v1591
        %v1608 = vsel %vm1400, %v1560, %v1592
        %v1609 = vsel %vm1400, %v1561, %v1593
        %v1610 = vsel %vm1400, %v1562, %v1594
        %v1611 = vsel %vm1400, %v1563, %v1595
        %s1612 = scalar_lea.vmem [#allocation3], 256
        %1613 = vst [vmem:[%s1612] sm:$0xff] %v1596
        %1614 = vst [vmem:[%s1612 + $0x8] sm:$0xff] %v1597
        %1615 = vst [vmem:[%s1612 + $0x10] sm:$0xff] %v1598
        %1616 = vst [vmem:[%s1612 + $0x18] sm:$0xff] %v1599
        %1617 = vst [vmem:[%s1612 + $0x20] sm:$0xff] %v1600
        %1618 = vst [vmem:[%s1612 + $0x28] sm:$0xff] %v1601
        %1619 = vst [vmem:[%s1612 + $0x30] sm:$0xff] %v1602
        %1620 = vst [vmem:[%s1612 + $0x38] sm:$0xff] %v1603
        %1621 = vst [vmem:[%s1612 + $0x40] sm:$0xff] %v1604
        %1622 = vst [vmem:[%s1612 + $0x48] sm:$0xff] %v1605
        %1623 = vst [vmem:[%s1612 + $0x50] sm:$0xff] %v1606
        %1624 = vst [vmem:[%s1612 + $0x58] sm:$0xff] %v1607
        %1625 = vst [vmem:[%s1612 + $0x60] sm:$0xff] %v1608
        %1626 = vst [vmem:[%s1612 + $0x68] sm:$0xff] %v1609
        %1627 = vst [vmem:[%s1612 + $0x70] sm:$0xff] %v1610
        %1628 = vst [vmem:[%s1612 + $0x78] sm:$0xff] %v1611
        %v1629 = vld [vmem:[%s1547] sm:$0xff]
        %v1630 = vld [vmem:[%s1547 + $0x8] sm:$0xff]
        %v1631 = vld [vmem:[%s1547 + $0x10] sm:$0xff]
        %v1632 = vld [vmem:[%s1547 + $0x18] sm:$0xff]
        %v1633 = vld [vmem:[%s1547 + $0x20] sm:$0xff]
        %v1634 = vld [vmem:[%s1547 + $0x28] sm:$0xff]
        %v1635 = vld [vmem:[%s1547 + $0x30] sm:$0xff]
        %v1636 = vld [vmem:[%s1547 + $0x38] sm:$0xff]
        %v1637 = vld [vmem:[%s1547 + $0x40] sm:$0xff]
        %v1638 = vld [vmem:[%s1547 + $0x48] sm:$0xff]
        %v1639 = vld [vmem:[%s1547 + $0x50] sm:$0xff]
        %v1640 = vld [vmem:[%s1547 + $0x58] sm:$0xff]
        %v1641 = vld [vmem:[%s1547 + $0x60] sm:$0xff]
        %v1642 = vld [vmem:[%s1547 + $0x68] sm:$0xff]
        %v1643 = vld [vmem:[%s1547 + $0x70] sm:$0xff]
        %v1644 = vld [vmem:[%s1547 + $0x78] sm:$0xff]
        %v1645 = vld [vmem:[%s1449] sm:$0xff]
        %v1646 = vld [vmem:[%s1449 + $0x8] sm:$0xff]
        %v1647 = vld [vmem:[%s1449 + $0x10] sm:$0xff]
        %v1648 = vld [vmem:[%s1449 + $0x18] sm:$0xff]
        %v1649 = vld [vmem:[%s1449 + $0x20] sm:$0xff]
        %v1650 = vld [vmem:[%s1449 + $0x28] sm:$0xff]
        %v1651 = vld [vmem:[%s1449 + $0x30] sm:$0xff]
        %v1652 = vld [vmem:[%s1449 + $0x38] sm:$0xff]
        %v1653 = vld [vmem:[%s1449 + $0x40] sm:$0xff]
        %v1654 = vld [vmem:[%s1449 + $0x48] sm:$0xff]
        %v1655 = vld [vmem:[%s1449 + $0x50] sm:$0xff]
        %v1656 = vld [vmem:[%s1449 + $0x58] sm:$0xff]
        %v1657 = vld [vmem:[%s1449 + $0x60] sm:$0xff]
        %v1658 = vld [vmem:[%s1449 + $0x68] sm:$0xff]
        %v1659 = vld [vmem:[%s1449 + $0x70] sm:$0xff]
        %v1660 = vld [vmem:[%s1449 + $0x78] sm:$0xff]
        %v1661 = vsel %vm1382, %v1645, %v1629
        %v1662 = vsel %vm1382, %v1646, %v1630
        %v1663 = vsel %vm1382, %v1647, %v1631
        %v1664 = vsel %vm1382, %v1648, %v1632
        %v1665 = vsel %vm1382, %v1649, %v1633
        %v1666 = vsel %vm1382, %v1650, %v1634
        %v1667 = vsel %vm1382, %v1651, %v1635
        %v1668 = vsel %vm1382, %v1652, %v1636
        %v1669 = vsel %vm1382, %v1653, %v1637
        %v1670 = vsel %vm1382, %v1654, %v1638
        %v1671 = vsel %vm1382, %v1655, %v1639
        %v1672 = vsel %vm1382, %v1656, %v1640
        %v1673 = vsel %vm1382, %v1657, %v1641
        %v1674 = vsel %vm1382, %v1658, %v1642
        %v1675 = vsel %vm1382, %v1659, %v1643
        %v1676 = vsel %vm1382, %v1660, %v1644
        %v1677 = vsel %vm1400, 0.0, %v1661
        %v1678 = vsel %vm1400, 0.0, %v1662
        %v1679 = vsel %vm1400, 0.0, %v1663
        %v1680 = vsel %vm1400, 0.0, %v1664
        %v1681 = vsel %vm1400, 0.0, %v1665
        %v1682 = vsel %vm1400, 0.0, %v1666
        %v1683 = vsel %vm1400, 0.0, %v1667
        %v1684 = vsel %vm1400, 0.0, %v1668
        %v1685 = vsel %vm1400, 0.0, %v1669
        %v1686 = vsel %vm1400, 0.0, %v1670
        %v1687 = vsel %vm1400, 0.0, %v1671
        %v1688 = vsel %vm1400, 0.0, %v1672
        %v1689 = vsel %vm1400, 0.0, %v1673
        %v1690 = vsel %vm1400, 0.0, %v1674
        %v1691 = vsel %vm1400, 0.0, %v1675
        %v1692 = vsel %vm1400, 0.0, %v1676
        %s1693 = scalar_lea.vmem [#allocation3], 384
        %1694 = vst [vmem:[%s1693] sm:$0xff] %v1677
        %1695 = vst [vmem:[%s1693 + $0x8] sm:$0xff] %v1678
        %1696 = vst [vmem:[%s1693 + $0x10] sm:$0xff] %v1679
        %1697 = vst [vmem:[%s1693 + $0x18] sm:$0xff] %v1680
        %1698 = vst [vmem:[%s1693 + $0x20] sm:$0xff] %v1681
        %1699 = vst [vmem:[%s1693 + $0x28] sm:$0xff] %v1682
        %1700 = vst [vmem:[%s1693 + $0x30] sm:$0xff] %v1683
        %1701 = vst [vmem:[%s1693 + $0x38] sm:$0xff] %v1684
        %1702 = vst [vmem:[%s1693 + $0x40] sm:$0xff] %v1685
        %1703 = vst [vmem:[%s1693 + $0x48] sm:$0xff] %v1686
        %1704 = vst [vmem:[%s1693 + $0x50] sm:$0xff] %v1687
        %1705 = vst [vmem:[%s1693 + $0x58] sm:$0xff] %v1688
        %1706 = vst [vmem:[%s1693 + $0x60] sm:$0xff] %v1689
        %1707 = vst [vmem:[%s1693 + $0x68] sm:$0xff] %v1690
        %1708 = vst [vmem:[%s1693 + $0x70] sm:$0xff] %v1691
        %1709 = vst [vmem:[%s1693 + $0x78] sm:$0xff] %v1692
        %v1710 = vld [vmem:[#allocation3] sm:$0xff]
        %v1711 = vld [vmem:[#allocation3 + $0x8] sm:$0xff]
        %v1712 = vld [vmem:[#allocation3 + $0x10] sm:$0xff]
        %v1713 = vld [vmem:[#allocation3 + $0x18] sm:$0xff]
        %v1714 = vld [vmem:[#allocation3 + $0x20] sm:$0xff]
        %v1715 = vld [vmem:[#allocation3 + $0x28] sm:$0xff]
        %v1716 = vld [vmem:[#allocation3 + $0x30] sm:$0xff]
        %v1717 = vld [vmem:[#allocation3 + $0x38] sm:$0xff]
        %v1718 = vld [vmem:[#allocation3 + $0x40] sm:$0xff]
        %v1719 = vld [vmem:[#allocation3 + $0x48] sm:$0xff]
        %v1720 = vld [vmem:[#allocation3 + $0x50] sm:$0xff]
        %v1721 = vld [vmem:[#allocation3 + $0x58] sm:$0xff]
        %v1722 = vld [vmem:[#allocation3 + $0x60] sm:$0xff]
        %v1723 = vld [vmem:[#allocation3 + $0x68] sm:$0xff]
        %v1724 = vld [vmem:[#allocation3 + $0x70] sm:$0xff]
        %v1725 = vld [vmem:[#allocation3 + $0x78] sm:$0xff]
        %v1726 = vld [vmem:[#allocation3 + $0x80] sm:$0xff]
        %v1727 = vld [vmem:[#allocation3 + $0x88] sm:$0xff]
        %v1728 = vld [vmem:[#allocation3 + $0x90] sm:$0xff]
        %v1729 = vld [vmem:[#allocation3 + $0x98] sm:$0xff]
        %v1730 = vld [vmem:[#allocation3 + $0xa0] sm:$0xff]
        %v1731 = vld [vmem:[#allocation3 + $0xa8] sm:$0xff]
        %v1732 = vld [vmem:[#allocation3 + $0xb0] sm:$0xff]
        %v1733 = vld [vmem:[#allocation3 + $0xb8] sm:$0xff]
        %v1734 = vld [vmem:[#allocation3 + $0xc0] sm:$0xff]
        %v1735 = vld [vmem:[#allocation3 + $0xc8] sm:$0xff]
        %v1736 = vld [vmem:[#allocation3 + $0xd0] sm:$0xff]
        %v1737 = vld [vmem:[#allocation3 + $0xd8] sm:$0xff]
        %v1738 = vld [vmem:[#allocation3 + $0xe0] sm:$0xff]
        %v1739 = vld [vmem:[#allocation3 + $0xe8] sm:$0xff]
        %v1740 = vld [vmem:[#allocation3 + $0xf0] sm:$0xff]
        %v1741 = vld [vmem:[#allocation3 + $0xf8] sm:$0xff]
        %v1742 = vld [vmem:[#allocation3 + $0x100] sm:$0xff]
        %v1743 = vld [vmem:[#allocation3 + $0x108] sm:$0xff]
        %v1744 = vld [vmem:[#allocation3 + $0x110] sm:$0xff]
        %v1745 = vld [vmem:[#allocation3 + $0x118] sm:$0xff]
        %v1746 = vld [vmem:[#allocation3 + $0x120] sm:$0xff]
        %v1747 = vld [vmem:[#allocation3 + $0x128] sm:$0xff]
        %v1748 = vld [vmem:[#allocation3 + $0x130] sm:$0xff]
        %v1749 = vld [vmem:[#allocation3 + $0x138] sm:$0xff]
        %v1750 = vld [vmem:[#allocation3 + $0x140] sm:$0xff]
        %v1751 = vld [vmem:[#allocation3 + $0x148] sm:$0xff]
        %v1752 = vld [vmem:[#allocation3 + $0x150] sm:$0xff]
        %v1753 = vld [vmem:[#allocation3 + $0x158] sm:$0xff]
        %v1754 = vld [vmem:[#allocation3 + $0x160] sm:$0xff]
        %v1755 = vld [vmem:[#allocation3 + $0x168] sm:$0xff]
        %v1756 = vld [vmem:[#allocation3 + $0x170] sm:$0xff]
        %v1757 = vld [vmem:[#allocation3 + $0x178] sm:$0xff]
        %v1758 = vld [vmem:[#allocation3 + $0x180] sm:$0xff]
        %v1759 = vld [vmem:[#allocation3 + $0x188] sm:$0xff]
        %v1760 = vld [vmem:[#allocation3 + $0x190] sm:$0xff]
        %v1761 = vld [vmem:[#allocation3 + $0x198] sm:$0xff]
        %v1762 = vld [vmem:[#allocation3 + $0x1a0] sm:$0xff]
        %v1763 = vld [vmem:[#allocation3 + $0x1a8] sm:$0xff]
        %v1764 = vld [vmem:[#allocation3 + $0x1b0] sm:$0xff]
        %v1765 = vld [vmem:[#allocation3 + $0x1b8] sm:$0xff]
        %v1766 = vld [vmem:[#allocation3 + $0x1c0] sm:$0xff]
        %v1767 = vld [vmem:[#allocation3 + $0x1c8] sm:$0xff]
        %v1768 = vld [vmem:[#allocation3 + $0x1d0] sm:$0xff]
        %v1769 = vld [vmem:[#allocation3 + $0x1d8] sm:$0xff]
        %v1770 = vld [vmem:[#allocation3 + $0x1e0] sm:$0xff]
        %v1771 = vld [vmem:[#allocation3 + $0x1e8] sm:$0xff]
        %v1772 = vld [vmem:[#allocation3 + $0x1f0] sm:$0xff]
        %v1773 = vld [vmem:[#allocation3 + $0x1f8] sm:$0xff]
        %v1774 = vpack.c.bf16 %v1711, %v1710
        %v1775 = vpack.c.bf16 %v1713, %v1712
        %v1776 = vpack.c.bf16 %v1715, %v1714
        %v1777 = vpack.c.bf16 %v1717, %v1716
        %v1778 = vpack.c.bf16 %v1719, %v1718
        %v1779 = vpack.c.bf16 %v1721, %v1720
        %v1780 = vpack.c.bf16 %v1723, %v1722
        %v1781 = vpack.c.bf16 %v1725, %v1724
        %v1782 = vpack.c.bf16 %v1727, %v1726
        %v1783 = vpack.c.bf16 %v1729, %v1728
        %v1784 = vpack.c.bf16 %v1731, %v1730
        %v1785 = vpack.c.bf16 %v1733, %v1732
        %v1786 = vpack.c.bf16 %v1735, %v1734
        %v1787 = vpack.c.bf16 %v1737, %v1736
        %v1788 = vpack.c.bf16 %v1739, %v1738
        %v1789 = vpack.c.bf16 %v1741, %v1740
        %v1790 = vpack.c.bf16 %v1743, %v1742
        %v1791 = vpack.c.bf16 %v1745, %v1744
        %v1792 = vpack.c.bf16 %v1747, %v1746
        %v1793 = vpack.c.bf16 %v1749, %v1748
        %v1794 = vpack.c.bf16 %v1751, %v1750
        %v1795 = vpack.c.bf16 %v1753, %v1752
        %v1796 = vpack.c.bf16 %v1755, %v1754
        %v1797 = vpack.c.bf16 %v1757, %v1756
        %v1798 = vpack.c.bf16 %v1759, %v1758
        %v1799 = vpack.c.bf16 %v1761, %v1760
        %v1800 = vpack.c.bf16 %v1763, %v1762
        %v1801 = vpack.c.bf16 %v1765, %v1764
        %v1802 = vpack.c.bf16 %v1767, %v1766
        %v1803 = vpack.c.bf16 %v1769, %v1768
        %v1804 = vpack.c.bf16 %v1771, %v1770
        %v1805 = vpack.c.bf16 %v1773, %v1772
        %v1806 = vld [vmem:[%s3] sm:$0xf]
        %v1807 = vld [vmem:[%s3 + $0x4] sm:$0xf]
        %v1808 = vld [vmem:[%s3 + $0x8] sm:$0xf]
        %v1809 = vld [vmem:[%s3 + $0xc] sm:$0xf]
        %v1810 = vld [vmem:[%s3 + $0x10] sm:$0xf]
        %v1811 = vld [vmem:[%s3 + $0x14] sm:$0xf]
        %v1812 = vld [vmem:[%s3 + $0x18] sm:$0xf]
        %v1813 = vld [vmem:[%s3 + $0x1c] sm:$0xf]
        %v1814 = vld [vmem:[%s3 + $0x20] sm:$0xf]
        %v1815 = vld [vmem:[%s3 + $0x24] sm:$0xf]
        %v1816 = vld [vmem:[%s3 + $0x28] sm:$0xf]
        %v1817 = vld [vmem:[%s3 + $0x2c] sm:$0xf]
        %v1818 = vld [vmem:[%s3 + $0x30] sm:$0xf]
        %v1819 = vld [vmem:[%s3 + $0x34] sm:$0xf]
        %v1820 = vld [vmem:[%s3 + $0x38] sm:$0xf]
        %v1821 = vld [vmem:[%s3 + $0x3c] sm:$0xf]
        %v1822 = vld [vmem:[%s4] sm:$0x1]
        %v1824 = vlaneseq
        %v1825 = vshrl.u32 %v1824, 7
        %v1826 = vsub.s32 0, %v1825
        %v1827 = vrot.slane %v1822, %v1826
        %v1845 = vunpack.c.l.b16 %v1806
        %v1846 = vunpack.c.l.b16 %v1807
        %v1847 = vunpack.c.l.b16 %v1808
        %v1848 = vunpack.c.l.b16 %v1809
        %v1849 = vunpack.c.l.b16 %v1810
        %v1850 = vunpack.c.l.b16 %v1811
        %v1851 = vunpack.c.l.b16 %v1812
        %v1852 = vunpack.c.l.b16 %v1813
        %v1853 = vunpack.c.l.b16 %v1814
        %v1854 = vunpack.c.l.b16 %v1815
        %v1855 = vunpack.c.l.b16 %v1816
        %v1856 = vunpack.c.l.b16 %v1817
        %v1857 = vunpack.c.l.b16 %v1818
        %v1858 = vunpack.c.l.b16 %v1819
        %v1859 = vunpack.c.l.b16 %v1820
        %v1860 = vunpack.c.l.b16 %v1821
        %v1861 = vpack.c.b16 %v1846, %v1845
        %v1862 = vpack.c.b16 %v1848, %v1847
        %v1863 = vpack.c.b16 %v1850, %v1849
        %v1864 = vpack.c.b16 %v1852, %v1851
        %v1865 = vpack.c.b16 %v1854, %v1853
        %v1866 = vpack.c.b16 %v1856, %v1855
        %v1867 = vpack.c.b16 %v1858, %v1857
        %v1868 = vpack.c.b16 %v1860, %v1859
        %1877 = vmatprep.subr.bf16.mxu0 0
        %1878 = vmatpush1.bf16.msra.mxu0 %v1861
        %1879 = vmatprep.subr.bf16.mxu0 0
        %1880 = vmatpush1.bf16.msra.mxu0 %v1862
        %1881 = vmatprep.subr.bf16.mxu0 0
        %1882 = vmatpush1.bf16.msra.mxu0 %v1863
        %1883 = vmatprep.subr.bf16.mxu0 0
        %1884 = vmatpush1.bf16.msra.mxu0 %v1864
        %1885 = vmatprep.subr.bf16.mxu0 0
        %1886 = vmatpush1.bf16.msra.mxu0 %v1865
        %1887 = vmatprep.subr.bf16.mxu0 0
        %1888 = vmatpush1.bf16.msra.mxu0 %v1866
        %1889 = vmatprep.subr.bf16.mxu0 0
        %1890 = vmatpush1.bf16.msra.mxu0 %v1867
        %1891 = vmatprep.subr.bf16.mxu0 0
        %1892 = vmatpush1.bf16.msra.mxu0 %v1868
        %1893 = vmatprep.subr.bf16.mxu0 0
        %1894 = vmatpush1.bf16.msra.mxu0 0
        %1895 = vmatprep.subr.bf16.mxu0 0
        %1896 = vmatpush1.bf16.msra.mxu0 0
        %1897 = vmatprep.subr.bf16.mxu0 0
        %1898 = vmatpush1.bf16.msra.mxu0 0
        %1899 = vmatprep.subr.bf16.mxu0 0
        %1900 = vmatpush1.bf16.msra.mxu0 0
        %1901 = vmatprep.subr.bf16.mxu0 0
        %1902 = vmatpush1.bf16.msra.mxu0 0
        %1903 = vmatprep.subr.bf16.mxu0 0
        %1904 = vmatpush1.bf16.msra.mxu0 0
        %1905 = vmatprep.subr.bf16.mxu0 0
        %1906 = vmatpush1.bf16.msra.mxu0 0
        %1907 = vmatprep.subr.bf16.mxu0 0
        %1908 = vmatpush1.bf16.msra.mxu0 0
        %1909 = vmatprep.mubr.bf16.mxu0 0
        %1910 = vmatmul.mubr.bf16.gmra.mrb[0].mxu0 %v1774
        %v1911 = vpop.f32.mrb[0].mxu0
        %v1912 = vadd.f32 %v1827, %v1911
        %v1913 = vpop.f32.mrb[0].mxu0
        %v1914 = vpop.f32.mrb[0].mxu0
        %v1915 = vadd.f32 %v1827, %v1914
        %v1916 = vpop.f32.mrb[0].mxu0
        %1917 = vmatprep.mubr.bf16.mxu0 0
        %1918 = vmatmul.mubr.bf16.gmra.mrb[0].mxu0 %v1775
        %v1919 = vpop.f32.mrb[0].mxu0
        %v1920 = vadd.f32 %v1827, %v1919
        %v1921 = vpop.f32.mrb[0].mxu0
        %v1922 = vpop.f32.mrb[0].mxu0
        %v1923 = vadd.f32 %v1827, %v1922
        %v1924 = vpop.f32.mrb[0].mxu0
        %1925 = vmatprep.mubr.bf16.mxu0 0
        %1926 = vmatmul.mubr.bf16.gmra.mrb[0].mxu0 %v1776
        %v1927 = vpop.f32.mrb[0].mxu0
        %v1928 = vadd.f32 %v1827, %v1927
        %v1929 = vpop.f32.mrb[0].mxu0
        %v1930 = vpop.f32.mrb[0].mxu0
        %v1931 = vadd.f32 %v1827, %v1930
        %v1932 = vpop.f32.mrb[0].mxu0
        %1933 = vmatprep.mubr.bf16.mxu0 0
        %1934 = vmatmul.mubr.bf16.gmra.mrb[0].mxu0 %v1777
        %v1935 = vpop.f32.mrb[0].mxu0
        %v1936 = vadd.f32 %v1827, %v1935
        %v1937 = vpop.f32.mrb[0].mxu0
        %v1938 = vpop.f32.mrb[0].mxu0
        %v1939 = vadd.f32 %v1827, %v1938
        %v1940 = vpop.f32.mrb[0].mxu0
        %1941 = vmatprep.mubr.bf16.mxu0 0
        %1942 = vmatmul.mubr.bf16.gmra.mrb[0].mxu0 %v1778
        %v1943 = vpop.f32.mrb[0].mxu0
        %v1944 = vadd.f32 %v1827, %v1943
        %v1945 = vpop.f32.mrb[0].mxu0
        %v1946 = vpop.f32.mrb[0].mxu0
        %v1947 = vadd.f32 %v1827, %v1946
        %v1948 = vpop.f32.mrb[0].mxu0
        %1949 = vmatprep.mubr.bf16.mxu0 0
        %1950 = vmatmul.mubr.bf16.gmra.mrb[0].mxu0 %v1779
        %v1951 = vpop.f32.mrb[0].mxu0
        %v1952 = vadd.f32 %v1827, %v1951
        %v1953 = vpop.f32.mrb[0].mxu0
        %v1954 = vpop.f32.mrb[0].mxu0
        %v1955 = vadd.f32 %v1827, %v1954
        %v1956 = vpop.f32.mrb[0].mxu0
        %1957 = vmatprep.mubr.bf16.mxu0 0
        %1958 = vmatmul.mubr.bf16.gmra.mrb[0].mxu0 %v1780
        %v1959 = vpop.f32.mrb[0].mxu0
        %v1960 = vadd.f32 %v1827, %v1959
        %v1961 = vpop.f32.mrb[0].mxu0
        %v1962 = vpop.f32.mrb[0].mxu0
        %v1963 = vadd.f32 %v1827, %v1962
        %v1964 = vpop.f32.mrb[0].mxu0
        %1965 = vmatprep.mubr.bf16.mxu0 0
        %1966 = vmatmul.mubr.bf16.gmra.mrb[0].mxu0 %v1781
        %v1967 = vpop.f32.mrb[0].mxu0
        %v1968 = vadd.f32 %v1827, %v1967
        %v1969 = vpop.f32.mrb[0].mxu0
        %v1970 = vpop.f32.mrb[0].mxu0
        %v1971 = vadd.f32 %v1827, %v1970
        %v1972 = vpop.f32.mrb[0].mxu0
        %1973 = vmatprep.mubr.bf16.mxu0 0
        %1974 = vmatmul.mubr.bf16.gmra.mrb[0].mxu0 %v1782
        %v1975 = vpop.f32.mrb[0].mxu0
        %v1976 = vadd.f32 %v1827, %v1975
        %v1977 = vpop.f32.mrb[0].mxu0
        %v1978 = vpop.f32.mrb[0].mxu0
        %v1979 = vadd.f32 %v1827, %v1978
        %v1980 = vpop.f32.mrb[0].mxu0
        %1981 = vmatprep.mubr.bf16.mxu0 0
        %1982 = vmatmul.mubr.bf16.gmra.mrb[0].mxu0 %v1783
        %v1983 = vpop.f32.mrb[0].mxu0
        %v1984 = vadd.f32 %v1827, %v1983
        %v1985 = vpop.f32.mrb[0].mxu0
        %v1986 = vpop.f32.mrb[0].mxu0
        %v1987 = vadd.f32 %v1827, %v1986
        %v1988 = vpop.f32.mrb[0].mxu0
        %1989 = vmatprep.mubr.bf16.mxu0 0
        %1990 = vmatmul.mubr.bf16.gmra.mrb[0].mxu0 %v1784
        %v1991 = vpop.f32.mrb[0].mxu0
        %v1992 = vadd.f32 %v1827, %v1991
        %v1993 = vpop.f32.mrb[0].mxu0
        %v1994 = vpop.f32.mrb[0].mxu0
        %v1995 = vadd.f32 %v1827, %v1994
        %v1996 = vpop.f32.mrb[0].mxu0
        %1997 = vmatprep.mubr.bf16.mxu0 0
        %1998 = vmatmul.mubr.bf16.gmra.mrb[0].mxu0 %v1785
        %v1999 = vpop.f32.mrb[0].mxu0
        %v2000 = vadd.f32 %v1827, %v1999
        %v2001 = vpop.f32.mrb[0].mxu0
        %v2002 = vpop.f32.mrb[0].mxu0
        %v2003 = vadd.f32 %v1827, %v2002
        %v2004 = vpop.f32.mrb[0].mxu0
        %2005 = vmatprep.mubr.bf16.mxu0 0
        %2006 = vmatmul.mubr.bf16.gmra.mrb[0].mxu0 %v1786
        %v2007 = vpop.f32.mrb[0].mxu0
        %v2008 = vadd.f32 %v1827, %v2007
        %v2009 = vpop.f32.mrb[0].mxu0
        %v2010 = vpop.f32.mrb[0].mxu0
        %v2011 = vadd.f32 %v1827, %v2010
        %v2012 = vpop.f32.mrb[0].mxu0
        %2013 = vmatprep.mubr.bf16.mxu0 0
        %2014 = vmatmul.mubr.bf16.gmra.mrb[0].mxu0 %v1787
        %v2015 = vpop.f32.mrb[0].mxu0
        %v2016 = vadd.f32 %v1827, %v2015
        %v2017 = vpop.f32.mrb[0].mxu0
        %v2018 = vpop.f32.mrb[0].mxu0
        %v2019 = vadd.f32 %v1827, %v2018
        %v2020 = vpop.f32.mrb[0].mxu0
        %2021 = vmatprep.mubr.bf16.mxu0 0
        %2022 = vmatmul.mubr.bf16.gmra.mrb[0].mxu0 %v1788
        %v2023 = vpop.f32.mrb[0].mxu0
        %v2024 = vadd.f32 %v1827, %v2023
        %v2025 = vpop.f32.mrb[0].mxu0
        %v2026 = vpop.f32.mrb[0].mxu0
        %v2027 = vadd.f32 %v1827, %v2026
        %v2028 = vpop.f32.mrb[0].mxu0
        %2029 = vmatprep.mubr.bf16.mxu0 0
        %2030 = vmatmul.mubr.bf16.gmra.mrb[0].mxu0 %v1789
        %v2031 = vpop.f32.mrb[0].mxu0
        %v2032 = vadd.f32 %v1827, %v2031
        %v2033 = vpop.f32.mrb[0].mxu0
        %v2034 = vpop.f32.mrb[0].mxu0
        %v2035 = vadd.f32 %v1827, %v2034
        %v2036 = vpop.f32.mrb[0].mxu0
        %2037 = vmatprep.mubr.bf16.mxu0 0
        %2038 = vmatmul.mubr.bf16.gmra.mrb[0].mxu0 %v1790
        %v2039 = vpop.f32.mrb[0].mxu0
        %v2040 = vadd.f32 %v1827, %v2039
        %v2041 = vpop.f32.mrb[0].mxu0
        %v2042 = vpop.f32.mrb[0].mxu0
        %v2043 = vadd.f32 %v1827, %v2042
        %v2044 = vpop.f32.mrb[0].mxu0
        %2045 = vmatprep.mubr.bf16.mxu0 0
        %2046 = vmatmul.mubr.bf16.gmra.mrb[0].mxu0 %v1791
        %v2047 = vpop.f32.mrb[0].mxu0
        %v2048 = vadd.f32 %v1827, %v2047
        %v2049 = vpop.f32.mrb[0].mxu0
        %v2050 = vpop.f32.mrb[0].mxu0
        %v2051 = vadd.f32 %v1827, %v2050
        %v2052 = vpop.f32.mrb[0].mxu0
        %2053 = vmatprep.mubr.bf16.mxu0 0
        %2054 = vmatmul.mubr.bf16.gmra.mrb[0].mxu0 %v1792
        %v2055 = vpop.f32.mrb[0].mxu0
        %v2056 = vadd.f32 %v1827, %v2055
        %v2057 = vpop.f32.mrb[0].mxu0
        %v2058 = vpop.f32.mrb[0].mxu0
        %v2059 = vadd.f32 %v1827, %v2058
        %v2060 = vpop.f32.mrb[0].mxu0
        %2061 = vmatprep.mubr.bf16.mxu0 0
        %2062 = vmatmul.mubr.bf16.gmra.mrb[0].mxu0 %v1793
        %v2063 = vpop.f32.mrb[0].mxu0
        %v2064 = vadd.f32 %v1827, %v2063
        %v2065 = vpop.f32.mrb[0].mxu0
        %v2066 = vpop.f32.mrb[0].mxu0
        %v2067 = vadd.f32 %v1827, %v2066
        %v2068 = vpop.f32.mrb[0].mxu0
        %2069 = vmatprep.mubr.bf16.mxu0 0
        %2070 = vmatmul.mubr.bf16.gmra.mrb[0].mxu0 %v1794
        %v2071 = vpop.f32.mrb[0].mxu0
        %v2072 = vadd.f32 %v1827, %v2071
        %v2073 = vpop.f32.mrb[0].mxu0
        %v2074 = vpop.f32.mrb[0].mxu0
        %v2075 = vadd.f32 %v1827, %v2074
        %v2076 = vpop.f32.mrb[0].mxu0
        %2077 = vmatprep.mubr.bf16.mxu0 0
        %2078 = vmatmul.mubr.bf16.gmra.mrb[0].mxu0 %v1795
        %v2079 = vpop.f32.mrb[0].mxu0
        %v2080 = vadd.f32 %v1827, %v2079
        %v2081 = vpop.f32.mrb[0].mxu0
        %v2082 = vpop.f32.mrb[0].mxu0
        %v2083 = vadd.f32 %v1827, %v2082
        %v2084 = vpop.f32.mrb[0].mxu0
        %2085 = vmatprep.mubr.bf16.mxu0 0
        %2086 = vmatmul.mubr.bf16.gmra.mrb[0].mxu0 %v1796
        %v2087 = vpop.f32.mrb[0].mxu0
        %v2088 = vadd.f32 %v1827, %v2087
        %v2089 = vpop.f32.mrb[0].mxu0
        %v2090 = vpop.f32.mrb[0].mxu0
        %v2091 = vadd.f32 %v1827, %v2090
        %v2092 = vpop.f32.mrb[0].mxu0
        %2093 = vmatprep.mubr.bf16.mxu0 0
        %2094 = vmatmul.mubr.bf16.gmra.mrb[0].mxu0 %v1797
        %v2095 = vpop.f32.mrb[0].mxu0
        %v2096 = vadd.f32 %v1827, %v2095
        %v2097 = vpop.f32.mrb[0].mxu0
        %v2098 = vpop.f32.mrb[0].mxu0
        %v2099 = vadd.f32 %v1827, %v2098
        %v2100 = vpop.f32.mrb[0].mxu0
        %2101 = vmatprep.mubr.bf16.mxu0 0
        %2102 = vmatmul.mubr.bf16.gmra.mrb[0].mxu0 %v1798
        %v2103 = vpop.f32.mrb[0].mxu0
        %v2104 = vadd.f32 %v1827, %v2103
        %v2105 = vpop.f32.mrb[0].mxu0
        %v2106 = vpop.f32.mrb[0].mxu0
        %v2107 = vadd.f32 %v1827, %v2106
        %v2108 = vpop.f32.mrb[0].mxu0
        %2109 = vmatprep.mubr.bf16.mxu0 0
        %2110 = vmatmul.mubr.bf16.gmra.mrb[0].mxu0 %v1799
        %v2111 = vpop.f32.mrb[0].mxu0
        %v2112 = vadd.f32 %v1827, %v2111
        %v2113 = vpop.f32.mrb[0].mxu0
        %v2114 = vpop.f32.mrb[0].mxu0
        %v2115 = vadd.f32 %v1827, %v2114
        %v2116 = vpop.f32.mrb[0].mxu0
        %2117 = vmatprep.mubr.bf16.mxu0 0
        %2118 = vmatmul.mubr.bf16.gmra.mrb[0].mxu0 %v1800
        %v2119 = vpop.f32.mrb[0].mxu0
        %v2120 = vadd.f32 %v1827, %v2119
        %v2121 = vpop.f32.mrb[0].mxu0
        %v2122 = vpop.f32.mrb[0].mxu0
        %v2123 = vadd.f32 %v1827, %v2122
        %v2124 = vpop.f32.mrb[0].mxu0
        %2125 = vmatprep.mubr.bf16.mxu0 0
        %2126 = vmatmul.mubr.bf16.gmra.mrb[0].mxu0 %v1801
        %v2127 = vpop.f32.mrb[0].mxu0
        %v2128 = vadd.f32 %v1827, %v2127
        %v2129 = vpop.f32.mrb[0].mxu0
        %v2130 = vpop.f32.mrb[0].mxu0
        %v2131 = vadd.f32 %v1827, %v2130
        %v2132 = vpop.f32.mrb[0].mxu0
        %2133 = vmatprep.mubr.bf16.mxu0 0
        %2134 = vmatmul.mubr.bf16.gmra.mrb[0].mxu0 %v1802
        %v2135 = vpop.f32.mrb[0].mxu0
        %v2136 = vadd.f32 %v1827, %v2135
        %v2137 = vpop.f32.mrb[0].mxu0
        %v2138 = vpop.f32.mrb[0].mxu0
        %v2139 = vadd.f32 %v1827, %v2138
        %v2140 = vpop.f32.mrb[0].mxu0
        %2141 = vmatprep.mubr.bf16.mxu0 0
        %2142 = vmatmul.mubr.bf16.gmra.mrb[0].mxu0 %v1803
        %v2143 = vpop.f32.mrb[0].mxu0
        %v2144 = vadd.f32 %v1827, %v2143
        %v2145 = vpop.f32.mrb[0].mxu0
        %v2146 = vpop.f32.mrb[0].mxu0
        %v2147 = vadd.f32 %v1827, %v2146
        %v2148 = vpop.f32.mrb[0].mxu0
        %2149 = vmatprep.mubr.bf16.mxu0 0
        %2150 = vmatmul.mubr.bf16.gmra.mrb[0].mxu0 %v1804
        %v2151 = vpop.f32.mrb[0].mxu0
        %v2152 = vadd.f32 %v1827, %v2151
        %v2153 = vpop.f32.mrb[0].mxu0
        %v2154 = vpop.f32.mrb[0].mxu0
        %v2155 = vadd.f32 %v1827, %v2154
        %v2156 = vpop.f32.mrb[0].mxu0
        %2157 = vmatprep.mubr.bf16.mxu0 0
        %2158 = vmatmul.mubr.bf16.gmra.mrb[0].mxu0 %v1805
        %v2159 = vpop.f32.mrb[0].mxu0
        %v2160 = vadd.f32 %v1827, %v2159
        %v2161 = vpop.f32.mrb[0].mxu0
        %v2162 = vpop.f32.mrb[0].mxu0
        %v2163 = vadd.f32 %v1827, %v2162
        %v2164 = vpop.f32.mrb[0].mxu0
        %2165 = vdwg.mxu0
        %v2166 = vmax.f32 %v1912, 0.0
        %v2167 = vmax.f32 %v1915, 0.0
        %v2168 = vmax.f32 %v1920, 0.0
        %v2169 = vmax.f32 %v1923, 0.0
        %v2170 = vmax.f32 %v1928, 0.0
        %v2171 = vmax.f32 %v1931, 0.0
        %v2172 = vmax.f32 %v1936, 0.0
        %v2173 = vmax.f32 %v1939, 0.0
        %v2174 = vmax.f32 %v1944, 0.0
        %v2175 = vmax.f32 %v1947, 0.0
        %v2176 = vmax.f32 %v1952, 0.0
        %v2177 = vmax.f32 %v1955, 0.0
        %v2178 = vmax.f32 %v1960, 0.0
        %v2179 = vmax.f32 %v1963, 0.0
        %v2180 = vmax.f32 %v1968, 0.0
        %v2181 = vmax.f32 %v1971, 0.0
        %v2182 = vmax.f32 %v1976, 0.0
        %v2183 = vmax.f32 %v1979, 0.0
        %v2184 = vmax.f32 %v1984, 0.0
        %v2185 = vmax.f32 %v1987, 0.0
        %v2186 = vmax.f32 %v1992, 0.0
        %v2187 = vmax.f32 %v1995, 0.0
        %v2188 = vmax.f32 %v2000, 0.0
        %v2189 = vmax.f32 %v2003, 0.0
        %v2190 = vmax.f32 %v2008, 0.0
        %v2191 = vmax.f32 %v2011, 0.0
        %v2192 = vmax.f32 %v2016, 0.0
        %v2193 = vmax.f32 %v2019, 0.0
        %v2194 = vmax.f32 %v2024, 0.0
        %v2195 = vmax.f32 %v2027, 0.0
        %v2196 = vmax.f32 %v2032, 0.0
        %v2197 = vmax.f32 %v2035, 0.0
        %v2198 = vmax.f32 %v2040, 0.0
        %v2199 = vmax.f32 %v2043, 0.0
        %v2200 = vmax.f32 %v2048, 0.0
        %v2201 = vmax.f32 %v2051, 0.0
        %v2202 = vmax.f32 %v2056, 0.0
        %v2203 = vmax.f32 %v2059, 0.0
        %v2204 = vmax.f32 %v2064, 0.0
        %v2205 = vmax.f32 %v2067, 0.0
        %v2206 = vmax.f32 %v2072, 0.0
        %v2207 = vmax.f32 %v2075, 0.0
        %v2208 = vmax.f32 %v2080, 0.0
        %v2209 = vmax.f32 %v2083, 0.0
        %v2210 = vmax.f32 %v2088, 0.0
        %v2211 = vmax.f32 %v2091, 0.0
        %v2212 = vmax.f32 %v2096, 0.0
        %v2213 = vmax.f32 %v2099, 0.0
        %v2214 = vmax.f32 %v2104, 0.0
        %v2215 = vmax.f32 %v2107, 0.0
        %v2216 = vmax.f32 %v2112, 0.0
        %v2217 = vmax.f32 %v2115, 0.0
        %v2218 = vmax.f32 %v2120, 0.0
        %v2219 = vmax.f32 %v2123, 0.0
        %v2220 = vmax.f32 %v2128, 0.0
        %v2221 = vmax.f32 %v2131, 0.0
        %v2222 = vmax.f32 %v2136, 0.0
        %v2223 = vmax.f32 %v2139, 0.0
        %v2224 = vmax.f32 %v2144, 0.0
        %v2225 = vmax.f32 %v2147, 0.0
        %v2226 = vmax.f32 %v2152, 0.0
        %v2227 = vmax.f32 %v2155, 0.0
        %v2228 = vmax.f32 %v2160, 0.0
        %v2229 = vmax.f32 %v2163, 0.0
        %v2230 = vpack.c.bf16 %v2167, %v2166
        %v2231 = vpack.c.bf16 %v2169, %v2168
        %v2232 = vpack.c.bf16 %v2171, %v2170
        %v2233 = vpack.c.bf16 %v2173, %v2172
        %v2234 = vpack.c.bf16 %v2175, %v2174
        %v2235 = vpack.c.bf16 %v2177, %v2176
        %v2236 = vpack.c.bf16 %v2179, %v2178
        %v2237 = vpack.c.bf16 %v2181, %v2180
        %v2238 = vpack.c.bf16 %v2183, %v2182
        %v2239 = vpack.c.bf16 %v2185, %v2184
        %v2240 = vpack.c.bf16 %v2187, %v2186
        %v2241 = vpack.c.bf16 %v2189, %v2188
        %v2242 = vpack.c.bf16 %v2191, %v2190
        %v2243 = vpack.c.bf16 %v2193, %v2192
        %v2244 = vpack.c.bf16 %v2195, %v2194
        %v2245 = vpack.c.bf16 %v2197, %v2196
        %v2246 = vpack.c.bf16 %v2199, %v2198
        %v2247 = vpack.c.bf16 %v2201, %v2200
        %v2248 = vpack.c.bf16 %v2203, %v2202
        %v2249 = vpack.c.bf16 %v2205, %v2204
        %v2250 = vpack.c.bf16 %v2207, %v2206
        %v2251 = vpack.c.bf16 %v2209, %v2208
        %v2252 = vpack.c.bf16 %v2211, %v2210
        %v2253 = vpack.c.bf16 %v2213, %v2212
        %v2254 = vpack.c.bf16 %v2215, %v2214
        %v2255 = vpack.c.bf16 %v2217, %v2216
        %v2256 = vpack.c.bf16 %v2219, %v2218
        %v2257 = vpack.c.bf16 %v2221, %v2220
        %v2258 = vpack.c.bf16 %v2223, %v2222
        %v2259 = vpack.c.bf16 %v2225, %v2224
        %v2260 = vpack.c.bf16 %v2227, %v2226
        %v2261 = vpack.c.bf16 %v2229, %v2228
        %v2262 = vld [vmem:[%s5] sm:$0xf]
        %v2263 = vld [vmem:[%s5 + $0x4] sm:$0xf]
        %v2264 = vld [vmem:[%s5 + $0x8] sm:$0xf]
        %v2265 = vld [vmem:[%s5 + $0xc] sm:$0xf]
        %v2266 = vld [vmem:[%s5 + $0x10] sm:$0xf]
        %v2267 = vld [vmem:[%s5 + $0x14] sm:$0xf]
        %v2268 = vld [vmem:[%s5 + $0x18] sm:$0xf]
        %v2269 = vld [vmem:[%s5 + $0x1c] sm:$0xf]
        %v2270 = vld [vmem:[%s5 + $0x20] sm:$0xf]
        %v2271 = vld [vmem:[%s5 + $0x24] sm:$0xf]
        %v2272 = vld [vmem:[%s5 + $0x28] sm:$0xf]
        %v2273 = vld [vmem:[%s5 + $0x2c] sm:$0xf]
        %v2274 = vld [vmem:[%s5 + $0x30] sm:$0xf]
        %v2275 = vld [vmem:[%s5 + $0x34] sm:$0xf]
        %v2276 = vld [vmem:[%s5 + $0x38] sm:$0xf]
        %v2277 = vld [vmem:[%s5 + $0x3c] sm:$0xf]
        %v2278 = vld [vmem:[%s6] sm:$0x1]
        %v2280 = vlaneseq
        %v2281 = vshrl.u32 %v2280, 7
        %v2282 = vsub.s32 0, %v2281
        %v2283 = vrot.slane %v2278, %v2282
        %v2301 = vunpack.c.l.b16 %v2262
        %v2302 = vunpack.c.l.b16 %v2263
        %v2303 = vunpack.c.l.b16 %v2264
        %v2304 = vunpack.c.l.b16 %v2265
        %v2305 = vunpack.c.l.b16 %v2266
        %v2306 = vunpack.c.l.b16 %v2267
        %v2307 = vunpack.c.l.b16 %v2268
        %v2308 = vunpack.c.l.b16 %v2269
        %v2309 = vunpack.c.l.b16 %v2270
        %v2310 = vunpack.c.l.b16 %v2271
        %v2311 = vunpack.c.l.b16 %v2272
        %v2312 = vunpack.c.l.b16 %v2273
        %v2313 = vunpack.c.l.b16 %v2274
        %v2314 = vunpack.c.l.b16 %v2275
        %v2315 = vunpack.c.l.b16 %v2276
        %v2316 = vunpack.c.l.b16 %v2277
        %v2317 = vpack.c.b16 %v2302, %v2301
        %v2318 = vpack.c.b16 %v2304, %v2303
        %v2319 = vpack.c.b16 %v2306, %v2305
        %v2320 = vpack.c.b16 %v2308, %v2307
        %v2321 = vpack.c.b16 %v2310, %v2309
        %v2322 = vpack.c.b16 %v2312, %v2311
        %v2323 = vpack.c.b16 %v2314, %v2313
        %v2324 = vpack.c.b16 %v2316, %v2315
        %2333 = vmatprep.subr.bf16.mxu0 0
        %2334 = vmatpush1.bf16.msra.mxu0 %v2317
        %2335 = vmatprep.subr.bf16.mxu0 0
        %2336 = vmatpush1.bf16.msra.mxu0 %v2318
        %2337 = vmatprep.subr.bf16.mxu0 0
        %2338 = vmatpush1.bf16.msra.mxu0 %v2319
        %2339 = vmatprep.subr.bf16.mxu0 0
        %2340 = vmatpush1.bf16.msra.mxu0 %v2320
        %2341 = vmatprep.subr.bf16.mxu0 0
        %2342 = vmatpush1.bf16.msra.mxu0 %v2321
        %2343 = vmatprep.subr.bf16.mxu0 0
        %2344 = vmatpush1.bf16.msra.mxu0 %v2322
        %2345 = vmatprep.subr.bf16.mxu0 0
        %2346 = vmatpush1.bf16.msra.mxu0 %v2323
        %2347 = vmatprep.subr.bf16.mxu0 0
        %2348 = vmatpush1.bf16.msra.mxu0 %v2324
        %2349 = vmatprep.subr.bf16.mxu0 0
        %2350 = vmatpush1.bf16.msra.mxu0 0
        %2351 = vmatprep.subr.bf16.mxu0 0
        %2352 = vmatpush1.bf16.msra.mxu0 0
        %2353 = vmatprep.subr.bf16.mxu0 0
        %2354 = vmatpush1.bf16.msra.mxu0 0
        %2355 = vmatprep.subr.bf16.mxu0 0
        %2356 = vmatpush1.bf16.msra.mxu0 0
        %2357 = vmatprep.subr.bf16.mxu0 0
        %2358 = vmatpush1.bf16.msra.mxu0 0
        %2359 = vmatprep.subr.bf16.mxu0 0
        %2360 = vmatpush1.bf16.msra.mxu0 0
        %2361 = vmatprep.subr.bf16.mxu0 0
        %2362 = vmatpush1.bf16.msra.mxu0 0
        %2363 = vmatprep.subr.bf16.mxu0 0
        %2364 = vmatpush1.bf16.msra.mxu0 0
        %2365 = vmatprep.mubr.bf16.mxu0 0
        %2366 = vmatmul.mubr.bf16.gmra.mrb[0].mxu0 %v2230
        %v2367 = vpop.f32.mrb[0].mxu0
        %v2368 = vadd.f32 %v2283, %v2367
        %v2369 = vpop.f32.mrb[0].mxu0
        %v2370 = vpop.f32.mrb[0].mxu0
        %v2371 = vadd.f32 %v2283, %v2370
        %v2372 = vpop.f32.mrb[0].mxu0
        %2373 = vmatprep.mubr.bf16.mxu0 0
        %2374 = vmatmul.mubr.bf16.gmra.mrb[0].mxu0 %v2231
        %v2375 = vpop.f32.mrb[0].mxu0
        %v2376 = vadd.f32 %v2283, %v2375
        %v2377 = vpop.f32.mrb[0].mxu0
        %v2378 = vpop.f32.mrb[0].mxu0
        %v2379 = vadd.f32 %v2283, %v2378
        %v2380 = vpop.f32.mrb[0].mxu0
        %2381 = vmatprep.mubr.bf16.mxu0 0
        %2382 = vmatmul.mubr.bf16.gmra.mrb[0].mxu0 %v2232
        %v2383 = vpop.f32.mrb[0].mxu0
        %v2384 = vadd.f32 %v2283, %v2383
        %v2385 = vpop.f32.mrb[0].mxu0
        %v2386 = vpop.f32.mrb[0].mxu0
        %v2387 = vadd.f32 %v2283, %v2386
        %v2388 = vpop.f32.mrb[0].mxu0
        %2389 = vmatprep.mubr.bf16.mxu0 0
        %2390 = vmatmul.mubr.bf16.gmra.mrb[0].mxu0 %v2233
        %v2391 = vpop.f32.mrb[0].mxu0
        %v2392 = vadd.f32 %v2283, %v2391
        %v2393 = vpop.f32.mrb[0].mxu0
        %v2394 = vpop.f32.mrb[0].mxu0
        %v2395 = vadd.f32 %v2283, %v2394
        %v2396 = vpop.f32.mrb[0].mxu0
        %2397 = vmatprep.mubr.bf16.mxu0 0
        %2398 = vmatmul.mubr.bf16.gmra.mrb[0].mxu0 %v2234
        %v2399 = vpop.f32.mrb[0].mxu0
        %v2400 = vadd.f32 %v2283, %v2399
        %v2401 = vpop.f32.mrb[0].mxu0
        %v2402 = vpop.f32.mrb[0].mxu0
        %v2403 = vadd.f32 %v2283, %v2402
        %v2404 = vpop.f32.mrb[0].mxu0
        %2405 = vmatprep.mubr.bf16.mxu0 0
        %2406 = vmatmul.mubr.bf16.gmra.mrb[0].mxu0 %v2235
        %v2407 = vpop.f32.mrb[0].mxu0
        %v2408 = vadd.f32 %v2283, %v2407
        %v2409 = vpop.f32.mrb[0].mxu0
        %v2410 = vpop.f32.mrb[0].mxu0
        %v2411 = vadd.f32 %v2283, %v2410
        %v2412 = vpop.f32.mrb[0].mxu0
        %2413 = vmatprep.mubr.bf16.mxu0 0
        %2414 = vmatmul.mubr.bf16.gmra.mrb[0].mxu0 %v2236
        %v2415 = vpop.f32.mrb[0].mxu0
        %v2416 = vadd.f32 %v2283, %v2415
        %v2417 = vpop.f32.mrb[0].mxu0
        %v2418 = vpop.f32.mrb[0].mxu0
        %v2419 = vadd.f32 %v2283, %v2418
        %v2420 = vpop.f32.mrb[0].mxu0
        %2421 = vmatprep.mubr.bf16.mxu0 0
        %2422 = vmatmul.mubr.bf16.gmra.mrb[0].mxu0 %v2237
        %v2423 = vpop.f32.mrb[0].mxu0
        %v2424 = vadd.f32 %v2283, %v2423
        %v2425 = vpop.f32.mrb[0].mxu0
        %v2426 = vpop.f32.mrb[0].mxu0
        %v2427 = vadd.f32 %v2283, %v2426
        %v2428 = vpop.f32.mrb[0].mxu0
        %2429 = vmatprep.mubr.bf16.mxu0 0
        %2430 = vmatmul.mubr.bf16.gmra.mrb[0].mxu0 %v2238
        %v2431 = vpop.f32.mrb[0].mxu0
        %v2432 = vadd.f32 %v2283, %v2431
        %v2433 = vpop.f32.mrb[0].mxu0
        %v2434 = vpop.f32.mrb[0].mxu0
        %v2435 = vadd.f32 %v2283, %v2434
        %v2436 = vpop.f32.mrb[0].mxu0
        %2437 = vmatprep.mubr.bf16.mxu0 0
        %2438 = vmatmul.mubr.bf16.gmra.mrb[0].mxu0 %v2239
        %v2439 = vpop.f32.mrb[0].mxu0
        %v2440 = vadd.f32 %v2283, %v2439
        %v2441 = vpop.f32.mrb[0].mxu0
        %v2442 = vpop.f32.mrb[0].mxu0
        %v2443 = vadd.f32 %v2283, %v2442
        %v2444 = vpop.f32.mrb[0].mxu0
        %2445 = vmatprep.mubr.bf16.mxu0 0
        %2446 = vmatmul.mubr.bf16.gmra.mrb[0].mxu0 %v2240
        %v2447 = vpop.f32.mrb[0].mxu0
        %v2448 = vadd.f32 %v2283, %v2447
        %v2449 = vpop.f32.mrb[0].mxu0
        %v2450 = vpop.f32.mrb[0].mxu0
        %v2451 = vadd.f32 %v2283, %v2450
        %v2452 = vpop.f32.mrb[0].mxu0
        %2453 = vmatprep.mubr.bf16.mxu0 0
        %2454 = vmatmul.mubr.bf16.gmra.mrb[0].mxu0 %v2241
        %v2455 = vpop.f32.mrb[0].mxu0
        %v2456 = vadd.f32 %v2283, %v2455
        %v2457 = vpop.f32.mrb[0].mxu0
        %v2458 = vpop.f32.mrb[0].mxu0
        %v2459 = vadd.f32 %v2283, %v2458
        %v2460 = vpop.f32.mrb[0].mxu0
        %2461 = vmatprep.mubr.bf16.mxu0 0
        %2462 = vmatmul.mubr.bf16.gmra.mrb[0].mxu0 %v2242
        %v2463 = vpop.f32.mrb[0].mxu0
        %v2464 = vadd.f32 %v2283, %v2463
        %v2465 = vpop.f32.mrb[0].mxu0
        %v2466 = vpop.f32.mrb[0].mxu0
        %v2467 = vadd.f32 %v2283, %v2466
        %v2468 = vpop.f32.mrb[0].mxu0
        %2469 = vmatprep.mubr.bf16.mxu0 0
        %2470 = vmatmul.mubr.bf16.gmra.mrb[0].mxu0 %v2243
        %v2471 = vpop.f32.mrb[0].mxu0
        %v2472 = vadd.f32 %v2283, %v2471
        %v2473 = vpop.f32.mrb[0].mxu0
        %v2474 = vpop.f32.mrb[0].mxu0
        %v2475 = vadd.f32 %v2283, %v2474
        %v2476 = vpop.f32.mrb[0].mxu0
        %2477 = vmatprep.mubr.bf16.mxu0 0
        %2478 = vmatmul.mubr.bf16.gmra.mrb[0].mxu0 %v2244
        %v2479 = vpop.f32.mrb[0].mxu0
        %v2480 = vadd.f32 %v2283, %v2479
        %v2481 = vpop.f32.mrb[0].mxu0
        %v2482 = vpop.f32.mrb[0].mxu0
        %v2483 = vadd.f32 %v2283, %v2482
        %v2484 = vpop.f32.mrb[0].mxu0
        %2485 = vmatprep.mubr.bf16.mxu0 0
        %2486 = vmatmul.mubr.bf16.gmra.mrb[0].mxu0 %v2245
        %v2487 = vpop.f32.mrb[0].mxu0
        %v2488 = vadd.f32 %v2283, %v2487
        %v2489 = vpop.f32.mrb[0].mxu0
        %v2490 = vpop.f32.mrb[0].mxu0
        %v2491 = vadd.f32 %v2283, %v2490
        %v2492 = vpop.f32.mrb[0].mxu0
        %2493 = vmatprep.mubr.bf16.mxu0 0
        %2494 = vmatmul.mubr.bf16.gmra.mrb[0].mxu0 %v2246
        %v2495 = vpop.f32.mrb[0].mxu0
        %v2496 = vadd.f32 %v2283, %v2495
        %v2497 = vpop.f32.mrb[0].mxu0
        %v2498 = vpop.f32.mrb[0].mxu0
        %v2499 = vadd.f32 %v2283, %v2498
        %v2500 = vpop.f32.mrb[0].mxu0
        %2501 = vmatprep.mubr.bf16.mxu0 0
        %2502 = vmatmul.mubr.bf16.gmra.mrb[0].mxu0 %v2247
        %v2503 = vpop.f32.mrb[0].mxu0
        %v2504 = vadd.f32 %v2283, %v2503
        %v2505 = vpop.f32.mrb[0].mxu0
        %v2506 = vpop.f32.mrb[0].mxu0
        %v2507 = vadd.f32 %v2283, %v2506
        %v2508 = vpop.f32.mrb[0].mxu0
        %2509 = vmatprep.mubr.bf16.mxu0 0
        %2510 = vmatmul.mubr.bf16.gmra.mrb[0].mxu0 %v2248
        %v2511 = vpop.f32.mrb[0].mxu0
        %v2512 = vadd.f32 %v2283, %v2511
        %v2513 = vpop.f32.mrb[0].mxu0
        %v2514 = vpop.f32.mrb[0].mxu0
        %v2515 = vadd.f32 %v2283, %v2514
        %v2516 = vpop.f32.mrb[0].mxu0
        %2517 = vmatprep.mubr.bf16.mxu0 0
        %2518 = vmatmul.mubr.bf16.gmra.mrb[0].mxu0 %v2249
        %v2519 = vpop.f32.mrb[0].mxu0
        %v2520 = vadd.f32 %v2283, %v2519
        %v2521 = vpop.f32.mrb[0].mxu0
        %v2522 = vpop.f32.mrb[0].mxu0
        %v2523 = vadd.f32 %v2283, %v2522
        %v2524 = vpop.f32.mrb[0].mxu0
        %2525 = vmatprep.mubr.bf16.mxu0 0
        %2526 = vmatmul.mubr.bf16.gmra.mrb[0].mxu0 %v2250
        %v2527 = vpop.f32.mrb[0].mxu0
        %v2528 = vadd.f32 %v2283, %v2527
        %v2529 = vpop.f32.mrb[0].mxu0
        %v2530 = vpop.f32.mrb[0].mxu0
        %v2531 = vadd.f32 %v2283, %v2530
        %v2532 = vpop.f32.mrb[0].mxu0
        %2533 = vmatprep.mubr.bf16.mxu0 0
        %2534 = vmatmul.mubr.bf16.gmra.mrb[0].mxu0 %v2251
        %v2535 = vpop.f32.mrb[0].mxu0
        %v2536 = vadd.f32 %v2283, %v2535
        %v2537 = vpop.f32.mrb[0].mxu0
        %v2538 = vpop.f32.mrb[0].mxu0
        %v2539 = vadd.f32 %v2283, %v2538
        %v2540 = vpop.f32.mrb[0].mxu0
        %2541 = vmatprep.mubr.bf16.mxu0 0
        %2542 = vmatmul.mubr.bf16.gmra.mrb[0].mxu0 %v2252
        %v2543 = vpop.f32.mrb[0].mxu0
        %v2544 = vadd.f32 %v2283, %v2543
        %v2545 = vpop.f32.mrb[0].mxu0
        %v2546 = vpop.f32.mrb[0].mxu0
        %v2547 = vadd.f32 %v2283, %v2546
        %v2548 = vpop.f32.mrb[0].mxu0
        %2549 = vmatprep.mubr.bf16.mxu0 0
        %2550 = vmatmul.mubr.bf16.gmra.mrb[0].mxu0 %v2253
        %v2551 = vpop.f32.mrb[0].mxu0
        %v2552 = vadd.f32 %v2283, %v2551
        %v2553 = vpop.f32.mrb[0].mxu0
        %v2554 = vpop.f32.mrb[0].mxu0
        %v2555 = vadd.f32 %v2283, %v2554
        %v2556 = vpop.f32.mrb[0].mxu0
        %2557 = vmatprep.mubr.bf16.mxu0 0
        %2558 = vmatmul.mubr.bf16.gmra.mrb[0].mxu0 %v2254
        %v2559 = vpop.f32.mrb[0].mxu0
        %v2560 = vadd.f32 %v2283, %v2559
        %v2561 = vpop.f32.mrb[0].mxu0
        %v2562 = vpop.f32.mrb[0].mxu0
        %v2563 = vadd.f32 %v2283, %v2562
        %v2564 = vpop.f32.mrb[0].mxu0
        %2565 = vmatprep.mubr.bf16.mxu0 0
        %2566 = vmatmul.mubr.bf16.gmra.mrb[0].mxu0 %v2255
        %v2567 = vpop.f32.mrb[0].mxu0
        %v2568 = vadd.f32 %v2283, %v2567
        %v2569 = vpop.f32.mrb[0].mxu0
        %v2570 = vpop.f32.mrb[0].mxu0
        %v2571 = vadd.f32 %v2283, %v2570
        %v2572 = vpop.f32.mrb[0].mxu0
        %2573 = vmatprep.mubr.bf16.mxu0 0
        %2574 = vmatmul.mubr.bf16.gmra.mrb[0].mxu0 %v2256
        %v2575 = vpop.f32.mrb[0].mxu0
        %v2576 = vadd.f32 %v2283, %v2575
        %v2577 = vpop.f32.mrb[0].mxu0
        %v2578 = vpop.f32.mrb[0].mxu0
        %v2579 = vadd.f32 %v2283, %v2578
        %v2580 = vpop.f32.mrb[0].mxu0
        %2581 = vmatprep.mubr.bf16.mxu0 0
        %2582 = vmatmul.mubr.bf16.gmra.mrb[0].mxu0 %v2257
        %v2583 = vpop.f32.mrb[0].mxu0
        %v2584 = vadd.f32 %v2283, %v2583
        %v2585 = vpop.f32.mrb[0].mxu0
        %v2586 = vpop.f32.mrb[0].mxu0
        %v2587 = vadd.f32 %v2283, %v2586
        %v2588 = vpop.f32.mrb[0].mxu0
        %2589 = vmatprep.mubr.bf16.mxu0 0
        %2590 = vmatmul.mubr.bf16.gmra.mrb[0].mxu0 %v2258
        %v2591 = vpop.f32.mrb[0].mxu0
        %v2592 = vadd.f32 %v2283, %v2591
        %v2593 = vpop.f32.mrb[0].mxu0
        %v2594 = vpop.f32.mrb[0].mxu0
        %v2595 = vadd.f32 %v2283, %v2594
        %v2596 = vpop.f32.mrb[0].mxu0
        %2597 = vmatprep.mubr.bf16.mxu0 0
        %2598 = vmatmul.mubr.bf16.gmra.mrb[0].mxu0 %v2259
        %v2599 = vpop.f32.mrb[0].mxu0
        %v2600 = vadd.f32 %v2283, %v2599
        %v2601 = vpop.f32.mrb[0].mxu0
        %v2602 = vpop.f32.mrb[0].mxu0
        %v2603 = vadd.f32 %v2283, %v2602
        %v2604 = vpop.f32.mrb[0].mxu0
        %2605 = vmatprep.mubr.bf16.mxu0 0
        %2606 = vmatmul.mubr.bf16.gmra.mrb[0].mxu0 %v2260
        %v2607 = vpop.f32.mrb[0].mxu0
        %v2608 = vadd.f32 %v2283, %v2607
        %v2609 = vpop.f32.mrb[0].mxu0
        %v2610 = vpop.f32.mrb[0].mxu0
        %v2611 = vadd.f32 %v2283, %v2610
        %v2612 = vpop.f32.mrb[0].mxu0
        %2613 = vmatprep.mubr.bf16.mxu0 0
        %2614 = vmatmul.mubr.bf16.gmra.mrb[0].mxu0 %v2261
        %v2615 = vpop.f32.mrb[0].mxu0
        %v2616 = vadd.f32 %v2283, %v2615
        %v2617 = vpop.f32.mrb[0].mxu0
        %v2618 = vpop.f32.mrb[0].mxu0
        %v2619 = vadd.f32 %v2283, %v2618
        %v2620 = vpop.f32.mrb[0].mxu0
        %2621 = vdwg.mxu0
        %v2622 = vld [vmem:[#allocation2] sm:$0xff]
        %v2623 = vld [vmem:[#allocation2 + $0x8] sm:$0xff]
        %v2624 = vld [vmem:[#allocation2 + $0x10] sm:$0xff]
        %v2625 = vld [vmem:[#allocation2 + $0x18] sm:$0xff]
        %v2626 = vld [vmem:[#allocation2 + $0x20] sm:$0xff]
        %v2627 = vld [vmem:[#allocation2 + $0x28] sm:$0xff]
        %v2628 = vld [vmem:[#allocation2 + $0x30] sm:$0xff]
        %v2629 = vld [vmem:[#allocation2 + $0x38] sm:$0xff]
        %v2630 = vld [vmem:[#allocation2 + $0x40] sm:$0xff]
        %v2631 = vld [vmem:[#allocation2 + $0x48] sm:$0xff]
        %v2632 = vld [vmem:[#allocation2 + $0x50] sm:$0xff]
        %v2633 = vld [vmem:[#allocation2 + $0x58] sm:$0xff]
        %v2634 = vld [vmem:[#allocation2 + $0x60] sm:$0xff]
        %v2635 = vld [vmem:[#allocation2 + $0x68] sm:$0xff]
        %v2636 = vld [vmem:[#allocation2 + $0x70] sm:$0xff]
        %v2637 = vld [vmem:[#allocation2 + $0x78] sm:$0xff]
        %v2638 = vld [vmem:[#allocation2 + $0x80] sm:$0xff]
        %v2639 = vld [vmem:[#allocation2 + $0x88] sm:$0xff]
        %v2640 = vld [vmem:[#allocation2 + $0x90] sm:$0xff]
        %v2641 = vld [vmem:[#allocation2 + $0x98] sm:$0xff]
        %v2642 = vld [vmem:[#allocation2 + $0xa0] sm:$0xff]
        %v2643 = vld [vmem:[#allocation2 + $0xa8] sm:$0xff]
        %v2644 = vld [vmem:[#allocation2 + $0xb0] sm:$0xff]
        %v2645 = vld [vmem:[#allocation2 + $0xb8] sm:$0xff]
        %v2646 = vld [vmem:[#allocation2 + $0xc0] sm:$0xff]
        %v2647 = vld [vmem:[#allocation2 + $0xc8] sm:$0xff]
        %v2648 = vld [vmem:[#allocation2 + $0xd0] sm:$0xff]
        %v2649 = vld [vmem:[#allocation2 + $0xd8] sm:$0xff]
        %v2650 = vld [vmem:[#allocation2 + $0xe0] sm:$0xff]
        %v2651 = vld [vmem:[#allocation2 + $0xe8] sm:$0xff]
        %v2652 = vld [vmem:[#allocation2 + $0xf0] sm:$0xff]
        %v2653 = vld [vmem:[#allocation2 + $0xf8] sm:$0xff]
        %v2654 = vld [vmem:[#allocation2 + $0x100] sm:$0xff]
        %v2655 = vld [vmem:[#allocation2 + $0x108] sm:$0xff]
        %v2656 = vld [vmem:[#allocation2 + $0x110] sm:$0xff]
        %v2657 = vld [vmem:[#allocation2 + $0x118] sm:$0xff]
        %v2658 = vld [vmem:[#allocation2 + $0x120] sm:$0xff]
        %v2659 = vld [vmem:[#allocation2 + $0x128] sm:$0xff]
        %v2660 = vld [vmem:[#allocation2 + $0x130] sm:$0xff]
        %v2661 = vld [vmem:[#allocation2 + $0x138] sm:$0xff]
        %v2662 = vld [vmem:[#allocation2 + $0x140] sm:$0xff]
        %v2663 = vld [vmem:[#allocation2 + $0x148] sm:$0xff]
        %v2664 = vld [vmem:[#allocation2 + $0x150] sm:$0xff]
        %v2665 = vld [vmem:[#allocation2 + $0x158] sm:$0xff]
        %v2666 = vld [vmem:[#allocation2 + $0x160] sm:$0xff]
        %v2667 = vld [vmem:[#allocation2 + $0x168] sm:$0xff]
        %v2668 = vld [vmem:[#allocation2 + $0x170] sm:$0xff]
        %v2669 = vld [vmem:[#allocation2 + $0x178] sm:$0xff]
        %v2670 = vld [vmem:[#allocation2 + $0x180] sm:$0xff]
        %v2671 = vld [vmem:[#allocation2 + $0x188] sm:$0xff]
        %v2672 = vld [vmem:[#allocation2 + $0x190] sm:$0xff]
        %v2673 = vld [vmem:[#allocation2 + $0x198] sm:$0xff]
        %v2674 = vld [vmem:[#allocation2 + $0x1a0] sm:$0xff]
        %v2675 = vld [vmem:[#allocation2 + $0x1a8] sm:$0xff]
        %v2676 = vld [vmem:[#allocation2 + $0x1b0] sm:$0xff]
        %v2677 = vld [vmem:[#allocation2 + $0x1b8] sm:$0xff]
        %v2678 = vld [vmem:[#allocation2 + $0x1c0] sm:$0xff]
        %v2679 = vld [vmem:[#allocation2 + $0x1c8] sm:$0xff]
        %v2680 = vld [vmem:[#allocation2 + $0x1d0] sm:$0xff]
        %v2681 = vld [vmem:[#allocation2 + $0x1d8] sm:$0xff]
        %v2682 = vld [vmem:[#allocation2 + $0x1e0] sm:$0xff]
        %v2683 = vld [vmem:[#allocation2 + $0x1e8] sm:$0xff]
        %v2684 = vld [vmem:[#allocation2 + $0x1f0] sm:$0xff]
        %v2685 = vld [vmem:[#allocation2 + $0x1f8] sm:$0xff]
        %v2686 = vadd.f32 %v2622, %v2368
        %v2687 = vadd.f32 %v2623, %v2371
        %v2688 = vadd.f32 %v2624, %v2376
        %v2689 = vadd.f32 %v2625, %v2379
        %v2690 = vadd.f32 %v2626, %v2384
        %v2691 = vadd.f32 %v2627, %v2387
        %v2692 = vadd.f32 %v2628, %v2392
        %v2693 = vadd.f32 %v2629, %v2395
        %v2694 = vadd.f32 %v2630, %v2400
        %v2695 = vadd.f32 %v2631, %v2403
        %v2696 = vadd.f32 %v2632, %v2408
        %v2697 = vadd.f32 %v2633, %v2411
        %v2698 = vadd.f32 %v2634, %v2416
        %v2699 = vadd.f32 %v2635, %v2419
        %v2700 = vadd.f32 %v2636, %v2424
        %v2701 = vadd.f32 %v2637, %v2427
        %v2702 = vadd.f32 %v2638, %v2432
        %v2703 = vadd.f32 %v2639, %v2435
        %v2704 = vadd.f32 %v2640, %v2440
        %v2705 = vadd.f32 %v2641, %v2443
        %v2706 = vadd.f32 %v2642, %v2448
        %v2707 = vadd.f32 %v2643, %v2451
        %v2708 = vadd.f32 %v2644, %v2456
        %v2709 = vadd.f32 %v2645, %v2459
        %v2710 = vadd.f32 %v2646, %v2464
        %v2711 = vadd.f32 %v2647, %v2467
        %v2712 = vadd.f32 %v2648, %v2472
        %v2713 = vadd.f32 %v2649, %v2475
        %v2714 = vadd.f32 %v2650, %v2480
        %v2715 = vadd.f32 %v2651, %v2483
        %v2716 = vadd.f32 %v2652, %v2488
        %v2717 = vadd.f32 %v2653, %v2491
        %v2718 = vadd.f32 %v2654, %v2496
        %v2719 = vadd.f32 %v2655, %v2499
        %v2720 = vadd.f32 %v2656, %v2504
        %v2721 = vadd.f32 %v2657, %v2507
        %v2722 = vadd.f32 %v2658, %v2512
        %v2723 = vadd.f32 %v2659, %v2515
        %v2724 = vadd.f32 %v2660, %v2520
        %v2725 = vadd.f32 %v2661, %v2523
        %v2726 = vadd.f32 %v2662, %v2528
        %v2727 = vadd.f32 %v2663, %v2531
        %v2728 = vadd.f32 %v2664, %v2536
        %v2729 = vadd.f32 %v2665, %v2539
        %v2730 = vadd.f32 %v2666, %v2544
        %v2731 = vadd.f32 %v2667, %v2547
        %v2732 = vadd.f32 %v2668, %v2552
        %v2733 = vadd.f32 %v2669, %v2555
        %v2734 = vadd.f32 %v2670, %v2560
        %v2735 = vadd.f32 %v2671, %v2563
        %v2736 = vadd.f32 %v2672, %v2568
        %v2737 = vadd.f32 %v2673, %v2571
        %v2738 = vadd.f32 %v2674, %v2576
        %v2739 = vadd.f32 %v2675, %v2579
        %v2740 = vadd.f32 %v2676, %v2584
        %v2741 = vadd.f32 %v2677, %v2587
        %v2742 = vadd.f32 %v2678, %v2592
        %v2743 = vadd.f32 %v2679, %v2595
        %v2744 = vadd.f32 %v2680, %v2600
        %v2745 = vadd.f32 %v2681, %v2603
        %v2746 = vadd.f32 %v2682, %v2608
        %v2747 = vadd.f32 %v2683, %v2611
        %v2748 = vadd.f32 %v2684, %v2616
        %v2749 = vadd.f32 %v2685, %v2619
        %v2750 = vmax.f32 %v2686, 0.0
        %v2751 = vmax.f32 %v2687, 0.0
        %v2752 = vmax.f32 %v2688, 0.0
        %v2753 = vmax.f32 %v2689, 0.0
        %v2754 = vmax.f32 %v2690, 0.0
        %v2755 = vmax.f32 %v2691, 0.0
        %v2756 = vmax.f32 %v2692, 0.0
        %v2757 = vmax.f32 %v2693, 0.0
        %v2758 = vmax.f32 %v2694, 0.0
        %v2759 = vmax.f32 %v2695, 0.0
        %v2760 = vmax.f32 %v2696, 0.0
        %v2761 = vmax.f32 %v2697, 0.0
        %v2762 = vmax.f32 %v2698, 0.0
        %v2763 = vmax.f32 %v2699, 0.0
        %v2764 = vmax.f32 %v2700, 0.0
        %v2765 = vmax.f32 %v2701, 0.0
        %v2766 = vmax.f32 %v2702, 0.0
        %v2767 = vmax.f32 %v2703, 0.0
        %v2768 = vmax.f32 %v2704, 0.0
        %v2769 = vmax.f32 %v2705, 0.0
        %v2770 = vmax.f32 %v2706, 0.0
        %v2771 = vmax.f32 %v2707, 0.0
        %v2772 = vmax.f32 %v2708, 0.0
        %v2773 = vmax.f32 %v2709, 0.0
        %v2774 = vmax.f32 %v2710, 0.0
        %v2775 = vmax.f32 %v2711, 0.0
        %v2776 = vmax.f32 %v2712, 0.0
        %v2777 = vmax.f32 %v2713, 0.0
        %v2778 = vmax.f32 %v2714, 0.0
        %v2779 = vmax.f32 %v2715, 0.0
        %v2780 = vmax.f32 %v2716, 0.0
        %v2781 = vmax.f32 %v2717, 0.0
        %v2782 = vmax.f32 %v2718, 0.0
        %v2783 = vmax.f32 %v2719, 0.0
        %v2784 = vmax.f32 %v2720, 0.0
        %v2785 = vmax.f32 %v2721, 0.0
        %v2786 = vmax.f32 %v2722, 0.0
        %v2787 = vmax.f32 %v2723, 0.0
        %v2788 = vmax.f32 %v2724, 0.0
        %v2789 = vmax.f32 %v2725, 0.0
        %v2790 = vmax.f32 %v2726, 0.0
        %v2791 = vmax.f32 %v2727, 0.0
        %v2792 = vmax.f32 %v2728, 0.0
        %v2793 = vmax.f32 %v2729, 0.0
        %v2794 = vmax.f32 %v2730, 0.0
        %v2795 = vmax.f32 %v2731, 0.0
        %v2796 = vmax.f32 %v2732, 0.0
        %v2797 = vmax.f32 %v2733, 0.0
        %v2798 = vmax.f32 %v2734, 0.0
        %v2799 = vmax.f32 %v2735, 0.0
        %v2800 = vmax.f32 %v2736, 0.0
        %v2801 = vmax.f32 %v2737, 0.0
        %v2802 = vmax.f32 %v2738, 0.0
        %v2803 = vmax.f32 %v2739, 0.0
        %v2804 = vmax.f32 %v2740, 0.0
        %v2805 = vmax.f32 %v2741, 0.0
        %v2806 = vmax.f32 %v2742, 0.0
        %v2807 = vmax.f32 %v2743, 0.0
        %v2808 = vmax.f32 %v2744, 0.0
        %v2809 = vmax.f32 %v2745, 0.0
        %v2810 = vmax.f32 %v2746, 0.0
        %v2811 = vmax.f32 %v2747, 0.0
        %v2812 = vmax.f32 %v2748, 0.0
        %v2813 = vmax.f32 %v2749, 0.0
        %v2814 = vpack.c.bf16 %v2751, %v2750
        %v2815 = vpack.c.bf16 %v2753, %v2752
        %v2816 = vpack.c.bf16 %v2755, %v2754
        %v2817 = vpack.c.bf16 %v2757, %v2756
        %v2818 = vpack.c.bf16 %v2759, %v2758
        %v2819 = vpack.c.bf16 %v2761, %v2760
        %v2820 = vpack.c.bf16 %v2763, %v2762
        %v2821 = vpack.c.bf16 %v2765, %v2764
        %v2822 = vpack.c.bf16 %v2767, %v2766
        %v2823 = vpack.c.bf16 %v2769, %v2768
        %v2824 = vpack.c.bf16 %v2771, %v2770
        %v2825 = vpack.c.bf16 %v2773, %v2772
        %v2826 = vpack.c.bf16 %v2775, %v2774
        %v2827 = vpack.c.bf16 %v2777, %v2776
        %v2828 = vpack.c.bf16 %v2779, %v2778
        %v2829 = vpack.c.bf16 %v2781, %v2780
        %v2830 = vpack.c.bf16 %v2783, %v2782
        %v2831 = vpack.c.bf16 %v2785, %v2784
        %v2832 = vpack.c.bf16 %v2787, %v2786
        %v2833 = vpack.c.bf16 %v2789, %v2788
        %v2834 = vpack.c.bf16 %v2791, %v2790
        %v2835 = vpack.c.bf16 %v2793, %v2792
        %v2836 = vpack.c.bf16 %v2795, %v2794
        %v2837 = vpack.c.bf16 %v2797, %v2796
        %v2838 = vpack.c.bf16 %v2799, %v2798
        %v2839 = vpack.c.bf16 %v2801, %v2800
        %v2840 = vpack.c.bf16 %v2803, %v2802
        %v2841 = vpack.c.bf16 %v2805, %v2804
        %v2842 = vpack.c.bf16 %v2807, %v2806
        %v2843 = vpack.c.bf16 %v2809, %v2808
        %v2844 = vpack.c.bf16 %v2811, %v2810
        %v2845 = vpack.c.bf16 %v2813, %v2812
        %v2878 = vunpack.c.l.b16 %v2814
        %v2879 = vunpack.c.h.b16 %v2814
        %v2880 = vunpack.c.l.b16 %v2815
        %v2881 = vunpack.c.h.b16 %v2815
        %v2882 = vunpack.c.l.b16 %v2816
        %v2883 = vunpack.c.h.b16 %v2816
        %v2884 = vunpack.c.l.b16 %v2817
        %v2885 = vunpack.c.h.b16 %v2817
        %v2886 = vunpack.c.l.b16 %v2818
        %v2887 = vunpack.c.h.b16 %v2818
        %v2888 = vunpack.c.l.b16 %v2819
        %v2889 = vunpack.c.h.b16 %v2819
        %v2890 = vunpack.c.l.b16 %v2820
        %v2891 = vunpack.c.h.b16 %v2820
        %v2892 = vunpack.c.l.b16 %v2821
        %v2893 = vunpack.c.h.b16 %v2821
        %v2894 = vunpack.c.l.b16 %v2822
        %v2895 = vunpack.c.h.b16 %v2822
        %v2896 = vunpack.c.l.b16 %v2823
        %v2897 = vunpack.c.h.b16 %v2823
        %v2898 = vunpack.c.l.b16 %v2824
        %v2899 = vunpack.c.h.b16 %v2824
        %v2900 = vunpack.c.l.b16 %v2825
        %v2901 = vunpack.c.h.b16 %v2825
        %v2902 = vunpack.c.l.b16 %v2826
        %v2903 = vunpack.c.h.b16 %v2826
        %v2904 = vunpack.c.l.b16 %v2827
        %v2905 = vunpack.c.h.b16 %v2827
        %v2906 = vunpack.c.l.b16 %v2828
        %v2907 = vunpack.c.h.b16 %v2828
        %v2908 = vunpack.c.l.b16 %v2829
        %v2909 = vunpack.c.h.b16 %v2829
        %v2910 = vunpack.c.l.b16 %v2830
        %v2911 = vunpack.c.h.b16 %v2830
        %v2912 = vunpack.c.l.b16 %v2831
        %v2913 = vunpack.c.h.b16 %v2831
        %v2914 = vunpack.c.l.b16 %v2832
        %v2915 = vunpack.c.h.b16 %v2832
        %v2916 = vunpack.c.l.b16 %v2833
        %v2917 = vunpack.c.h.b16 %v2833
        %v2918 = vunpack.c.l.b16 %v2834
        %v2919 = vunpack.c.h.b16 %v2834
        %v2920 = vunpack.c.l.b16 %v2835
        %v2921 = vunpack.c.h.b16 %v2835
        %v2922 = vunpack.c.l.b16 %v2836
        %v2923 = vunpack.c.h.b16 %v2836
        %v2924 = vunpack.c.l.b16 %v2837
        %v2925 = vunpack.c.h.b16 %v2837
        %v2926 = vunpack.c.l.b16 %v2838
        %v2927 = vunpack.c.h.b16 %v2838
        %v2928 = vunpack.c.l.b16 %v2839
        %v2929 = vunpack.c.h.b16 %v2839
        %v2930 = vunpack.c.l.b16 %v2840
        %v2931 = vunpack.c.h.b16 %v2840
        %v2932 = vunpack.c.l.b16 %v2841
        %v2933 = vunpack.c.h.b16 %v2841
        %v2934 = vunpack.c.l.b16 %v2842
        %v2935 = vunpack.c.h.b16 %v2842
        %v2936 = vunpack.c.l.b16 %v2843
        %v2937 = vunpack.c.h.b16 %v2843
        %v2938 = vunpack.c.l.b16 %v2844
        %v2939 = vunpack.c.h.b16 %v2844
        %v2940 = vunpack.c.l.b16 %v2845
        %v2941 = vunpack.c.h.b16 %v2845
        %v2942 = vpack.c.b16 %v2878, %v2878
        %v2943 = vpack.c.b16 %v2879, %v2879
        %v2944 = vpack.c.b16 %v2880, %v2880
        %v2945 = vpack.c.b16 %v2881, %v2881
        %v2946 = vpack.c.b16 %v2882, %v2882
        %v2947 = vpack.c.b16 %v2883, %v2883
        %v2948 = vpack.c.b16 %v2884, %v2884
        %v2949 = vpack.c.b16 %v2885, %v2885
        %v2950 = vpack.c.b16 %v2886, %v2886
        %v2951 = vpack.c.b16 %v2887, %v2887
        %v2952 = vpack.c.b16 %v2888, %v2888
        %v2953 = vpack.c.b16 %v2889, %v2889
        %v2954 = vpack.c.b16 %v2890, %v2890
        %v2955 = vpack.c.b16 %v2891, %v2891
        %v2956 = vpack.c.b16 %v2892, %v2892
        %v2957 = vpack.c.b16 %v2893, %v2893
        %v2958 = vpack.c.b16 %v2894, %v2894
        %v2959 = vpack.c.b16 %v2895, %v2895
        %v2960 = vpack.c.b16 %v2896, %v2896
        %v2961 = vpack.c.b16 %v2897, %v2897
        %v2962 = vpack.c.b16 %v2898, %v2898
        %v2963 = vpack.c.b16 %v2899, %v2899
        %v2964 = vpack.c.b16 %v2900, %v2900
        %v2965 = vpack.c.b16 %v2901, %v2901
        %v2966 = vpack.c.b16 %v2902, %v2902
        %v2967 = vpack.c.b16 %v2903, %v2903
        %v2968 = vpack.c.b16 %v2904, %v2904
        %v2969 = vpack.c.b16 %v2905, %v2905
        %v2970 = vpack.c.b16 %v2906, %v2906
        %v2971 = vpack.c.b16 %v2907, %v2907
        %v2972 = vpack.c.b16 %v2908, %v2908
        %v2973 = vpack.c.b16 %v2909, %v2909
        %v2974 = vpack.c.b16 %v2910, %v2910
        %v2975 = vpack.c.b16 %v2911, %v2911
        %v2976 = vpack.c.b16 %v2912, %v2912
        %v2977 = vpack.c.b16 %v2913, %v2913
        %v2978 = vpack.c.b16 %v2914, %v2914
        %v2979 = vpack.c.b16 %v2915, %v2915
        %v2980 = vpack.c.b16 %v2916, %v2916
        %v2981 = vpack.c.b16 %v2917, %v2917
        %v2982 = vpack.c.b16 %v2918, %v2918
        %v2983 = vpack.c.b16 %v2919, %v2919
        %v2984 = vpack.c.b16 %v2920, %v2920
        %v2985 = vpack.c.b16 %v2921, %v2921
        %v2986 = vpack.c.b16 %v2922, %v2922
        %v2987 = vpack.c.b16 %v2923, %v2923
        %v2988 = vpack.c.b16 %v2924, %v2924
        %v2989 = vpack.c.b16 %v2925, %v2925
        %v2990 = vpack.c.b16 %v2926, %v2926
        %v2991 = vpack.c.b16 %v2927, %v2927
        %v2992 = vpack.c.b16 %v2928, %v2928
        %v2993 = vpack.c.b16 %v2929, %v2929
        %v2994 = vpack.c.b16 %v2930, %v2930
        %v2995 = vpack.c.b16 %v2931, %v2931
        %v2996 = vpack.c.b16 %v2932, %v2932
        %v2997 = vpack.c.b16 %v2933, %v2933
        %v2998 = vpack.c.b16 %v2934, %v2934
        %v2999 = vpack.c.b16 %v2935, %v2935
        %v3000 = vpack.c.b16 %v2936, %v2936
        %v3001 = vpack.c.b16 %v2937, %v2937
        %v3002 = vpack.c.b16 %v2938, %v2938
        %v3003 = vpack.c.b16 %v2939, %v2939
        %v3004 = vpack.c.b16 %v2940, %v2940
        %v3005 = vpack.c.b16 %v2941, %v2941
        %3070 = vst [vmem:[%s588] sm:$0xf] %v2942
        %3071 = vst [vmem:[%s588 + $0x4] sm:$0xf] %v2943
        %3072 = vst [vmem:[%s588 + $0x8] sm:$0xf] %v2944
        %3073 = vst [vmem:[%s588 + $0xc] sm:$0xf] %v2945
        %3074 = vst [vmem:[%s588 + $0x10] sm:$0xf] %v2946
        %3075 = vst [vmem:[%s588 + $0x14] sm:$0xf] %v2947
        %3076 = vst [vmem:[%s588 + $0x18] sm:$0xf] %v2948
        %3077 = vst [vmem:[%s588 + $0x1c] sm:$0xf] %v2949
        %3078 = vst [vmem:[%s588 + $0x20] sm:$0xf] %v2950
        %3079 = vst [vmem:[%s588 + $0x24] sm:$0xf] %v2951
        %3080 = vst [vmem:[%s588 + $0x28] sm:$0xf] %v2952
        %3081 = vst [vmem:[%s588 + $0x2c] sm:$0xf] %v2953
        %3082 = vst [vmem:[%s588 + $0x30] sm:$0xf] %v2954
        %3083 = vst [vmem:[%s588 + $0x34] sm:$0xf] %v2955
        %3084 = vst [vmem:[%s588 + $0x38] sm:$0xf] %v2956
        %3085 = vst [vmem:[%s588 + $0x3c] sm:$0xf] %v2957
        %3086 = vst [vmem:[%s588 + $0x40] sm:$0xf] %v2958
        %3087 = vst [vmem:[%s588 + $0x44] sm:$0xf] %v2959
        %3088 = vst [vmem:[%s588 + $0x48] sm:$0xf] %v2960
        %3089 = vst [vmem:[%s588 + $0x4c] sm:$0xf] %v2961
        %3090 = vst [vmem:[%s588 + $0x50] sm:$0xf] %v2962
        %3091 = vst [vmem:[%s588 + $0x54] sm:$0xf] %v2963
        %3092 = vst [vmem:[%s588 + $0x58] sm:$0xf] %v2964
        %3093 = vst [vmem:[%s588 + $0x5c] sm:$0xf] %v2965
        %3094 = vst [vmem:[%s588 + $0x60] sm:$0xf] %v2966
        %3095 = vst [vmem:[%s588 + $0x64] sm:$0xf] %v2967
        %3096 = vst [vmem:[%s588 + $0x68] sm:$0xf] %v2968
        %3097 = vst [vmem:[%s588 + $0x6c] sm:$0xf] %v2969
        %3098 = vst [vmem:[%s588 + $0x70] sm:$0xf] %v2970
        %3099 = vst [vmem:[%s588 + $0x74] sm:$0xf] %v2971
        %3100 = vst [vmem:[%s588 + $0x78] sm:$0xf] %v2972
        %3101 = vst [vmem:[%s588 + $0x7c] sm:$0xf] %v2973
        %3102 = vst [vmem:[%s588 + $0x80] sm:$0xf] %v2974
        %3103 = vst [vmem:[%s588 + $0x84] sm:$0xf] %v2975
        %3104 = vst [vmem:[%s588 + $0x88] sm:$0xf] %v2976
        %3105 = vst [vmem:[%s588 + $0x8c] sm:$0xf] %v2977
        %3106 = vst [vmem:[%s588 + $0x90] sm:$0xf] %v2978
        %3107 = vst [vmem:[%s588 + $0x94] sm:$0xf] %v2979
        %3108 = vst [vmem:[%s588 + $0x98] sm:$0xf] %v2980
        %3109 = vst [vmem:[%s588 + $0x9c] sm:$0xf] %v2981
        %3110 = vst [vmem:[%s588 + $0xa0] sm:$0xf] %v2982
        %3111 = vst [vmem:[%s588 + $0xa4] sm:$0xf] %v2983
        %3112 = vst [vmem:[%s588 + $0xa8] sm:$0xf] %v2984
        %3113 = vst [vmem:[%s588 + $0xac] sm:$0xf] %v2985
        %3114 = vst [vmem:[%s588 + $0xb0] sm:$0xf] %v2986
        %3115 = vst [vmem:[%s588 + $0xb4] sm:$0xf] %v2987
        %3116 = vst [vmem:[%s588 + $0xb8] sm:$0xf] %v2988
        %3117 = vst [vmem:[%s588 + $0xbc] sm:$0xf] %v2989
        %3118 = vst [vmem:[%s588 + $0xc0] sm:$0xf] %v2990
        %3119 = vst [vmem:[%s588 + $0xc4] sm:$0xf] %v2991
        %3120 = vst [vmem:[%s588 + $0xc8] sm:$0xf] %v2992
        %3121 = vst [vmem:[%s588 + $0xcc] sm:$0xf] %v2993
        %3122 = vst [vmem:[%s588 + $0xd0] sm:$0xf] %v2994
        %3123 = vst [vmem:[%s588 + $0xd4] sm:$0xf] %v2995
        %3124 = vst [vmem:[%s588 + $0xd8] sm:$0xf] %v2996
        %3125 = vst [vmem:[%s588 + $0xdc] sm:$0xf] %v2997
        %3126 = vst [vmem:[%s588 + $0xe0] sm:$0xf] %v2998
        %3127 = vst [vmem:[%s588 + $0xe4] sm:$0xf] %v2999
        %3128 = vst [vmem:[%s588 + $0xe8] sm:$0xf] %v3000
        %3129 = vst [vmem:[%s588 + $0xec] sm:$0xf] %v3001
        %3130 = vst [vmem:[%s588 + $0xf0] sm:$0xf] %v3002
        %3131 = vst [vmem:[%s588 + $0xf4] sm:$0xf] %v3003
        %3132 = vst [vmem:[%s588 + $0xf8] sm:$0xf] %v3004
        %3133 = vst [vmem:[%s588 + $0xfc] sm:$0xf] %v3005
        %s3134 = sand.u32 %s197, 1
        %s3135 = scalar_lea.sflag [#allocation6], %s3134
        %s3136 = sand.u32 %s197, 1
        %s3137 = smul.addr %s3136, 256
        %s3138 = scalar_lea.vmem [#allocation5], %s3137
        // Predicated region
        $region90: #{tpu_custom_call.1} parent=84 // pred_check
          %p3139 = pneg %p207
        $region91: #{tpu_custom_call.1} parent=84 // pred_check_branch
          %3141 = sbr.rel (%p3139) target = $region93
        $region92: #{tpu_custom_call.1} parent=84 // pred_region
          #allocation8 [shape = 'u32[6]{0}', space=smem, size = 0x18, scoped, tag = 'DMA stride descriptor']
          %s3142 = smul.u32 16, %s26
          %s3144 = ssub.s32 4096, 4096
          %3145 = vsyncadd %s3135, %s3144
          %s3146 = smul.addr %s25, 128
          %s3147 = sadd.s32 %s3142, %s3146
          %s3148 = smul.addr %s3147, 64
          %s3149 = scalar_lea.hbm %s7, %s3148
          %s3151 = sshll.u32 1, 14
          %s3152 = sxor.u32 4294967295, %s3151
          %s3155 = sshll.u32 7, 18
          %s3156 = sxor.u32 4294967295, %s3155
          %s3157 = sand.u32 0, %s3156
          %s3159 = sor.u32 %s3157, 0
          %s3161 = sshll.u32 3, 24
          %s3162 = sxor.u32 4294967295, %s3161
          %s3163 = sand.u32 %s3159, %s3162
          %s3165 = sor.u32 %s3163, 0
          %s3166 = sshll.u32 %s3138, 4
          %s3167 = int_to_ptr.vmem [resolvable:$true] %s3166
          %3173 = sst [smem:[#allocation8]] 1024
          %s3174 = scalar_lea.smem [#allocation8], 1
          %3175 = sst [smem:[%s3174]] 2048
          %s3176 = scalar_lea.smem [#allocation8], 2
          %3177 = sst [smem:[%s3176]] 16
          %s3178 = scalar_lea.smem [#allocation8], 3
          %3179 = sst [smem:[%s3178]] 64
          %s3180 = scalar_lea.smem [#allocation8], 4
          %3181 = sst [smem:[%s3180]] 64
          %s3182 = scalar_lea.smem [#allocation8], 5
          %3183 = sst [smem:[%s3182]] 4
          %3185 = dma.general %s3167, 4096, %s3149, %s3135, [#allocation7], [#allocation8], %s3165, 0
        $region93: #{tpu_custom_call.1} parent=84 // pred_fallthru
          _
      $region85: #{tpu_custom_call.1} parent=5 // pred_fallthru
        _
      %p3186 = scmp.le.s32.totalorder 2, %s16
      // Predicated region
      $region94: #{tpu_custom_call.1} parent=5 // pred_check
        %p3187 = pneg %p3186
      $region95: #{tpu_custom_call.1} parent=5 // pred_check_branch
        %3189 = sbr.rel (%p3187) target = $region97
      $region96: #{tpu_custom_call.1} parent=5 // pred_region
        %s3190 = ssub.s32 %s16, 2
        // Predicated region
        $region98: #{tpu_custom_call.1} parent=96 // pred_check
          %p3191 = pneg %p213
        $region99: #{tpu_custom_call.1} parent=96 // pred_check_branch
          %3193 = sbr.rel (%p3191) target = $region101
        $region100: #{tpu_custom_call.1} parent=96 // pred_region
          %s3194 = sand.u32 %s198, 1
          %s3195 = scalar_lea.sflag [#allocation6], %s3194
          %s3196 = sand.u32 %s198, 1
          %s3197 = smul.addr %s3196, 256
          %s3198 = scalar_lea.vmem [#allocation5], %s3197
          %3199 = dma.done %s3195, 4096
        $region101: #{tpu_custom_call.1} parent=96 // pred_fallthru
          _
      $region97: #{tpu_custom_call.1} parent=5 // pred_fallthru
        _
    $region6: #{tpu_custom_call.1} parent=1 // loop_footer
      %s20 = sadd.s32 1, %s16
    $region7: #{tpu_custom_call.1} parent=1 // loop_footer_branch
      %15 = sbr.rel target = $region3
    $region8: #{tpu_custom_call.1} parent=1 // loop_exit
      _
    %3200 = vsyncpa [#allocation6], 1
    %s3201 = scalar_lea.sflag [#allocation6], 1
    %3202 = vsyncpa %s3201, 1

</llo_original>
